<compile_context>
chip_gen: v5e
topology: v5e:2x2
jax: 0.10.0
libtpu: 0.0.40
codegen_flags: <defaults>
</compile_context>

<pallas_src>
import functools

import jax
import jax.numpy as jnp
from jax.experimental import pallas as pl
from jax.experimental.pallas import tpu as pltpu

LN_EPS = 1e-5  # PyTorch nn.LayerNorm default


def _conv3x3_cm(x, w2d, masks, W):
    """3x3 conv, stride 1, zero-pad 1, no bias, channel-major lane-dense.

    x:     (Cin, H*W)    f32
    w2d:   (Cout, 9*Cin) f32, flat index k = (kh*3 + kw)*Cin + ci
    masks: (9, H*W)      f32 in {0,1}, tap-validity masks (precomputed, shared)
    """
    Cin, HW = x.shape
    Cout = w2d.shape[0]
    acc = jnp.zeros((Cout, HW), jnp.float32)
    for t in range(9):
        kh, kw = divmod(t, 3)
        shift = (kh - 1) * W + (kw - 1)              # flat spatial offset of this tap
        rolled = x if shift == 0 else jnp.roll(x, -shift, axis=1)
        tap = rolled * masks[t:t + 1, :]             # zero out-of-bounds positions
        for ci in range(Cin):
            k = t * Cin + ci
            # (Cout,1) * (1,HW) broadcast FMA on the VPU (MXU skipped: K=Cin=4).
            acc = acc + w2d[:, k:k + 1] * tap[ci:ci + 1, :]
    return acc


def _layernorm_cm(x, gamma, beta, inv_hw):
    """LayerNorm over the H*W (lane) axis per channel; one-pass mean/var in f32.

    x: (C, H*W); gamma, beta: (1, H*W); inv_hw: python float 1/(H*W).
    """
    s = jnp.sum(x, axis=1, keepdims=True)            # (C, 1)
    sq = jnp.sum(x * x, axis=1, keepdims=True)       # (C, 1)
    mean = s * inv_hw
    var = sq * inv_hw - mean * mean
    xn = (x - mean) * jax.lax.rsqrt(var + LN_EPS)
    return xn * gamma + beta


def _basic_block_kernel(x_ref, w1_ref, w2_ref, ln_ref, mask_ref, o_ref, *, W):
    x = x_ref[0].astype(jnp.float32)                 # (Cin, H*W)
    residual = x                                     # downsample=None, stride=1
    w1 = w1_ref[...]                                 # (Cout, 9*Cin) f32
    w2 = w2_ref[...]
    ln = ln_ref[...]                                 # (4, H*W): g1, b1, g2, b2
    masks = mask_ref[...]                            # (9, H*W)
    inv_hw = 1.0 / x.shape[1]

    out = _conv3x3_cm(x, w1, masks, W)                            # conv1
    out = _layernorm_cm(out, ln[0:1, :], ln[1:2, :], inv_hw)      # bn1 (LayerNorm)
    out = jnp.maximum(out, 0.0)                                   # relu
    out = _conv3x3_cm(out, w2, masks, W)                          # conv2
    out = _conv3x3_cm(out, w2, masks, W)                          # conv2 again (dcn None)
    out = _layernorm_cm(out, ln[2:3, :], ln[3:4, :], inv_hw)      # bn2 (LayerNorm)
    out = out + residual
    out = jnp.maximum(out, 0.0)                                   # relu
    o_ref[0] = out.astype(o_ref.dtype)


def basic_block_layernorm(x_nchw, w1_oihw, w2_oihw, g1, b1, g2, b2):
    """BasicBlockLayerNorm forward (stride=1, dcn=None, downsample=None).

    x_nchw:  (N, Cin, H, W)    PyTorch layout
    w*_oihw: (Cout, Cin, 3, 3) PyTorch conv weight layout
    g*, b*:  (H, W)            LayerNorm affine params (norm_shape=(H, W))
    returns: (N, Cout, H, W)
    """
    N, Cin, H, W = x_nchw.shape
    Cout = w1_oihw.shape[0]
    HW = H * W

    # Channel-major, lane-dense input/output layout: (N, C, H*W). No transposes.
    x_cm = x_nchw.reshape(N, Cin, HW)

    # Conv weights -> (Cout, 9*Cin) f32, flat k = (kh*3 + kw)*Cin + ci (cast hoisted).
    w1_2d = jnp.transpose(w1_oihw, (0, 2, 3, 1)).reshape(Cout, 9 * Cin).astype(jnp.float32)
    w2_2d = jnp.transpose(w2_oihw, (0, 2, 3, 1)).reshape(Cout, 9 * Cin).astype(jnp.float32)

    # All four LayerNorm affine params packed into one lane-dense (4, H*W) slab.
    ln_params = jnp.stack([g1.reshape(HW), b1.reshape(HW),
                           g2.reshape(HW), b2.reshape(HW)]).astype(jnp.float32)

    # 9 tap-validity masks over the flattened H*W axis, shared by all three convs.
    hw = jnp.arange(HW, dtype=jnp.int32)
    h_idx, w_idx = hw // W, hw % W
    masks = jnp.stack([
        ((h_idx + dh - 1 >= 0) & (h_idx + dh - 1 < H) &
         (w_idx + dw - 1 >= 0) & (w_idx + dw - 1 < W))
        for dh in range(3) for dw in range(3)
    ]).astype(jnp.float32)                                        # (9, H*W)

    kernel = functools.partial(_basic_block_kernel, W=W)

    out_cm = pl.pallas_call(
        kernel,
        out_shape=jax.ShapeDtypeStruct((N, Cout, HW), x_nchw.dtype),
        grid_spec=pltpu.PrefetchScalarGridSpec(
            num_scalar_prefetch=0,
            grid=(N,),
            in_specs=[
                pl.BlockSpec((1, Cin, HW), lambda n: (n, 0, 0)),
                pl.BlockSpec((Cout, 9 * Cin), lambda n: (0, 0)),
                pl.BlockSpec((Cout, 9 * Cin), lambda n: (0, 0)),
                pl.BlockSpec((4, HW), lambda n: (0, 0)),
                pl.BlockSpec((9, HW), lambda n: (0, 0)),
            ],
            out_specs=pl.BlockSpec((1, Cout, HW), lambda n: (n, 0, 0)),
        ),
        compiler_params=pltpu.CompilerParams(
            dimension_semantics=("parallel",)),
    )(x_cm, w1_2d, w2_2d, ln_params, masks)

    return out_cm.reshape(N, Cout, H, W)


def _ref_forward(x, w1, w2, g1, b1, g2, b2):
    """Pure-JAX reference (NCHW, HIGHEST-precision convs), mirrors the PyTorch forward."""
    def conv(x_, w_):
        return jax.lax.conv_general_dilated(
            x_, w_, window_strides=(1, 1), padding=((1, 1), (1, 1)),
            dimension_numbers=("NCHW", "OIHW", "NCHW"),
            precision=jax.lax.Precision.HIGHEST)

    def ln(x_, g, b):
        mean = jnp.mean(x_, axis=(2, 3), keepdims=True)
        var = jnp.mean((x_ - mean) ** 2, axis=(2, 3), keepdims=True)
        return (x_ - mean) * jax.lax.rsqrt(var + LN_EPS) * g[None, None] + b[None, None]

    residual = x
    out = jnp.maximum(ln(conv(x, w1), g1, b1), 0.0)
    out = conv(conv(out, w2), w2)                   # conv2 applied twice (dcn=None path)
    out = ln(out, g2, b2)
    return jnp.maximum(out + residual, 0.0)


if __name__ == "__main__":
    N, C, H, W = 2, 4, 16, 16                       # inplanes = planes = 4
    key = jax.random.PRNGKey(0)
    k = jax.random.split(key, 7)
    x = jax.random.normal(k[0], (N, C, H, W), jnp.float32)
    w1 = 0.2 * jax.random.normal(k[1], (C, C, 3, 3), jnp.float32)
    w2 = 0.2 * jax.random.normal(k[2], (C, C, 3, 3), jnp.float32)
    g1 = 1.0 + 0.1 * jax.random.normal(k[3], (H, W), jnp.float32)
    b1 = 0.1 * jax.random.normal(k[4], (H, W), jnp.float32)
    g2 = 1.0 + 0.1 * jax.random.normal(k[5], (H, W), jnp.float32)
    b2 = 0.1 * jax.random.normal(k[6], (H, W), jnp.float32)

    out = jax.block_until_ready(basic_block_layernorm(x, w1, w2, g1, b1, g2, b2))
    ref = _ref_forward(x, w1, w2, g1, b1, g2, b2)

    assert out.shape == (N, C, H, W), out.shape
    max_err = float(jnp.max(jnp.abs(out - ref)))
    assert jnp.allclose(out, ref, atol=1e-4, rtol=1e-4), f"max_err={max_err}"
    print("KERNEL_OK")
</pallas_src>

<mosaic_0001>
module attributes {stable_mosaic.version = 11 : i64} {
  func.func @_basic_block_kernel(%arg0: i32, %arg1: memref<1x4x256xf32, #tpu.memory_space<vmem>>, %arg2: memref<4x36xf32, #tpu.memory_space<vmem>>, %arg3: memref<4x36xf32, #tpu.memory_space<vmem>>, %arg4: memref<4x256xf32, #tpu.memory_space<vmem>>, %arg5: memref<9x256xf32, #tpu.memory_space<vmem>>, %arg6: memref<1x4x256xf32, #tpu.memory_space<vmem>>) attributes {dimension_semantics = [#tpu.dimension_semantics<parallel>], iteration_bounds = array<i64: 2>, scalar_prefetch = 0 : i64, scratch_operands = 0 : i64, tpu.core_type = #tpu.core_type<tc>, window_params = [{transform_indices = @transform_0, window_bounds = array<i64: 1, 4, 256>}, {pipeline_mode = #tpu.pipeline_mode<synchronous>, transform_indices = @transform_1, window_bounds = array<i64: 4, 36>}, {pipeline_mode = #tpu.pipeline_mode<synchronous>, transform_indices = @transform_2, window_bounds = array<i64: 4, 36>}, {pipeline_mode = #tpu.pipeline_mode<synchronous>, transform_indices = @transform_3, window_bounds = array<i64: 4, 256>}, {pipeline_mode = #tpu.pipeline_mode<synchronous>, transform_indices = @transform_4, window_bounds = array<i64: 9, 256>}, {transform_indices = @transform_5, window_bounds = array<i64: 1, 4, 256>}]} {
    %c0 = arith.constant 0 : index
    %c0_0 = arith.constant 0 : index
    %c0_1 = arith.constant 0 : index
    %0 = vector.load %arg1[%c0, %c0_0, %c0_1] : memref<1x4x256xf32, #tpu.memory_space<vmem>>, vector<1x4x256xf32>
    %1 = vector.shape_cast %0 : vector<1x4x256xf32> to vector<4x256xf32>
    %c0_2 = arith.constant 0 : index
    %c0_3 = arith.constant 0 : index
    %2 = vector.load %arg2[%c0_2, %c0_3] : memref<4x36xf32, #tpu.memory_space<vmem>>, vector<4x36xf32>
    %c0_4 = arith.constant 0 : index
    %c0_5 = arith.constant 0 : index
    %3 = vector.load %arg3[%c0_4, %c0_5] : memref<4x36xf32, #tpu.memory_space<vmem>>, vector<4x36xf32>
    %c0_6 = arith.constant 0 : index
    %c0_7 = arith.constant 0 : index
    %4 = vector.load %arg4[%c0_6, %c0_7] : memref<4x256xf32, #tpu.memory_space<vmem>>, vector<4x256xf32>
    %c0_8 = arith.constant 0 : index
    %c0_9 = arith.constant 0 : index
    %5 = vector.load %arg5[%c0_8, %c0_9] : memref<9x256xf32, #tpu.memory_space<vmem>>, vector<9x256xf32>
    %cst = arith.constant 0.000000e+00 : f32
    %6 = vector.broadcast %cst : f32 to vector<4x256xf32>
    %7 = vector.extract_strided_slice %1 {offsets = [0, 239], sizes = [4, 17], strides = [1, 1]} : vector<4x256xf32> to vector<4x17xf32>
    %8 = vector.extract_strided_slice %1 {offsets = [0, 0], sizes = [4, 239], strides = [1, 1]} : vector<4x256xf32> to vector<4x239xf32>
    %9 = tpu.concatenate %7, %8 in 1 : vector<4x17xf32>, vector<4x239xf32> -> vector<4x256xf32>
    %10 = vector.extract_strided_slice %5 {offsets = [0, 0], sizes = [1, 256], strides = [1, 1]} : vector<9x256xf32> to vector<1x256xf32>
    %11 = vector.broadcast %10 : vector<1x256xf32> to vector<4x256xf32>
    %12 = arith.mulf %9, %11 : vector<4x256xf32>
    %13 = vector.extract_strided_slice %2 {offsets = [0, 0], sizes = [4, 1], strides = [1, 1]} : vector<4x36xf32> to vector<4x1xf32>
    %14 = vector.extract_strided_slice %12 {offsets = [0, 0], sizes = [1, 256], strides = [1, 1]} : vector<4x256xf32> to vector<1x256xf32>
    %15 = vector.broadcast %13 : vector<4x1xf32> to vector<4x256xf32>
    %16 = vector.broadcast %14 : vector<1x256xf32> to vector<4x256xf32>
    %17 = arith.mulf %15, %16 : vector<4x256xf32>
    %18 = arith.addf %6, %17 : vector<4x256xf32>
    %19 = vector.extract_strided_slice %2 {offsets = [0, 1], sizes = [4, 1], strides = [1, 1]} : vector<4x36xf32> to vector<4x1xf32>
    %20 = vector.extract_strided_slice %12 {offsets = [1, 0], sizes = [1, 256], strides = [1, 1]} : vector<4x256xf32> to vector<1x256xf32>
    %21 = vector.broadcast %19 : vector<4x1xf32> to vector<4x256xf32>
    %22 = vector.broadcast %20 : vector<1x256xf32> to vector<4x256xf32>
    %23 = arith.mulf %21, %22 : vector<4x256xf32>
    %24 = arith.addf %18, %23 : vector<4x256xf32>
    %25 = vector.extract_strided_slice %2 {offsets = [0, 2], sizes = [4, 1], strides = [1, 1]} : vector<4x36xf32> to vector<4x1xf32>
    %26 = vector.extract_strided_slice %12 {offsets = [2, 0], sizes = [1, 256], strides = [1, 1]} : vector<4x256xf32> to vector<1x256xf32>
    %27 = vector.broadcast %25 : vector<4x1xf32> to vector<4x256xf32>
    %28 = vector.broadcast %26 : vector<1x256xf32> to vector<4x256xf32>
    %29 = arith.mulf %27, %28 : vector<4x256xf32>
    %30 = arith.addf %24, %29 : vector<4x256xf32>
    %31 = vector.extract_strided_slice %2 {offsets = [0, 3], sizes = [4, 1], strides = [1, 1]} : vector<4x36xf32> to vector<4x1xf32>
    %32 = vector.extract_strided_slice %12 {offsets = [3, 0], sizes = [1, 256], strides = [1, 1]} : vector<4x256xf32> to vector<1x256xf32>
    %33 = vector.broadcast %31 : vector<4x1xf32> to vector<4x256xf32>
    %34 = vector.broadcast %32 : vector<1x256xf32> to vector<4x256xf32>
    %35 = arith.mulf %33, %34 : vector<4x256xf32>
    %36 = arith.addf %30, %35 : vector<4x256xf32>
    %37 = vector.extract_strided_slice %1 {offsets = [0, 240], sizes = [4, 16], strides = [1, 1]} : vector<4x256xf32> to vector<4x16xf32>
    %38 = vector.extract_strided_slice %1 {offsets = [0, 0], sizes = [4, 240], strides = [1, 1]} : vector<4x256xf32> to vector<4x240xf32>
    %39 = tpu.concatenate %37, %38 in 1 : vector<4x16xf32>, vector<4x240xf32> -> vector<4x256xf32>
    %40 = vector.extract_strided_slice %5 {offsets = [1, 0], sizes = [1, 256], strides = [1, 1]} : vector<9x256xf32> to vector<1x256xf32>
    %41 = vector.broadcast %40 : vector<1x256xf32> to vector<4x256xf32>
    %42 = arith.mulf %39, %41 : vector<4x256xf32>
    %43 = vector.extract_strided_slice %2 {offsets = [0, 4], sizes = [4, 1], strides = [1, 1]} : vector<4x36xf32> to vector<4x1xf32>
    %44 = vector.extract_strided_slice %42 {offsets = [0, 0], sizes = [1, 256], strides = [1, 1]} : vector<4x256xf32> to vector<1x256xf32>
    %45 = vector.broadcast %43 : vector<4x1xf32> to vector<4x256xf32>
    %46 = vector.broadcast %44 : vector<1x256xf32> to vector<4x256xf32>
    %47 = arith.mulf %45, %46 : vector<4x256xf32>
    %48 = arith.addf %36, %47 : vector<4x256xf32>
    %49 = vector.extract_strided_slice %2 {offsets = [0, 5], sizes = [4, 1], strides = [1, 1]} : vector<4x36xf32> to vector<4x1xf32>
    %50 = vector.extract_strided_slice %42 {offsets = [1, 0], sizes = [1, 256], strides = [1, 1]} : vector<4x256xf32> to vector<1x256xf32>
    %51 = vector.broadcast %49 : vector<4x1xf32> to vector<4x256xf32>
    %52 = vector.broadcast %50 : vector<1x256xf32> to vector<4x256xf32>
    %53 = arith.mulf %51, %52 : vector<4x256xf32>
    %54 = arith.addf %48, %53 : vector<4x256xf32>
    %55 = vector.extract_strided_slice %2 {offsets = [0, 6], sizes = [4, 1], strides = [1, 1]} : vector<4x36xf32> to vector<4x1xf32>
    %56 = vector.extract_strided_slice %42 {offsets = [2, 0], sizes = [1, 256], strides = [1, 1]} : vector<4x256xf32> to vector<1x256xf32>
    %57 = vector.broadcast %55 : vector<4x1xf32> to vector<4x256xf32>
    %58 = vector.broadcast %56 : vector<1x256xf32> to vector<4x256xf32>
    %59 = arith.mulf %57, %58 : vector<4x256xf32>
    %60 = arith.addf %54, %59 : vector<4x256xf32>
    %61 = vector.extract_strided_slice %2 {offsets = [0, 7], sizes = [4, 1], strides = [1, 1]} : vector<4x36xf32> to vector<4x1xf32>
    %62 = vector.extract_strided_slice %42 {offsets = [3, 0], sizes = [1, 256], strides = [1, 1]} : vector<4x256xf32> to vector<1x256xf32>
    %63 = vector.broadcast %61 : vector<4x1xf32> to vector<4x256xf32>
    %64 = vector.broadcast %62 : vector<1x256xf32> to vector<4x256xf32>
    %65 = arith.mulf %63, %64 : vector<4x256xf32>
    %66 = arith.addf %60, %65 : vector<4x256xf32>
    %67 = vector.extract_strided_slice %1 {offsets = [0, 241], sizes = [4, 15], strides = [1, 1]} : vector<4x256xf32> to vector<4x15xf32>
    %68 = vector.extract_strided_slice %1 {offsets = [0, 0], sizes = [4, 241], strides = [1, 1]} : vector<4x256xf32> to vector<4x241xf32>
    %69 = tpu.concatenate %67, %68 in 1 : vector<4x15xf32>, vector<4x241xf32> -> vector<4x256xf32>
    %70 = vector.extract_strided_slice %5 {offsets = [2, 0], sizes = [1, 256], strides = [1, 1]} : vector<9x256xf32> to vector<1x256xf32>
    %71 = vector.broadcast %70 : vector<1x256xf32> to vector<4x256xf32>
    %72 = arith.mulf %69, %71 : vector<4x256xf32>
    %73 = vector.extract_strided_slice %2 {offsets = [0, 8], sizes = [4, 1], strides = [1, 1]} : vector<4x36xf32> to vector<4x1xf32>
    %74 = vector.extract_strided_slice %72 {offsets = [0, 0], sizes = [1, 256], strides = [1, 1]} : vector<4x256xf32> to vector<1x256xf32>
    %75 = vector.broadcast %73 : vector<4x1xf32> to vector<4x256xf32>
    %76 = vector.broadcast %74 : vector<1x256xf32> to vector<4x256xf32>
    %77 = arith.mulf %75, %76 : vector<4x256xf32>
    %78 = arith.addf %66, %77 : vector<4x256xf32>
    %79 = vector.extract_strided_slice %2 {offsets = [0, 9], sizes = [4, 1], strides = [1, 1]} : vector<4x36xf32> to vector<4x1xf32>
    %80 = vector.extract_strided_slice %72 {offsets = [1, 0], sizes = [1, 256], strides = [1, 1]} : vector<4x256xf32> to vector<1x256xf32>
    %81 = vector.broadcast %79 : vector<4x1xf32> to vector<4x256xf32>
    %82 = vector.broadcast %80 : vector<1x256xf32> to vector<4x256xf32>
    %83 = arith.mulf %81, %82 : vector<4x256xf32>
    %84 = arith.addf %78, %83 : vector<4x256xf32>
    %85 = vector.extract_strided_slice %2 {offsets = [0, 10], sizes = [4, 1], strides = [1, 1]} : vector<4x36xf32> to vector<4x1xf32>
    %86 = vector.extract_strided_slice %72 {offsets = [2, 0], sizes = [1, 256], strides = [1, 1]} : vector<4x256xf32> to vector<1x256xf32>
    %87 = vector.broadcast %85 : vector<4x1xf32> to vector<4x256xf32>
    %88 = vector.broadcast %86 : vector<1x256xf32> to vector<4x256xf32>
    %89 = arith.mulf %87, %88 : vector<4x256xf32>
    %90 = arith.addf %84, %89 : vector<4x256xf32>
    %91 = vector.extract_strided_slice %2 {offsets = [0, 11], sizes = [4, 1], strides = [1, 1]} : vector<4x36xf32> to vector<4x1xf32>
    %92 = vector.extract_strided_slice %72 {offsets = [3, 0], sizes = [1, 256], strides = [1, 1]} : vector<4x256xf32> to vector<1x256xf32>
    %93 = vector.broadcast %91 : vector<4x1xf32> to vector<4x256xf32>
    %94 = vector.broadcast %92 : vector<1x256xf32> to vector<4x256xf32>
    %95 = arith.mulf %93, %94 : vector<4x256xf32>
    %96 = arith.addf %90, %95 : vector<4x256xf32>
    %97 = vector.extract_strided_slice %1 {offsets = [0, 255], sizes = [4, 1], strides = [1, 1]} : vector<4x256xf32> to vector<4x1xf32>
    %98 = vector.extract_strided_slice %1 {offsets = [0, 0], sizes = [4, 255], strides = [1, 1]} : vector<4x256xf32> to vector<4x255xf32>
    %99 = tpu.concatenate %97, %98 in 1 : vector<4x1xf32>, vector<4x255xf32> -> vector<4x256xf32>
    %100 = vector.extract_strided_slice %5 {offsets = [3, 0], sizes = [1, 256], strides = [1, 1]} : vector<9x256xf32> to vector<1x256xf32>
    %101 = vector.broadcast %100 : vector<1x256xf32> to vector<4x256xf32>
    %102 = arith.mulf %99, %101 : vector<4x256xf32>
    %103 = vector.extract_strided_slice %2 {offsets = [0, 12], sizes = [4, 1], strides = [1, 1]} : vector<4x36xf32> to vector<4x1xf32>
    %104 = vector.extract_strided_slice %102 {offsets = [0, 0], sizes = [1, 256], strides = [1, 1]} : vector<4x256xf32> to vector<1x256xf32>
    %105 = vector.broadcast %103 : vector<4x1xf32> to vector<4x256xf32>
    %106 = vector.broadcast %104 : vector<1x256xf32> to vector<4x256xf32>
    %107 = arith.mulf %105, %106 : vector<4x256xf32>
    %108 = arith.addf %96, %107 : vector<4x256xf32>
    %109 = vector.extract_strided_slice %2 {offsets = [0, 13], sizes = [4, 1], strides = [1, 1]} : vector<4x36xf32> to vector<4x1xf32>
    %110 = vector.extract_strided_slice %102 {offsets = [1, 0], sizes = [1, 256], strides = [1, 1]} : vector<4x256xf32> to vector<1x256xf32>
    %111 = vector.broadcast %109 : vector<4x1xf32> to vector<4x256xf32>
    %112 = vector.broadcast %110 : vector<1x256xf32> to vector<4x256xf32>
    %113 = arith.mulf %111, %112 : vector<4x256xf32>
    %114 = arith.addf %108, %113 : vector<4x256xf32>
    %115 = vector.extract_strided_slice %2 {offsets = [0, 14], sizes = [4, 1], strides = [1, 1]} : vector<4x36xf32> to vector<4x1xf32>
    %116 = vector.extract_strided_slice %102 {offsets = [2, 0], sizes = [1, 256], strides = [1, 1]} : vector<4x256xf32> to vector<1x256xf32>
    %117 = vector.broadcast %115 : vector<4x1xf32> to vector<4x256xf32>
    %118 = vector.broadcast %116 : vector<1x256xf32> to vector<4x256xf32>
    %119 = arith.mulf %117, %118 : vector<4x256xf32>
    %120 = arith.addf %114, %119 : vector<4x256xf32>
    %121 = vector.extract_strided_slice %2 {offsets = [0, 15], sizes = [4, 1], strides = [1, 1]} : vector<4x36xf32> to vector<4x1xf32>
    %122 = vector.extract_strided_slice %102 {offsets = [3, 0], sizes = [1, 256], strides = [1, 1]} : vector<4x256xf32> to vector<1x256xf32>
    %123 = vector.broadcast %121 : vector<4x1xf32> to vector<4x256xf32>
    %124 = vector.broadcast %122 : vector<1x256xf32> to vector<4x256xf32>
    %125 = arith.mulf %123, %124 : vector<4x256xf32>
    %126 = arith.addf %120, %125 : vector<4x256xf32>
    %127 = vector.extract_strided_slice %5 {offsets = [4, 0], sizes = [1, 256], strides = [1, 1]} : vector<9x256xf32> to vector<1x256xf32>
    %128 = vector.broadcast %127 : vector<1x256xf32> to vector<4x256xf32>
    %129 = arith.mulf %1, %128 : vector<4x256xf32>
    %130 = vector.extract_strided_slice %2 {offsets = [0, 16], sizes = [4, 1], strides = [1, 1]} : vector<4x36xf32> to vector<4x1xf32>
    %131 = vector.extract_strided_slice %129 {offsets = [0, 0], sizes = [1, 256], strides = [1, 1]} : vector<4x256xf32> to vector<1x256xf32>
    %132 = vector.broadcast %130 : vector<4x1xf32> to vector<4x256xf32>
    %133 = vector.broadcast %131 : vector<1x256xf32> to vector<4x256xf32>
    %134 = arith.mulf %132, %133 : vector<4x256xf32>
    %135 = arith.addf %126, %134 : vector<4x256xf32>
    %136 = vector.extract_strided_slice %2 {offsets = [0, 17], sizes = [4, 1], strides = [1, 1]} : vector<4x36xf32> to vector<4x1xf32>
    %137 = vector.extract_strided_slice %129 {offsets = [1, 0], sizes = [1, 256], strides = [1, 1]} : vector<4x256xf32> to vector<1x256xf32>
    %138 = vector.broadcast %136 : vector<4x1xf32> to vector<4x256xf32>
    %139 = vector.broadcast %137 : vector<1x256xf32> to vector<4x256xf32>
    %140 = arith.mulf %138, %139 : vector<4x256xf32>
    %141 = arith.addf %135, %140 : vector<4x256xf32>
    %142 = vector.extract_strided_slice %2 {offsets = [0, 18], sizes = [4, 1], strides = [1, 1]} : vector<4x36xf32> to vector<4x1xf32>
    %143 = vector.extract_strided_slice %129 {offsets = [2, 0], sizes = [1, 256], strides = [1, 1]} : vector<4x256xf32> to vector<1x256xf32>
    %144 = vector.broadcast %142 : vector<4x1xf32> to vector<4x256xf32>
    %145 = vector.broadcast %143 : vector<1x256xf32> to vector<4x256xf32>
    %146 = arith.mulf %144, %145 : vector<4x256xf32>
    %147 = arith.addf %141, %146 : vector<4x256xf32>
    %148 = vector.extract_strided_slice %2 {offsets = [0, 19], sizes = [4, 1], strides = [1, 1]} : vector<4x36xf32> to vector<4x1xf32>
    %149 = vector.extract_strided_slice %129 {offsets = [3, 0], sizes = [1, 256], strides = [1, 1]} : vector<4x256xf32> to vector<1x256xf32>
    %150 = vector.broadcast %148 : vector<4x1xf32> to vector<4x256xf32>
    %151 = vector.broadcast %149 : vector<1x256xf32> to vector<4x256xf32>
    %152 = arith.mulf %150, %151 : vector<4x256xf32>
    %153 = arith.addf %147, %152 : vector<4x256xf32>
    %154 = vector.extract_strided_slice %1 {offsets = [0, 1], sizes = [4, 255], strides = [1, 1]} : vector<4x256xf32> to vector<4x255xf32>
    %155 = vector.extract_strided_slice %1 {offsets = [0, 0], sizes = [4, 1], strides = [1, 1]} : vector<4x256xf32> to vector<4x1xf32>
    %156 = tpu.concatenate %154, %155 in 1 : vector<4x255xf32>, vector<4x1xf32> -> vector<4x256xf32>
    %157 = vector.extract_strided_slice %5 {offsets = [5, 0], sizes = [1, 256], strides = [1, 1]} : vector<9x256xf32> to vector<1x256xf32>
    %158 = vector.broadcast %157 : vector<1x256xf32> to vector<4x256xf32>
    %159 = arith.mulf %156, %158 : vector<4x256xf32>
    %160 = vector.extract_strided_slice %2 {offsets = [0, 20], sizes = [4, 1], strides = [1, 1]} : vector<4x36xf32> to vector<4x1xf32>
    %161 = vector.extract_strided_slice %159 {offsets = [0, 0], sizes = [1, 256], strides = [1, 1]} : vector<4x256xf32> to vector<1x256xf32>
    %162 = vector.broadcast %160 : vector<4x1xf32> to vector<4x256xf32>
    %163 = vector.broadcast %161 : vector<1x256xf32> to vector<4x256xf32>
    %164 = arith.mulf %162, %163 : vector<4x256xf32>
    %165 = arith.addf %153, %164 : vector<4x256xf32>
    %166 = vector.extract_strided_slice %2 {offsets = [0, 21], sizes = [4, 1], strides = [1, 1]} : vector<4x36xf32> to vector<4x1xf32>
    %167 = vector.extract_strided_slice %159 {offsets = [1, 0], sizes = [1, 256], strides = [1, 1]} : vector<4x256xf32> to vector<1x256xf32>
    %168 = vector.broadcast %166 : vector<4x1xf32> to vector<4x256xf32>
    %169 = vector.broadcast %167 : vector<1x256xf32> to vector<4x256xf32>
    %170 = arith.mulf %168, %169 : vector<4x256xf32>
    %171 = arith.addf %165, %170 : vector<4x256xf32>
    %172 = vector.extract_strided_slice %2 {offsets = [0, 22], sizes = [4, 1], strides = [1, 1]} : vector<4x36xf32> to vector<4x1xf32>
    %173 = vector.extract_strided_slice %159 {offsets = [2, 0], sizes = [1, 256], strides = [1, 1]} : vector<4x256xf32> to vector<1x256xf32>
    %174 = vector.broadcast %172 : vector<4x1xf32> to vector<4x256xf32>
    %175 = vector.broadcast %173 : vector<1x256xf32> to vector<4x256xf32>
    %176 = arith.mulf %174, %175 : vector<4x256xf32>
    %177 = arith.addf %171, %176 : vector<4x256xf32>
    %178 = vector.extract_strided_slice %2 {offsets = [0, 23], sizes = [4, 1], strides = [1, 1]} : vector<4x36xf32> to vector<4x1xf32>
    %179 = vector.extract_strided_slice %159 {offsets = [3, 0], sizes = [1, 256], strides = [1, 1]} : vector<4x256xf32> to vector<1x256xf32>
    %180 = vector.broadcast %178 : vector<4x1xf32> to vector<4x256xf32>
    %181 = vector.broadcast %179 : vector<1x256xf32> to vector<4x256xf32>
    %182 = arith.mulf %180, %181 : vector<4x256xf32>
    %183 = arith.addf %177, %182 : vector<4x256xf32>
    %184 = vector.extract_strided_slice %1 {offsets = [0, 15], sizes = [4, 241], strides = [1, 1]} : vector<4x256xf32> to vector<4x241xf32>
    %185 = vector.extract_strided_slice %1 {offsets = [0, 0], sizes = [4, 15], strides = [1, 1]} : vector<4x256xf32> to vector<4x15xf32>
    %186 = tpu.concatenate %184, %185 in 1 : vector<4x241xf32>, vector<4x15xf32> -> vector<4x256xf32>
    %187 = vector.extract_strided_slice %5 {offsets = [6, 0], sizes = [1, 256], strides = [1, 1]} : vector<9x256xf32> to vector<1x256xf32>
    %188 = vector.broadcast %187 : vector<1x256xf32> to vector<4x256xf32>
    %189 = arith.mulf %186, %188 : vector<4x256xf32>
    %190 = vector.extract_strided_slice %2 {offsets = [0, 24], sizes = [4, 1], strides = [1, 1]} : vector<4x36xf32> to vector<4x1xf32>
    %191 = vector.extract_strided_slice %189 {offsets = [0, 0], sizes = [1, 256], strides = [1, 1]} : vector<4x256xf32> to vector<1x256xf32>
    %192 = vector.broadcast %190 : vector<4x1xf32> to vector<4x256xf32>
    %193 = vector.broadcast %191 : vector<1x256xf32> to vector<4x256xf32>
    %194 = arith.mulf %192, %193 : vector<4x256xf32>
    %195 = arith.addf %183, %194 : vector<4x256xf32>
    %196 = vector.extract_strided_slice %2 {offsets = [0, 25], sizes = [4, 1], strides = [1, 1]} : vector<4x36xf32> to vector<4x1xf32>
    %197 = vector.extract_strided_slice %189 {offsets = [1, 0], sizes = [1, 256], strides = [1, 1]} : vector<4x256xf32> to vector<1x256xf32>
    %198 = vector.broadcast %196 : vector<4x1xf32> to vector<4x256xf32>
    %199 = vector.broadcast %197 : vector<1x256xf32> to vector<4x256xf32>
    %200 = arith.mulf %198, %199 : vector<4x256xf32>
    %201 = arith.addf %195, %200 : vector<4x256xf32>
    %202 = vector.extract_strided_slice %2 {offsets = [0, 26], sizes = [4, 1], strides = [1, 1]} : vector<4x36xf32> to vector<4x1xf32>
    %203 = vector.extract_strided_slice %189 {offsets = [2, 0], sizes = [1, 256], strides = [1, 1]} : vector<4x256xf32> to vector<1x256xf32>
    %204 = vector.broadcast %202 : vector<4x1xf32> to vector<4x256xf32>
    %205 = vector.broadcast %203 : vector<1x256xf32> to vector<4x256xf32>
    %206 = arith.mulf %204, %205 : vector<4x256xf32>
    %207 = arith.addf %201, %206 : vector<4x256xf32>
    %208 = vector.extract_strided_slice %2 {offsets = [0, 27], sizes = [4, 1], strides = [1, 1]} : vector<4x36xf32> to vector<4x1xf32>
    %209 = vector.extract_strided_slice %189 {offsets = [3, 0], sizes = [1, 256], strides = [1, 1]} : vector<4x256xf32> to vector<1x256xf32>
    %210 = vector.broadcast %208 : vector<4x1xf32> to vector<4x256xf32>
    %211 = vector.broadcast %209 : vector<1x256xf32> to vector<4x256xf32>
    %212 = arith.mulf %210, %211 : vector<4x256xf32>
    %213 = arith.addf %207, %212 : vector<4x256xf32>
    %214 = vector.extract_strided_slice %1 {offsets = [0, 16], sizes = [4, 240], strides = [1, 1]} : vector<4x256xf32> to vector<4x240xf32>
    %215 = vector.extract_strided_slice %1 {offsets = [0, 0], sizes = [4, 16], strides = [1, 1]} : vector<4x256xf32> to vector<4x16xf32>
    %216 = tpu.concatenate %214, %215 in 1 : vector<4x240xf32>, vector<4x16xf32> -> vector<4x256xf32>
    %217 = vector.extract_strided_slice %5 {offsets = [7, 0], sizes = [1, 256], strides = [1, 1]} : vector<9x256xf32> to vector<1x256xf32>
    %218 = vector.broadcast %217 : vector<1x256xf32> to vector<4x256xf32>
    %219 = arith.mulf %216, %218 : vector<4x256xf32>
    %220 = vector.extract_strided_slice %2 {offsets = [0, 28], sizes = [4, 1], strides = [1, 1]} : vector<4x36xf32> to vector<4x1xf32>
    %221 = vector.extract_strided_slice %219 {offsets = [0, 0], sizes = [1, 256], strides = [1, 1]} : vector<4x256xf32> to vector<1x256xf32>
    %222 = vector.broadcast %220 : vector<4x1xf32> to vector<4x256xf32>
    %223 = vector.broadcast %221 : vector<1x256xf32> to vector<4x256xf32>
    %224 = arith.mulf %222, %223 : vector<4x256xf32>
    %225 = arith.addf %213, %224 : vector<4x256xf32>
    %226 = vector.extract_strided_slice %2 {offsets = [0, 29], sizes = [4, 1], strides = [1, 1]} : vector<4x36xf32> to vector<4x1xf32>
    %227 = vector.extract_strided_slice %219 {offsets = [1, 0], sizes = [1, 256], strides = [1, 1]} : vector<4x256xf32> to vector<1x256xf32>
    %228 = vector.broadcast %226 : vector<4x1xf32> to vector<4x256xf32>
    %229 = vector.broadcast %227 : vector<1x256xf32> to vector<4x256xf32>
    %230 = arith.mulf %228, %229 : vector<4x256xf32>
    %231 = arith.addf %225, %230 : vector<4x256xf32>
    %232 = vector.extract_strided_slice %2 {offsets = [0, 30], sizes = [4, 1], strides = [1, 1]} : vector<4x36xf32> to vector<4x1xf32>
    %233 = vector.extract_strided_slice %219 {offsets = [2, 0], sizes = [1, 256], strides = [1, 1]} : vector<4x256xf32> to vector<1x256xf32>
    %234 = vector.broadcast %232 : vector<4x1xf32> to vector<4x256xf32>
    %235 = vector.broadcast %233 : vector<1x256xf32> to vector<4x256xf32>
    %236 = arith.mulf %234, %235 : vector<4x256xf32>
    %237 = arith.addf %231, %236 : vector<4x256xf32>
    %238 = vector.extract_strided_slice %2 {offsets = [0, 31], sizes = [4, 1], strides = [1, 1]} : vector<4x36xf32> to vector<4x1xf32>
    %239 = vector.extract_strided_slice %219 {offsets = [3, 0], sizes = [1, 256], strides = [1, 1]} : vector<4x256xf32> to vector<1x256xf32>
    %240 = vector.broadcast %238 : vector<4x1xf32> to vector<4x256xf32>
    %241 = vector.broadcast %239 : vector<1x256xf32> to vector<4x256xf32>
    %242 = arith.mulf %240, %241 : vector<4x256xf32>
    %243 = arith.addf %237, %242 : vector<4x256xf32>
    %244 = vector.extract_strided_slice %1 {offsets = [0, 17], sizes = [4, 239], strides = [1, 1]} : vector<4x256xf32> to vector<4x239xf32>
    %245 = vector.extract_strided_slice %1 {offsets = [0, 0], sizes = [4, 17], strides = [1, 1]} : vector<4x256xf32> to vector<4x17xf32>
    %246 = tpu.concatenate %244, %245 in 1 : vector<4x239xf32>, vector<4x17xf32> -> vector<4x256xf32>
    %247 = vector.extract_strided_slice %5 {offsets = [8, 0], sizes = [1, 256], strides = [1, 1]} : vector<9x256xf32> to vector<1x256xf32>
    %248 = vector.broadcast %247 : vector<1x256xf32> to vector<4x256xf32>
    %249 = arith.mulf %246, %248 : vector<4x256xf32>
    %250 = vector.extract_strided_slice %2 {offsets = [0, 32], sizes = [4, 1], strides = [1, 1]} : vector<4x36xf32> to vector<4x1xf32>
    %251 = vector.extract_strided_slice %249 {offsets = [0, 0], sizes = [1, 256], strides = [1, 1]} : vector<4x256xf32> to vector<1x256xf32>
    %252 = vector.broadcast %250 : vector<4x1xf32> to vector<4x256xf32>
    %253 = vector.broadcast %251 : vector<1x256xf32> to vector<4x256xf32>
    %254 = arith.mulf %252, %253 : vector<4x256xf32>
    %255 = arith.addf %243, %254 : vector<4x256xf32>
    %256 = vector.extract_strided_slice %2 {offsets = [0, 33], sizes = [4, 1], strides = [1, 1]} : vector<4x36xf32> to vector<4x1xf32>
    %257 = vector.extract_strided_slice %249 {offsets = [1, 0], sizes = [1, 256], strides = [1, 1]} : vector<4x256xf32> to vector<1x256xf32>
    %258 = vector.broadcast %256 : vector<4x1xf32> to vector<4x256xf32>
    %259 = vector.broadcast %257 : vector<1x256xf32> to vector<4x256xf32>
    %260 = arith.mulf %258, %259 : vector<4x256xf32>
    %261 = arith.addf %255, %260 : vector<4x256xf32>
    %262 = vector.extract_strided_slice %2 {offsets = [0, 34], sizes = [4, 1], strides = [1, 1]} : vector<4x36xf32> to vector<4x1xf32>
    %263 = vector.extract_strided_slice %249 {offsets = [2, 0], sizes = [1, 256], strides = [1, 1]} : vector<4x256xf32> to vector<1x256xf32>
    %264 = vector.broadcast %262 : vector<4x1xf32> to vector<4x256xf32>
    %265 = vector.broadcast %263 : vector<1x256xf32> to vector<4x256xf32>
    %266 = arith.mulf %264, %265 : vector<4x256xf32>
    %267 = arith.addf %261, %266 : vector<4x256xf32>
    %268 = vector.extract_strided_slice %2 {offsets = [0, 35], sizes = [4, 1], strides = [1, 1]} : vector<4x36xf32> to vector<4x1xf32>
    %269 = vector.extract_strided_slice %249 {offsets = [3, 0], sizes = [1, 256], strides = [1, 1]} : vector<4x256xf32> to vector<1x256xf32>
    %270 = vector.broadcast %268 : vector<4x1xf32> to vector<4x256xf32>
    %271 = vector.broadcast %269 : vector<1x256xf32> to vector<4x256xf32>
    %272 = arith.mulf %270, %271 : vector<4x256xf32>
    %273 = arith.addf %267, %272 : vector<4x256xf32>
    %274 = vector.extract_strided_slice %4 {offsets = [0, 0], sizes = [1, 256], strides = [1, 1]} : vector<4x256xf32> to vector<1x256xf32>
    %275 = vector.extract_strided_slice %4 {offsets = [1, 0], sizes = [1, 256], strides = [1, 1]} : vector<4x256xf32> to vector<1x256xf32>
    %cst_10 = arith.constant dense<0.000000e+00> : vector<4xf32>
    %276 = vector.multi_reduction <add>, %273, %cst_10 [1] : vector<4x256xf32> to vector<4xf32>
    %277 = vector.shape_cast %276 : vector<4xf32> to vector<4x1xf32>
    %278 = arith.mulf %273, %273 : vector<4x256xf32>
    %cst_11 = arith.constant dense<0.000000e+00> : vector<4xf32>
    %279 = vector.multi_reduction <add>, %278, %cst_11 [1] : vector<4x256xf32> to vector<4xf32>
    %280 = vector.shape_cast %279 : vector<4xf32> to vector<4x1xf32>
    %cst_12 = arith.constant 3.906250e-03 : f32
    %281 = vector.broadcast %cst_12 : f32 to vector<4x1xf32>
    %282 = arith.mulf %277, %281 : vector<4x1xf32>
    %cst_13 = arith.constant 3.906250e-03 : f32
    %283 = vector.broadcast %cst_13 : f32 to vector<4x1xf32>
    %284 = arith.mulf %280, %283 : vector<4x1xf32>
    %285 = arith.mulf %282, %282 : vector<4x1xf32>
    %286 = arith.subf %284, %285 : vector<4x1xf32>
    %287 = vector.broadcast %282 : vector<4x1xf32> to vector<4x256xf32>
    %288 = arith.subf %273, %287 : vector<4x256xf32>
    %cst_14 = arith.constant 9.99999974E-6 : f32
    %289 = vector.broadcast %cst_14 : f32 to vector<4x1xf32>
    %290 = arith.addf %286, %289 : vector<4x1xf32>
    %291 = math.rsqrt %290 : vector<4x1xf32>
    %292 = vector.broadcast %291 : vector<4x1xf32> to vector<4x256xf32>
    %293 = arith.mulf %288, %292 : vector<4x256xf32>
    %294 = vector.broadcast %274 : vector<1x256xf32> to vector<4x256xf32>
    %295 = arith.mulf %293, %294 : vector<4x256xf32>
    %296 = vector.broadcast %275 : vector<1x256xf32> to vector<4x256xf32>
    %297 = arith.addf %295, %296 : vector<4x256xf32>
    %cst_15 = arith.constant 0.000000e+00 : f32
    %298 = vector.broadcast %cst_15 : f32 to vector<4x256xf32>
    %299 = arith.maximumf %297, %298 : vector<4x256xf32>
    %cst_16 = arith.constant 0.000000e+00 : f32
    %300 = vector.broadcast %cst_16 : f32 to vector<4x256xf32>
    %301 = vector.extract_strided_slice %299 {offsets = [0, 239], sizes = [4, 17], strides = [1, 1]} : vector<4x256xf32> to vector<4x17xf32>
    %302 = vector.extract_strided_slice %299 {offsets = [0, 0], sizes = [4, 239], strides = [1, 1]} : vector<4x256xf32> to vector<4x239xf32>
    %303 = tpu.concatenate %301, %302 in 1 : vector<4x17xf32>, vector<4x239xf32> -> vector<4x256xf32>
    %304 = vector.extract_strided_slice %5 {offsets = [0, 0], sizes = [1, 256], strides = [1, 1]} : vector<9x256xf32> to vector<1x256xf32>
    %305 = vector.broadcast %304 : vector<1x256xf32> to vector<4x256xf32>
    %306 = arith.mulf %303, %305 : vector<4x256xf32>
    %307 = vector.extract_strided_slice %3 {offsets = [0, 0], sizes = [4, 1], strides = [1, 1]} : vector<4x36xf32> to vector<4x1xf32>
    %308 = vector.extract_strided_slice %306 {offsets = [0, 0], sizes = [1, 256], strides = [1, 1]} : vector<4x256xf32> to vector<1x256xf32>
    %309 = vector.broadcast %307 : vector<4x1xf32> to vector<4x256xf32>
    %310 = vector.broadcast %308 : vector<1x256xf32> to vector<4x256xf32>
    %311 = arith.mulf %309, %310 : vector<4x256xf32>
    %312 = arith.addf %300, %311 : vector<4x256xf32>
    %313 = vector.extract_strided_slice %3 {offsets = [0, 1], sizes = [4, 1], strides = [1, 1]} : vector<4x36xf32> to vector<4x1xf32>
    %314 = vector.extract_strided_slice %306 {offsets = [1, 0], sizes = [1, 256], strides = [1, 1]} : vector<4x256xf32> to vector<1x256xf32>
    %315 = vector.broadcast %313 : vector<4x1xf32> to vector<4x256xf32>
    %316 = vector.broadcast %314 : vector<1x256xf32> to vector<4x256xf32>
    %317 = arith.mulf %315, %316 : vector<4x256xf32>
    %318 = arith.addf %312, %317 : vector<4x256xf32>
    %319 = vector.extract_strided_slice %3 {offsets = [0, 2], sizes = [4, 1], strides = [1, 1]} : vector<4x36xf32> to vector<4x1xf32>
    %320 = vector.extract_strided_slice %306 {offsets = [2, 0], sizes = [1, 256], strides = [1, 1]} : vector<4x256xf32> to vector<1x256xf32>
    %321 = vector.broadcast %319 : vector<4x1xf32> to vector<4x256xf32>
    %322 = vector.broadcast %320 : vector<1x256xf32> to vector<4x256xf32>
    %323 = arith.mulf %321, %322 : vector<4x256xf32>
    %324 = arith.addf %318, %323 : vector<4x256xf32>
    %325 = vector.extract_strided_slice %3 {offsets = [0, 3], sizes = [4, 1], strides = [1, 1]} : vector<4x36xf32> to vector<4x1xf32>
    %326 = vector.extract_strided_slice %306 {offsets = [3, 0], sizes = [1, 256], strides = [1, 1]} : vector<4x256xf32> to vector<1x256xf32>
    %327 = vector.broadcast %325 : vector<4x1xf32> to vector<4x256xf32>
    %328 = vector.broadcast %326 : vector<1x256xf32> to vector<4x256xf32>
    %329 = arith.mulf %327, %328 : vector<4x256xf32>
    %330 = arith.addf %324, %329 : vector<4x256xf32>
    %331 = vector.extract_strided_slice %299 {offsets = [0, 240], sizes = [4, 16], strides = [1, 1]} : vector<4x256xf32> to vector<4x16xf32>
    %332 = vector.extract_strided_slice %299 {offsets = [0, 0], sizes = [4, 240], strides = [1, 1]} : vector<4x256xf32> to vector<4x240xf32>
    %333 = tpu.concatenate %331, %332 in 1 : vector<4x16xf32>, vector<4x240xf32> -> vector<4x256xf32>
    %334 = vector.extract_strided_slice %5 {offsets = [1, 0], sizes = [1, 256], strides = [1, 1]} : vector<9x256xf32> to vector<1x256xf32>
    %335 = vector.broadcast %334 : vector<1x256xf32> to vector<4x256xf32>
    %336 = arith.mulf %333, %335 : vector<4x256xf32>
    %337 = vector.extract_strided_slice %3 {offsets = [0, 4], sizes = [4, 1], strides = [1, 1]} : vector<4x36xf32> to vector<4x1xf32>
    %338 = vector.extract_strided_slice %336 {offsets = [0, 0], sizes = [1, 256], strides = [1, 1]} : vector<4x256xf32> to vector<1x256xf32>
    %339 = vector.broadcast %337 : vector<4x1xf32> to vector<4x256xf32>
    %340 = vector.broadcast %338 : vector<1x256xf32> to vector<4x256xf32>
    %341 = arith.mulf %339, %340 : vector<4x256xf32>
    %342 = arith.addf %330, %341 : vector<4x256xf32>
    %343 = vector.extract_strided_slice %3 {offsets = [0, 5], sizes = [4, 1], strides = [1, 1]} : vector<4x36xf32> to vector<4x1xf32>
    %344 = vector.extract_strided_slice %336 {offsets = [1, 0], sizes = [1, 256], strides = [1, 1]} : vector<4x256xf32> to vector<1x256xf32>
    %345 = vector.broadcast %343 : vector<4x1xf32> to vector<4x256xf32>
    %346 = vector.broadcast %344 : vector<1x256xf32> to vector<4x256xf32>
    %347 = arith.mulf %345, %346 : vector<4x256xf32>
    %348 = arith.addf %342, %347 : vector<4x256xf32>
    %349 = vector.extract_strided_slice %3 {offsets = [0, 6], sizes = [4, 1], strides = [1, 1]} : vector<4x36xf32> to vector<4x1xf32>
    %350 = vector.extract_strided_slice %336 {offsets = [2, 0], sizes = [1, 256], strides = [1, 1]} : vector<4x256xf32> to vector<1x256xf32>
    %351 = vector.broadcast %349 : vector<4x1xf32> to vector<4x256xf32>
    %352 = vector.broadcast %350 : vector<1x256xf32> to vector<4x256xf32>
    %353 = arith.mulf %351, %352 : vector<4x256xf32>
    %354 = arith.addf %348, %353 : vector<4x256xf32>
    %355 = vector.extract_strided_slice %3 {offsets = [0, 7], sizes = [4, 1], strides = [1, 1]} : vector<4x36xf32> to vector<4x1xf32>
    %356 = vector.extract_strided_slice %336 {offsets = [3, 0], sizes = [1, 256], strides = [1, 1]} : vector<4x256xf32> to vector<1x256xf32>
    %357 = vector.broadcast %355 : vector<4x1xf32> to vector<4x256xf32>
    %358 = vector.broadcast %356 : vector<1x256xf32> to vector<4x256xf32>
    %359 = arith.mulf %357, %358 : vector<4x256xf32>
    %360 = arith.addf %354, %359 : vector<4x256xf32>
    %361 = vector.extract_strided_slice %299 {offsets = [0, 241], sizes = [4, 15], strides = [1, 1]} : vector<4x256xf32> to vector<4x15xf32>
    %362 = vector.extract_strided_slice %299 {offsets = [0, 0], sizes = [4, 241], strides = [1, 1]} : vector<4x256xf32> to vector<4x241xf32>
    %363 = tpu.concatenate %361, %362 in 1 : vector<4x15xf32>, vector<4x241xf32> -> vector<4x256xf32>
    %364 = vector.extract_strided_slice %5 {offsets = [2, 0], sizes = [1, 256], strides = [1, 1]} : vector<9x256xf32> to vector<1x256xf32>
    %365 = vector.broadcast %364 : vector<1x256xf32> to vector<4x256xf32>
    %366 = arith.mulf %363, %365 : vector<4x256xf32>
    %367 = vector.extract_strided_slice %3 {offsets = [0, 8], sizes = [4, 1], strides = [1, 1]} : vector<4x36xf32> to vector<4x1xf32>
    %368 = vector.extract_strided_slice %366 {offsets = [0, 0], sizes = [1, 256], strides = [1, 1]} : vector<4x256xf32> to vector<1x256xf32>
    %369 = vector.broadcast %367 : vector<4x1xf32> to vector<4x256xf32>
    %370 = vector.broadcast %368 : vector<1x256xf32> to vector<4x256xf32>
    %371 = arith.mulf %369, %370 : vector<4x256xf32>
    %372 = arith.addf %360, %371 : vector<4x256xf32>
    %373 = vector.extract_strided_slice %3 {offsets = [0, 9], sizes = [4, 1], strides = [1, 1]} : vector<4x36xf32> to vector<4x1xf32>
    %374 = vector.extract_strided_slice %366 {offsets = [1, 0], sizes = [1, 256], strides = [1, 1]} : vector<4x256xf32> to vector<1x256xf32>
    %375 = vector.broadcast %373 : vector<4x1xf32> to vector<4x256xf32>
    %376 = vector.broadcast %374 : vector<1x256xf32> to vector<4x256xf32>
    %377 = arith.mulf %375, %376 : vector<4x256xf32>
    %378 = arith.addf %372, %377 : vector<4x256xf32>
    %379 = vector.extract_strided_slice %3 {offsets = [0, 10], sizes = [4, 1], strides = [1, 1]} : vector<4x36xf32> to vector<4x1xf32>
    %380 = vector.extract_strided_slice %366 {offsets = [2, 0], sizes = [1, 256], strides = [1, 1]} : vector<4x256xf32> to vector<1x256xf32>
    %381 = vector.broadcast %379 : vector<4x1xf32> to vector<4x256xf32>
    %382 = vector.broadcast %380 : vector<1x256xf32> to vector<4x256xf32>
    %383 = arith.mulf %381, %382 : vector<4x256xf32>
    %384 = arith.addf %378, %383 : vector<4x256xf32>
    %385 = vector.extract_strided_slice %3 {offsets = [0, 11], sizes = [4, 1], strides = [1, 1]} : vector<4x36xf32> to vector<4x1xf32>
    %386 = vector.extract_strided_slice %366 {offsets = [3, 0], sizes = [1, 256], strides = [1, 1]} : vector<4x256xf32> to vector<1x256xf32>
    %387 = vector.broadcast %385 : vector<4x1xf32> to vector<4x256xf32>
    %388 = vector.broadcast %386 : vector<1x256xf32> to vector<4x256xf32>
    %389 = arith.mulf %387, %388 : vector<4x256xf32>
    %390 = arith.addf %384, %389 : vector<4x256xf32>
    %391 = vector.extract_strided_slice %299 {offsets = [0, 255], sizes = [4, 1], strides = [1, 1]} : vector<4x256xf32> to vector<4x1xf32>
    %392 = vector.extract_strided_slice %299 {offsets = [0, 0], sizes = [4, 255], strides = [1, 1]} : vector<4x256xf32> to vector<4x255xf32>
    %393 = tpu.concatenate %391, %392 in 1 : vector<4x1xf32>, vector<4x255xf32> -> vector<4x256xf32>
    %394 = vector.extract_strided_slice %5 {offsets = [3, 0], sizes = [1, 256], strides = [1, 1]} : vector<9x256xf32> to vector<1x256xf32>
    %395 = vector.broadcast %394 : vector<1x256xf32> to vector<4x256xf32>
    %396 = arith.mulf %393, %395 : vector<4x256xf32>
    %397 = vector.extract_strided_slice %3 {offsets = [0, 12], sizes = [4, 1], strides = [1, 1]} : vector<4x36xf32> to vector<4x1xf32>
    %398 = vector.extract_strided_slice %396 {offsets = [0, 0], sizes = [1, 256], strides = [1, 1]} : vector<4x256xf32> to vector<1x256xf32>
    %399 = vector.broadcast %397 : vector<4x1xf32> to vector<4x256xf32>
    %400 = vector.broadcast %398 : vector<1x256xf32> to vector<4x256xf32>
    %401 = arith.mulf %399, %400 : vector<4x256xf32>
    %402 = arith.addf %390, %401 : vector<4x256xf32>
    %403 = vector.extract_strided_slice %3 {offsets = [0, 13], sizes = [4, 1], strides = [1, 1]} : vector<4x36xf32> to vector<4x1xf32>
    %404 = vector.extract_strided_slice %396 {offsets = [1, 0], sizes = [1, 256], strides = [1, 1]} : vector<4x256xf32> to vector<1x256xf32>
    %405 = vector.broadcast %403 : vector<4x1xf32> to vector<4x256xf32>
    %406 = vector.broadcast %404 : vector<1x256xf32> to vector<4x256xf32>
    %407 = arith.mulf %405, %406 : vector<4x256xf32>
    %408 = arith.addf %402, %407 : vector<4x256xf32>
    %409 = vector.extract_strided_slice %3 {offsets = [0, 14], sizes = [4, 1], strides = [1, 1]} : vector<4x36xf32> to vector<4x1xf32>
    %410 = vector.extract_strided_slice %396 {offsets = [2, 0], sizes = [1, 256], strides = [1, 1]} : vector<4x256xf32> to vector<1x256xf32>
    %411 = vector.broadcast %409 : vector<4x1xf32> to vector<4x256xf32>
    %412 = vector.broadcast %410 : vector<1x256xf32> to vector<4x256xf32>
    %413 = arith.mulf %411, %412 : vector<4x256xf32>
    %414 = arith.addf %408, %413 : vector<4x256xf32>
    %415 = vector.extract_strided_slice %3 {offsets = [0, 15], sizes = [4, 1], strides = [1, 1]} : vector<4x36xf32> to vector<4x1xf32>
    %416 = vector.extract_strided_slice %396 {offsets = [3, 0], sizes = [1, 256], strides = [1, 1]} : vector<4x256xf32> to vector<1x256xf32>
    %417 = vector.broadcast %415 : vector<4x1xf32> to vector<4x256xf32>
    %418 = vector.broadcast %416 : vector<1x256xf32> to vector<4x256xf32>
    %419 = arith.mulf %417, %418 : vector<4x256xf32>
    %420 = arith.addf %414, %419 : vector<4x256xf32>
    %421 = vector.extract_strided_slice %5 {offsets = [4, 0], sizes = [1, 256], strides = [1, 1]} : vector<9x256xf32> to vector<1x256xf32>
    %422 = vector.broadcast %421 : vector<1x256xf32> to vector<4x256xf32>
    %423 = arith.mulf %299, %422 : vector<4x256xf32>
    %424 = vector.extract_strided_slice %3 {offsets = [0, 16], sizes = [4, 1], strides = [1, 1]} : vector<4x36xf32> to vector<4x1xf32>
    %425 = vector.extract_strided_slice %423 {offsets = [0, 0], sizes = [1, 256], strides = [1, 1]} : vector<4x256xf32> to vector<1x256xf32>
    %426 = vector.broadcast %424 : vector<4x1xf32> to vector<4x256xf32>
    %427 = vector.broadcast %425 : vector<1x256xf32> to vector<4x256xf32>
    %428 = arith.mulf %426, %427 : vector<4x256xf32>
    %429 = arith.addf %420, %428 : vector<4x256xf32>
    %430 = vector.extract_strided_slice %3 {offsets = [0, 17], sizes = [4, 1], strides = [1, 1]} : vector<4x36xf32> to vector<4x1xf32>
    %431 = vector.extract_strided_slice %423 {offsets = [1, 0], sizes = [1, 256], strides = [1, 1]} : vector<4x256xf32> to vector<1x256xf32>
    %432 = vector.broadcast %430 : vector<4x1xf32> to vector<4x256xf32>
    %433 = vector.broadcast %431 : vector<1x256xf32> to vector<4x256xf32>
    %434 = arith.mulf %432, %433 : vector<4x256xf32>
    %435 = arith.addf %429, %434 : vector<4x256xf32>
    %436 = vector.extract_strided_slice %3 {offsets = [0, 18], sizes = [4, 1], strides = [1, 1]} : vector<4x36xf32> to vector<4x1xf32>
    %437 = vector.extract_strided_slice %423 {offsets = [2, 0], sizes = [1, 256], strides = [1, 1]} : vector<4x256xf32> to vector<1x256xf32>
    %438 = vector.broadcast %436 : vector<4x1xf32> to vector<4x256xf32>
    %439 = vector.broadcast %437 : vector<1x256xf32> to vector<4x256xf32>
    %440 = arith.mulf %438, %439 : vector<4x256xf32>
    %441 = arith.addf %435, %440 : vector<4x256xf32>
    %442 = vector.extract_strided_slice %3 {offsets = [0, 19], sizes = [4, 1], strides = [1, 1]} : vector<4x36xf32> to vector<4x1xf32>
    %443 = vector.extract_strided_slice %423 {offsets = [3, 0], sizes = [1, 256], strides = [1, 1]} : vector<4x256xf32> to vector<1x256xf32>
    %444 = vector.broadcast %442 : vector<4x1xf32> to vector<4x256xf32>
    %445 = vector.broadcast %443 : vector<1x256xf32> to vector<4x256xf32>
    %446 = arith.mulf %444, %445 : vector<4x256xf32>
    %447 = arith.addf %441, %446 : vector<4x256xf32>
    %448 = vector.extract_strided_slice %299 {offsets = [0, 1], sizes = [4, 255], strides = [1, 1]} : vector<4x256xf32> to vector<4x255xf32>
    %449 = vector.extract_strided_slice %299 {offsets = [0, 0], sizes = [4, 1], strides = [1, 1]} : vector<4x256xf32> to vector<4x1xf32>
    %450 = tpu.concatenate %448, %449 in 1 : vector<4x255xf32>, vector<4x1xf32> -> vector<4x256xf32>
    %451 = vector.extract_strided_slice %5 {offsets = [5, 0], sizes = [1, 256], strides = [1, 1]} : vector<9x256xf32> to vector<1x256xf32>
    %452 = vector.broadcast %451 : vector<1x256xf32> to vector<4x256xf32>
    %453 = arith.mulf %450, %452 : vector<4x256xf32>
    %454 = vector.extract_strided_slice %3 {offsets = [0, 20], sizes = [4, 1], strides = [1, 1]} : vector<4x36xf32> to vector<4x1xf32>
    %455 = vector.extract_strided_slice %453 {offsets = [0, 0], sizes = [1, 256], strides = [1, 1]} : vector<4x256xf32> to vector<1x256xf32>
    %456 = vector.broadcast %454 : vector<4x1xf32> to vector<4x256xf32>
    %457 = vector.broadcast %455 : vector<1x256xf32> to vector<4x256xf32>
    %458 = arith.mulf %456, %457 : vector<4x256xf32>
    %459 = arith.addf %447, %458 : vector<4x256xf32>
    %460 = vector.extract_strided_slice %3 {offsets = [0, 21], sizes = [4, 1], strides = [1, 1]} : vector<4x36xf32> to vector<4x1xf32>
    %461 = vector.extract_strided_slice %453 {offsets = [1, 0], sizes = [1, 256], strides = [1, 1]} : vector<4x256xf32> to vector<1x256xf32>
    %462 = vector.broadcast %460 : vector<4x1xf32> to vector<4x256xf32>
    %463 = vector.broadcast %461 : vector<1x256xf32> to vector<4x256xf32>
    %464 = arith.mulf %462, %463 : vector<4x256xf32>
    %465 = arith.addf %459, %464 : vector<4x256xf32>
    %466 = vector.extract_strided_slice %3 {offsets = [0, 22], sizes = [4, 1], strides = [1, 1]} : vector<4x36xf32> to vector<4x1xf32>
    %467 = vector.extract_strided_slice %453 {offsets = [2, 0], sizes = [1, 256], strides = [1, 1]} : vector<4x256xf32> to vector<1x256xf32>
    %468 = vector.broadcast %466 : vector<4x1xf32> to vector<4x256xf32>
    %469 = vector.broadcast %467 : vector<1x256xf32> to vector<4x256xf32>
    %470 = arith.mulf %468, %469 : vector<4x256xf32>
    %471 = arith.addf %465, %470 : vector<4x256xf32>
    %472 = vector.extract_strided_slice %3 {offsets = [0, 23], sizes = [4, 1], strides = [1, 1]} : vector<4x36xf32> to vector<4x1xf32>
    %473 = vector.extract_strided_slice %453 {offsets = [3, 0], sizes = [1, 256], strides = [1, 1]} : vector<4x256xf32> to vector<1x256xf32>
    %474 = vector.broadcast %472 : vector<4x1xf32> to vector<4x256xf32>
    %475 = vector.broadcast %473 : vector<1x256xf32> to vector<4x256xf32>
    %476 = arith.mulf %474, %475 : vector<4x256xf32>
    %477 = arith.addf %471, %476 : vector<4x256xf32>
    %478 = vector.extract_strided_slice %299 {offsets = [0, 15], sizes = [4, 241], strides = [1, 1]} : vector<4x256xf32> to vector<4x241xf32>
    %479 = vector.extract_strided_slice %299 {offsets = [0, 0], sizes = [4, 15], strides = [1, 1]} : vector<4x256xf32> to vector<4x15xf32>
    %480 = tpu.concatenate %478, %479 in 1 : vector<4x241xf32>, vector<4x15xf32> -> vector<4x256xf32>
    %481 = vector.extract_strided_slice %5 {offsets = [6, 0], sizes = [1, 256], strides = [1, 1]} : vector<9x256xf32> to vector<1x256xf32>
    %482 = vector.broadcast %481 : vector<1x256xf32> to vector<4x256xf32>
    %483 = arith.mulf %480, %482 : vector<4x256xf32>
    %484 = vector.extract_strided_slice %3 {offsets = [0, 24], sizes = [4, 1], strides = [1, 1]} : vector<4x36xf32> to vector<4x1xf32>
    %485 = vector.extract_strided_slice %483 {offsets = [0, 0], sizes = [1, 256], strides = [1, 1]} : vector<4x256xf32> to vector<1x256xf32>
    %486 = vector.broadcast %484 : vector<4x1xf32> to vector<4x256xf32>
    %487 = vector.broadcast %485 : vector<1x256xf32> to vector<4x256xf32>
    %488 = arith.mulf %486, %487 : vector<4x256xf32>
    %489 = arith.addf %477, %488 : vector<4x256xf32>
    %490 = vector.extract_strided_slice %3 {offsets = [0, 25], sizes = [4, 1], strides = [1, 1]} : vector<4x36xf32> to vector<4x1xf32>
    %491 = vector.extract_strided_slice %483 {offsets = [1, 0], sizes = [1, 256], strides = [1, 1]} : vector<4x256xf32> to vector<1x256xf32>
    %492 = vector.broadcast %490 : vector<4x1xf32> to vector<4x256xf32>
    %493 = vector.broadcast %491 : vector<1x256xf32> to vector<4x256xf32>
    %494 = arith.mulf %492, %493 : vector<4x256xf32>
    %495 = arith.addf %489, %494 : vector<4x256xf32>
    %496 = vector.extract_strided_slice %3 {offsets = [0, 26], sizes = [4, 1], strides = [1, 1]} : vector<4x36xf32> to vector<4x1xf32>
    %497 = vector.extract_strided_slice %483 {offsets = [2, 0], sizes = [1, 256], strides = [1, 1]} : vector<4x256xf32> to vector<1x256xf32>
    %498 = vector.broadcast %496 : vector<4x1xf32> to vector<4x256xf32>
    %499 = vector.broadcast %497 : vector<1x256xf32> to vector<4x256xf32>
    %500 = arith.mulf %498, %499 : vector<4x256xf32>
    %501 = arith.addf %495, %500 : vector<4x256xf32>
    %502 = vector.extract_strided_slice %3 {offsets = [0, 27], sizes = [4, 1], strides = [1, 1]} : vector<4x36xf32> to vector<4x1xf32>
    %503 = vector.extract_strided_slice %483 {offsets = [3, 0], sizes = [1, 256], strides = [1, 1]} : vector<4x256xf32> to vector<1x256xf32>
    %504 = vector.broadcast %502 : vector<4x1xf32> to vector<4x256xf32>
    %505 = vector.broadcast %503 : vector<1x256xf32> to vector<4x256xf32>
    %506 = arith.mulf %504, %505 : vector<4x256xf32>
    %507 = arith.addf %501, %506 : vector<4x256xf32>
    %508 = vector.extract_strided_slice %299 {offsets = [0, 16], sizes = [4, 240], strides = [1, 1]} : vector<4x256xf32> to vector<4x240xf32>
    %509 = vector.extract_strided_slice %299 {offsets = [0, 0], sizes = [4, 16], strides = [1, 1]} : vector<4x256xf32> to vector<4x16xf32>
    %510 = tpu.concatenate %508, %509 in 1 : vector<4x240xf32>, vector<4x16xf32> -> vector<4x256xf32>
    %511 = vector.extract_strided_slice %5 {offsets = [7, 0], sizes = [1, 256], strides = [1, 1]} : vector<9x256xf32> to vector<1x256xf32>
    %512 = vector.broadcast %511 : vector<1x256xf32> to vector<4x256xf32>
    %513 = arith.mulf %510, %512 : vector<4x256xf32>
    %514 = vector.extract_strided_slice %3 {offsets = [0, 28], sizes = [4, 1], strides = [1, 1]} : vector<4x36xf32> to vector<4x1xf32>
    %515 = vector.extract_strided_slice %513 {offsets = [0, 0], sizes = [1, 256], strides = [1, 1]} : vector<4x256xf32> to vector<1x256xf32>
    %516 = vector.broadcast %514 : vector<4x1xf32> to vector<4x256xf32>
    %517 = vector.broadcast %515 : vector<1x256xf32> to vector<4x256xf32>
    %518 = arith.mulf %516, %517 : vector<4x256xf32>
    %519 = arith.addf %507, %518 : vector<4x256xf32>
    %520 = vector.extract_strided_slice %3 {offsets = [0, 29], sizes = [4, 1], strides = [1, 1]} : vector<4x36xf32> to vector<4x1xf32>
    %521 = vector.extract_strided_slice %513 {offsets = [1, 0], sizes = [1, 256], strides = [1, 1]} : vector<4x256xf32> to vector<1x256xf32>
    %522 = vector.broadcast %520 : vector<4x1xf32> to vector<4x256xf32>
    %523 = vector.broadcast %521 : vector<1x256xf32> to vector<4x256xf32>
    %524 = arith.mulf %522, %523 : vector<4x256xf32>
    %525 = arith.addf %519, %524 : vector<4x256xf32>
    %526 = vector.extract_strided_slice %3 {offsets = [0, 30], sizes = [4, 1], strides = [1, 1]} : vector<4x36xf32> to vector<4x1xf32>
    %527 = vector.extract_strided_slice %513 {offsets = [2, 0], sizes = [1, 256], strides = [1, 1]} : vector<4x256xf32> to vector<1x256xf32>
    %528 = vector.broadcast %526 : vector<4x1xf32> to vector<4x256xf32>
    %529 = vector.broadcast %527 : vector<1x256xf32> to vector<4x256xf32>
    %530 = arith.mulf %528, %529 : vector<4x256xf32>
    %531 = arith.addf %525, %530 : vector<4x256xf32>
    %532 = vector.extract_strided_slice %3 {offsets = [0, 31], sizes = [4, 1], strides = [1, 1]} : vector<4x36xf32> to vector<4x1xf32>
    %533 = vector.extract_strided_slice %513 {offsets = [3, 0], sizes = [1, 256], strides = [1, 1]} : vector<4x256xf32> to vector<1x256xf32>
    %534 = vector.broadcast %532 : vector<4x1xf32> to vector<4x256xf32>
    %535 = vector.broadcast %533 : vector<1x256xf32> to vector<4x256xf32>
    %536 = arith.mulf %534, %535 : vector<4x256xf32>
    %537 = arith.addf %531, %536 : vector<4x256xf32>
    %538 = vector.extract_strided_slice %299 {offsets = [0, 17], sizes = [4, 239], strides = [1, 1]} : vector<4x256xf32> to vector<4x239xf32>
    %539 = vector.extract_strided_slice %299 {offsets = [0, 0], sizes = [4, 17], strides = [1, 1]} : vector<4x256xf32> to vector<4x17xf32>
    %540 = tpu.concatenate %538, %539 in 1 : vector<4x239xf32>, vector<4x17xf32> -> vector<4x256xf32>
    %541 = vector.extract_strided_slice %5 {offsets = [8, 0], sizes = [1, 256], strides = [1, 1]} : vector<9x256xf32> to vector<1x256xf32>
    %542 = vector.broadcast %541 : vector<1x256xf32> to vector<4x256xf32>
    %543 = arith.mulf %540, %542 : vector<4x256xf32>
    %544 = vector.extract_strided_slice %3 {offsets = [0, 32], sizes = [4, 1], strides = [1, 1]} : vector<4x36xf32> to vector<4x1xf32>
    %545 = vector.extract_strided_slice %543 {offsets = [0, 0], sizes = [1, 256], strides = [1, 1]} : vector<4x256xf32> to vector<1x256xf32>
    %546 = vector.broadcast %544 : vector<4x1xf32> to vector<4x256xf32>
    %547 = vector.broadcast %545 : vector<1x256xf32> to vector<4x256xf32>
    %548 = arith.mulf %546, %547 : vector<4x256xf32>
    %549 = arith.addf %537, %548 : vector<4x256xf32>
    %550 = vector.extract_strided_slice %3 {offsets = [0, 33], sizes = [4, 1], strides = [1, 1]} : vector<4x36xf32> to vector<4x1xf32>
    %551 = vector.extract_strided_slice %543 {offsets = [1, 0], sizes = [1, 256], strides = [1, 1]} : vector<4x256xf32> to vector<1x256xf32>
    %552 = vector.broadcast %550 : vector<4x1xf32> to vector<4x256xf32>
    %553 = vector.broadcast %551 : vector<1x256xf32> to vector<4x256xf32>
    %554 = arith.mulf %552, %553 : vector<4x256xf32>
    %555 = arith.addf %549, %554 : vector<4x256xf32>
    %556 = vector.extract_strided_slice %3 {offsets = [0, 34], sizes = [4, 1], strides = [1, 1]} : vector<4x36xf32> to vector<4x1xf32>
    %557 = vector.extract_strided_slice %543 {offsets = [2, 0], sizes = [1, 256], strides = [1, 1]} : vector<4x256xf32> to vector<1x256xf32>
    %558 = vector.broadcast %556 : vector<4x1xf32> to vector<4x256xf32>
    %559 = vector.broadcast %557 : vector<1x256xf32> to vector<4x256xf32>
    %560 = arith.mulf %558, %559 : vector<4x256xf32>
    %561 = arith.addf %555, %560 : vector<4x256xf32>
    %562 = vector.extract_strided_slice %3 {offsets = [0, 35], sizes = [4, 1], strides = [1, 1]} : vector<4x36xf32> to vector<4x1xf32>
    %563 = vector.extract_strided_slice %543 {offsets = [3, 0], sizes = [1, 256], strides = [1, 1]} : vector<4x256xf32> to vector<1x256xf32>
    %564 = vector.broadcast %562 : vector<4x1xf32> to vector<4x256xf32>
    %565 = vector.broadcast %563 : vector<1x256xf32> to vector<4x256xf32>
    %566 = arith.mulf %564, %565 : vector<4x256xf32>
    %567 = arith.addf %561, %566 : vector<4x256xf32>
    %cst_17 = arith.constant 0.000000e+00 : f32
    %568 = vector.broadcast %cst_17 : f32 to vector<4x256xf32>
    %569 = vector.extract_strided_slice %567 {offsets = [0, 239], sizes = [4, 17], strides = [1, 1]} : vector<4x256xf32> to vector<4x17xf32>
    %570 = vector.extract_strided_slice %567 {offsets = [0, 0], sizes = [4, 239], strides = [1, 1]} : vector<4x256xf32> to vector<4x239xf32>
    %571 = tpu.concatenate %569, %570 in 1 : vector<4x17xf32>, vector<4x239xf32> -> vector<4x256xf32>
    %572 = vector.extract_strided_slice %5 {offsets = [0, 0], sizes = [1, 256], strides = [1, 1]} : vector<9x256xf32> to vector<1x256xf32>
    %573 = vector.broadcast %572 : vector<1x256xf32> to vector<4x256xf32>
    %574 = arith.mulf %571, %573 : vector<4x256xf32>
    %575 = vector.extract_strided_slice %3 {offsets = [0, 0], sizes = [4, 1], strides = [1, 1]} : vector<4x36xf32> to vector<4x1xf32>
    %576 = vector.extract_strided_slice %574 {offsets = [0, 0], sizes = [1, 256], strides = [1, 1]} : vector<4x256xf32> to vector<1x256xf32>
    %577 = vector.broadcast %575 : vector<4x1xf32> to vector<4x256xf32>
    %578 = vector.broadcast %576 : vector<1x256xf32> to vector<4x256xf32>
    %579 = arith.mulf %577, %578 : vector<4x256xf32>
    %580 = arith.addf %568, %579 : vector<4x256xf32>
    %581 = vector.extract_strided_slice %3 {offsets = [0, 1], sizes = [4, 1], strides = [1, 1]} : vector<4x36xf32> to vector<4x1xf32>
    %582 = vector.extract_strided_slice %574 {offsets = [1, 0], sizes = [1, 256], strides = [1, 1]} : vector<4x256xf32> to vector<1x256xf32>
    %583 = vector.broadcast %581 : vector<4x1xf32> to vector<4x256xf32>
    %584 = vector.broadcast %582 : vector<1x256xf32> to vector<4x256xf32>
    %585 = arith.mulf %583, %584 : vector<4x256xf32>
    %586 = arith.addf %580, %585 : vector<4x256xf32>
    %587 = vector.extract_strided_slice %3 {offsets = [0, 2], sizes = [4, 1], strides = [1, 1]} : vector<4x36xf32> to vector<4x1xf32>
    %588 = vector.extract_strided_slice %574 {offsets = [2, 0], sizes = [1, 256], strides = [1, 1]} : vector<4x256xf32> to vector<1x256xf32>
    %589 = vector.broadcast %587 : vector<4x1xf32> to vector<4x256xf32>
    %590 = vector.broadcast %588 : vector<1x256xf32> to vector<4x256xf32>
    %591 = arith.mulf %589, %590 : vector<4x256xf32>
    %592 = arith.addf %586, %591 : vector<4x256xf32>
    %593 = vector.extract_strided_slice %3 {offsets = [0, 3], sizes = [4, 1], strides = [1, 1]} : vector<4x36xf32> to vector<4x1xf32>
    %594 = vector.extract_strided_slice %574 {offsets = [3, 0], sizes = [1, 256], strides = [1, 1]} : vector<4x256xf32> to vector<1x256xf32>
    %595 = vector.broadcast %593 : vector<4x1xf32> to vector<4x256xf32>
    %596 = vector.broadcast %594 : vector<1x256xf32> to vector<4x256xf32>
    %597 = arith.mulf %595, %596 : vector<4x256xf32>
    %598 = arith.addf %592, %597 : vector<4x256xf32>
    %599 = vector.extract_strided_slice %567 {offsets = [0, 240], sizes = [4, 16], strides = [1, 1]} : vector<4x256xf32> to vector<4x16xf32>
    %600 = vector.extract_strided_slice %567 {offsets = [0, 0], sizes = [4, 240], strides = [1, 1]} : vector<4x256xf32> to vector<4x240xf32>
    %601 = tpu.concatenate %599, %600 in 1 : vector<4x16xf32>, vector<4x240xf32> -> vector<4x256xf32>
    %602 = vector.extract_strided_slice %5 {offsets = [1, 0], sizes = [1, 256], strides = [1, 1]} : vector<9x256xf32> to vector<1x256xf32>
    %603 = vector.broadcast %602 : vector<1x256xf32> to vector<4x256xf32>
    %604 = arith.mulf %601, %603 : vector<4x256xf32>
    %605 = vector.extract_strided_slice %3 {offsets = [0, 4], sizes = [4, 1], strides = [1, 1]} : vector<4x36xf32> to vector<4x1xf32>
    %606 = vector.extract_strided_slice %604 {offsets = [0, 0], sizes = [1, 256], strides = [1, 1]} : vector<4x256xf32> to vector<1x256xf32>
    %607 = vector.broadcast %605 : vector<4x1xf32> to vector<4x256xf32>
    %608 = vector.broadcast %606 : vector<1x256xf32> to vector<4x256xf32>
    %609 = arith.mulf %607, %608 : vector<4x256xf32>
    %610 = arith.addf %598, %609 : vector<4x256xf32>
    %611 = vector.extract_strided_slice %3 {offsets = [0, 5], sizes = [4, 1], strides = [1, 1]} : vector<4x36xf32> to vector<4x1xf32>
    %612 = vector.extract_strided_slice %604 {offsets = [1, 0], sizes = [1, 256], strides = [1, 1]} : vector<4x256xf32> to vector<1x256xf32>
    %613 = vector.broadcast %611 : vector<4x1xf32> to vector<4x256xf32>
    %614 = vector.broadcast %612 : vector<1x256xf32> to vector<4x256xf32>
    %615 = arith.mulf %613, %614 : vector<4x256xf32>
    %616 = arith.addf %610, %615 : vector<4x256xf32>
    %617 = vector.extract_strided_slice %3 {offsets = [0, 6], sizes = [4, 1], strides = [1, 1]} : vector<4x36xf32> to vector<4x1xf32>
    %618 = vector.extract_strided_slice %604 {offsets = [2, 0], sizes = [1, 256], strides = [1, 1]} : vector<4x256xf32> to vector<1x256xf32>
    %619 = vector.broadcast %617 : vector<4x1xf32> to vector<4x256xf32>
    %620 = vector.broadcast %618 : vector<1x256xf32> to vector<4x256xf32>
    %621 = arith.mulf %619, %620 : vector<4x256xf32>
    %622 = arith.addf %616, %621 : vector<4x256xf32>
    %623 = vector.extract_strided_slice %3 {offsets = [0, 7], sizes = [4, 1], strides = [1, 1]} : vector<4x36xf32> to vector<4x1xf32>
    %624 = vector.extract_strided_slice %604 {offsets = [3, 0], sizes = [1, 256], strides = [1, 1]} : vector<4x256xf32> to vector<1x256xf32>
    %625 = vector.broadcast %623 : vector<4x1xf32> to vector<4x256xf32>
    %626 = vector.broadcast %624 : vector<1x256xf32> to vector<4x256xf32>
    %627 = arith.mulf %625, %626 : vector<4x256xf32>
    %628 = arith.addf %622, %627 : vector<4x256xf32>
    %629 = vector.extract_strided_slice %567 {offsets = [0, 241], sizes = [4, 15], strides = [1, 1]} : vector<4x256xf32> to vector<4x15xf32>
    %630 = vector.extract_strided_slice %567 {offsets = [0, 0], sizes = [4, 241], strides = [1, 1]} : vector<4x256xf32> to vector<4x241xf32>
    %631 = tpu.concatenate %629, %630 in 1 : vector<4x15xf32>, vector<4x241xf32> -> vector<4x256xf32>
    %632 = vector.extract_strided_slice %5 {offsets = [2, 0], sizes = [1, 256], strides = [1, 1]} : vector<9x256xf32> to vector<1x256xf32>
    %633 = vector.broadcast %632 : vector<1x256xf32> to vector<4x256xf32>
    %634 = arith.mulf %631, %633 : vector<4x256xf32>
    %635 = vector.extract_strided_slice %3 {offsets = [0, 8], sizes = [4, 1], strides = [1, 1]} : vector<4x36xf32> to vector<4x1xf32>
    %636 = vector.extract_strided_slice %634 {offsets = [0, 0], sizes = [1, 256], strides = [1, 1]} : vector<4x256xf32> to vector<1x256xf32>
    %637 = vector.broadcast %635 : vector<4x1xf32> to vector<4x256xf32>
    %638 = vector.broadcast %636 : vector<1x256xf32> to vector<4x256xf32>
    %639 = arith.mulf %637, %638 : vector<4x256xf32>
    %640 = arith.addf %628, %639 : vector<4x256xf32>
    %641 = vector.extract_strided_slice %3 {offsets = [0, 9], sizes = [4, 1], strides = [1, 1]} : vector<4x36xf32> to vector<4x1xf32>
    %642 = vector.extract_strided_slice %634 {offsets = [1, 0], sizes = [1, 256], strides = [1, 1]} : vector<4x256xf32> to vector<1x256xf32>
    %643 = vector.broadcast %641 : vector<4x1xf32> to vector<4x256xf32>
    %644 = vector.broadcast %642 : vector<1x256xf32> to vector<4x256xf32>
    %645 = arith.mulf %643, %644 : vector<4x256xf32>
    %646 = arith.addf %640, %645 : vector<4x256xf32>
    %647 = vector.extract_strided_slice %3 {offsets = [0, 10], sizes = [4, 1], strides = [1, 1]} : vector<4x36xf32> to vector<4x1xf32>
    %648 = vector.extract_strided_slice %634 {offsets = [2, 0], sizes = [1, 256], strides = [1, 1]} : vector<4x256xf32> to vector<1x256xf32>
    %649 = vector.broadcast %647 : vector<4x1xf32> to vector<4x256xf32>
    %650 = vector.broadcast %648 : vector<1x256xf32> to vector<4x256xf32>
    %651 = arith.mulf %649, %650 : vector<4x256xf32>
    %652 = arith.addf %646, %651 : vector<4x256xf32>
    %653 = vector.extract_strided_slice %3 {offsets = [0, 11], sizes = [4, 1], strides = [1, 1]} : vector<4x36xf32> to vector<4x1xf32>
    %654 = vector.extract_strided_slice %634 {offsets = [3, 0], sizes = [1, 256], strides = [1, 1]} : vector<4x256xf32> to vector<1x256xf32>
    %655 = vector.broadcast %653 : vector<4x1xf32> to vector<4x256xf32>
    %656 = vector.broadcast %654 : vector<1x256xf32> to vector<4x256xf32>
    %657 = arith.mulf %655, %656 : vector<4x256xf32>
    %658 = arith.addf %652, %657 : vector<4x256xf32>
    %659 = vector.extract_strided_slice %567 {offsets = [0, 255], sizes = [4, 1], strides = [1, 1]} : vector<4x256xf32> to vector<4x1xf32>
    %660 = vector.extract_strided_slice %567 {offsets = [0, 0], sizes = [4, 255], strides = [1, 1]} : vector<4x256xf32> to vector<4x255xf32>
    %661 = tpu.concatenate %659, %660 in 1 : vector<4x1xf32>, vector<4x255xf32> -> vector<4x256xf32>
    %662 = vector.extract_strided_slice %5 {offsets = [3, 0], sizes = [1, 256], strides = [1, 1]} : vector<9x256xf32> to vector<1x256xf32>
    %663 = vector.broadcast %662 : vector<1x256xf32> to vector<4x256xf32>
    %664 = arith.mulf %661, %663 : vector<4x256xf32>
    %665 = vector.extract_strided_slice %3 {offsets = [0, 12], sizes = [4, 1], strides = [1, 1]} : vector<4x36xf32> to vector<4x1xf32>
    %666 = vector.extract_strided_slice %664 {offsets = [0, 0], sizes = [1, 256], strides = [1, 1]} : vector<4x256xf32> to vector<1x256xf32>
    %667 = vector.broadcast %665 : vector<4x1xf32> to vector<4x256xf32>
    %668 = vector.broadcast %666 : vector<1x256xf32> to vector<4x256xf32>
    %669 = arith.mulf %667, %668 : vector<4x256xf32>
    %670 = arith.addf %658, %669 : vector<4x256xf32>
    %671 = vector.extract_strided_slice %3 {offsets = [0, 13], sizes = [4, 1], strides = [1, 1]} : vector<4x36xf32> to vector<4x1xf32>
    %672 = vector.extract_strided_slice %664 {offsets = [1, 0], sizes = [1, 256], strides = [1, 1]} : vector<4x256xf32> to vector<1x256xf32>
    %673 = vector.broadcast %671 : vector<4x1xf32> to vector<4x256xf32>
    %674 = vector.broadcast %672 : vector<1x256xf32> to vector<4x256xf32>
    %675 = arith.mulf %673, %674 : vector<4x256xf32>
    %676 = arith.addf %670, %675 : vector<4x256xf32>
    %677 = vector.extract_strided_slice %3 {offsets = [0, 14], sizes = [4, 1], strides = [1, 1]} : vector<4x36xf32> to vector<4x1xf32>
    %678 = vector.extract_strided_slice %664 {offsets = [2, 0], sizes = [1, 256], strides = [1, 1]} : vector<4x256xf32> to vector<1x256xf32>
    %679 = vector.broadcast %677 : vector<4x1xf32> to vector<4x256xf32>
    %680 = vector.broadcast %678 : vector<1x256xf32> to vector<4x256xf32>
    %681 = arith.mulf %679, %680 : vector<4x256xf32>
    %682 = arith.addf %676, %681 : vector<4x256xf32>
    %683 = vector.extract_strided_slice %3 {offsets = [0, 15], sizes = [4, 1], strides = [1, 1]} : vector<4x36xf32> to vector<4x1xf32>
    %684 = vector.extract_strided_slice %664 {offsets = [3, 0], sizes = [1, 256], strides = [1, 1]} : vector<4x256xf32> to vector<1x256xf32>
    %685 = vector.broadcast %683 : vector<4x1xf32> to vector<4x256xf32>
    %686 = vector.broadcast %684 : vector<1x256xf32> to vector<4x256xf32>
    %687 = arith.mulf %685, %686 : vector<4x256xf32>
    %688 = arith.addf %682, %687 : vector<4x256xf32>
    %689 = vector.extract_strided_slice %5 {offsets = [4, 0], sizes = [1, 256], strides = [1, 1]} : vector<9x256xf32> to vector<1x256xf32>
    %690 = vector.broadcast %689 : vector<1x256xf32> to vector<4x256xf32>
    %691 = arith.mulf %567, %690 : vector<4x256xf32>
    %692 = vector.extract_strided_slice %3 {offsets = [0, 16], sizes = [4, 1], strides = [1, 1]} : vector<4x36xf32> to vector<4x1xf32>
    %693 = vector.extract_strided_slice %691 {offsets = [0, 0], sizes = [1, 256], strides = [1, 1]} : vector<4x256xf32> to vector<1x256xf32>
    %694 = vector.broadcast %692 : vector<4x1xf32> to vector<4x256xf32>
    %695 = vector.broadcast %693 : vector<1x256xf32> to vector<4x256xf32>
    %696 = arith.mulf %694, %695 : vector<4x256xf32>
    %697 = arith.addf %688, %696 : vector<4x256xf32>
    %698 = vector.extract_strided_slice %3 {offsets = [0, 17], sizes = [4, 1], strides = [1, 1]} : vector<4x36xf32> to vector<4x1xf32>
    %699 = vector.extract_strided_slice %691 {offsets = [1, 0], sizes = [1, 256], strides = [1, 1]} : vector<4x256xf32> to vector<1x256xf32>
    %700 = vector.broadcast %698 : vector<4x1xf32> to vector<4x256xf32>
    %701 = vector.broadcast %699 : vector<1x256xf32> to vector<4x256xf32>
    %702 = arith.mulf %700, %701 : vector<4x256xf32>
    %703 = arith.addf %697, %702 : vector<4x256xf32>
    %704 = vector.extract_strided_slice %3 {offsets = [0, 18], sizes = [4, 1], strides = [1, 1]} : vector<4x36xf32> to vector<4x1xf32>
    %705 = vector.extract_strided_slice %691 {offsets = [2, 0], sizes = [1, 256], strides = [1, 1]} : vector<4x256xf32> to vector<1x256xf32>
    %706 = vector.broadcast %704 : vector<4x1xf32> to vector<4x256xf32>
    %707 = vector.broadcast %705 : vector<1x256xf32> to vector<4x256xf32>
    %708 = arith.mulf %706, %707 : vector<4x256xf32>
    %709 = arith.addf %703, %708 : vector<4x256xf32>
    %710 = vector.extract_strided_slice %3 {offsets = [0, 19], sizes = [4, 1], strides = [1, 1]} : vector<4x36xf32> to vector<4x1xf32>
    %711 = vector.extract_strided_slice %691 {offsets = [3, 0], sizes = [1, 256], strides = [1, 1]} : vector<4x256xf32> to vector<1x256xf32>
    %712 = vector.broadcast %710 : vector<4x1xf32> to vector<4x256xf32>
    %713 = vector.broadcast %711 : vector<1x256xf32> to vector<4x256xf32>
    %714 = arith.mulf %712, %713 : vector<4x256xf32>
    %715 = arith.addf %709, %714 : vector<4x256xf32>
    %716 = vector.extract_strided_slice %567 {offsets = [0, 1], sizes = [4, 255], strides = [1, 1]} : vector<4x256xf32> to vector<4x255xf32>
    %717 = vector.extract_strided_slice %567 {offsets = [0, 0], sizes = [4, 1], strides = [1, 1]} : vector<4x256xf32> to vector<4x1xf32>
    %718 = tpu.concatenate %716, %717 in 1 : vector<4x255xf32>, vector<4x1xf32> -> vector<4x256xf32>
    %719 = vector.extract_strided_slice %5 {offsets = [5, 0], sizes = [1, 256], strides = [1, 1]} : vector<9x256xf32> to vector<1x256xf32>
    %720 = vector.broadcast %719 : vector<1x256xf32> to vector<4x256xf32>
    %721 = arith.mulf %718, %720 : vector<4x256xf32>
    %722 = vector.extract_strided_slice %3 {offsets = [0, 20], sizes = [4, 1], strides = [1, 1]} : vector<4x36xf32> to vector<4x1xf32>
    %723 = vector.extract_strided_slice %721 {offsets = [0, 0], sizes = [1, 256], strides = [1, 1]} : vector<4x256xf32> to vector<1x256xf32>
    %724 = vector.broadcast %722 : vector<4x1xf32> to vector<4x256xf32>
    %725 = vector.broadcast %723 : vector<1x256xf32> to vector<4x256xf32>
    %726 = arith.mulf %724, %725 : vector<4x256xf32>
    %727 = arith.addf %715, %726 : vector<4x256xf32>
    %728 = vector.extract_strided_slice %3 {offsets = [0, 21], sizes = [4, 1], strides = [1, 1]} : vector<4x36xf32> to vector<4x1xf32>
    %729 = vector.extract_strided_slice %721 {offsets = [1, 0], sizes = [1, 256], strides = [1, 1]} : vector<4x256xf32> to vector<1x256xf32>
    %730 = vector.broadcast %728 : vector<4x1xf32> to vector<4x256xf32>
    %731 = vector.broadcast %729 : vector<1x256xf32> to vector<4x256xf32>
    %732 = arith.mulf %730, %731 : vector<4x256xf32>
    %733 = arith.addf %727, %732 : vector<4x256xf32>
    %734 = vector.extract_strided_slice %3 {offsets = [0, 22], sizes = [4, 1], strides = [1, 1]} : vector<4x36xf32> to vector<4x1xf32>
    %735 = vector.extract_strided_slice %721 {offsets = [2, 0], sizes = [1, 256], strides = [1, 1]} : vector<4x256xf32> to vector<1x256xf32>
    %736 = vector.broadcast %734 : vector<4x1xf32> to vector<4x256xf32>
    %737 = vector.broadcast %735 : vector<1x256xf32> to vector<4x256xf32>
    %738 = arith.mulf %736, %737 : vector<4x256xf32>
    %739 = arith.addf %733, %738 : vector<4x256xf32>
    %740 = vector.extract_strided_slice %3 {offsets = [0, 23], sizes = [4, 1], strides = [1, 1]} : vector<4x36xf32> to vector<4x1xf32>
    %741 = vector.extract_strided_slice %721 {offsets = [3, 0], sizes = [1, 256], strides = [1, 1]} : vector<4x256xf32> to vector<1x256xf32>
    %742 = vector.broadcast %740 : vector<4x1xf32> to vector<4x256xf32>
    %743 = vector.broadcast %741 : vector<1x256xf32> to vector<4x256xf32>
    %744 = arith.mulf %742, %743 : vector<4x256xf32>
    %745 = arith.addf %739, %744 : vector<4x256xf32>
    %746 = vector.extract_strided_slice %567 {offsets = [0, 15], sizes = [4, 241], strides = [1, 1]} : vector<4x256xf32> to vector<4x241xf32>
    %747 = vector.extract_strided_slice %567 {offsets = [0, 0], sizes = [4, 15], strides = [1, 1]} : vector<4x256xf32> to vector<4x15xf32>
    %748 = tpu.concatenate %746, %747 in 1 : vector<4x241xf32>, vector<4x15xf32> -> vector<4x256xf32>
    %749 = vector.extract_strided_slice %5 {offsets = [6, 0], sizes = [1, 256], strides = [1, 1]} : vector<9x256xf32> to vector<1x256xf32>
    %750 = vector.broadcast %749 : vector<1x256xf32> to vector<4x256xf32>
    %751 = arith.mulf %748, %750 : vector<4x256xf32>
    %752 = vector.extract_strided_slice %3 {offsets = [0, 24], sizes = [4, 1], strides = [1, 1]} : vector<4x36xf32> to vector<4x1xf32>
    %753 = vector.extract_strided_slice %751 {offsets = [0, 0], sizes = [1, 256], strides = [1, 1]} : vector<4x256xf32> to vector<1x256xf32>
    %754 = vector.broadcast %752 : vector<4x1xf32> to vector<4x256xf32>
    %755 = vector.broadcast %753 : vector<1x256xf32> to vector<4x256xf32>
    %756 = arith.mulf %754, %755 : vector<4x256xf32>
    %757 = arith.addf %745, %756 : vector<4x256xf32>
    %758 = vector.extract_strided_slice %3 {offsets = [0, 25], sizes = [4, 1], strides = [1, 1]} : vector<4x36xf32> to vector<4x1xf32>
    %759 = vector.extract_strided_slice %751 {offsets = [1, 0], sizes = [1, 256], strides = [1, 1]} : vector<4x256xf32> to vector<1x256xf32>
    %760 = vector.broadcast %758 : vector<4x1xf32> to vector<4x256xf32>
    %761 = vector.broadcast %759 : vector<1x256xf32> to vector<4x256xf32>
    %762 = arith.mulf %760, %761 : vector<4x256xf32>
    %763 = arith.addf %757, %762 : vector<4x256xf32>
    %764 = vector.extract_strided_slice %3 {offsets = [0, 26], sizes = [4, 1], strides = [1, 1]} : vector<4x36xf32> to vector<4x1xf32>
    %765 = vector.extract_strided_slice %751 {offsets = [2, 0], sizes = [1, 256], strides = [1, 1]} : vector<4x256xf32> to vector<1x256xf32>
    %766 = vector.broadcast %764 : vector<4x1xf32> to vector<4x256xf32>
    %767 = vector.broadcast %765 : vector<1x256xf32> to vector<4x256xf32>
    %768 = arith.mulf %766, %767 : vector<4x256xf32>
    %769 = arith.addf %763, %768 : vector<4x256xf32>
    %770 = vector.extract_strided_slice %3 {offsets = [0, 27], sizes = [4, 1], strides = [1, 1]} : vector<4x36xf32> to vector<4x1xf32>
    %771 = vector.extract_strided_slice %751 {offsets = [3, 0], sizes = [1, 256], strides = [1, 1]} : vector<4x256xf32> to vector<1x256xf32>
    %772 = vector.broadcast %770 : vector<4x1xf32> to vector<4x256xf32>
    %773 = vector.broadcast %771 : vector<1x256xf32> to vector<4x256xf32>
    %774 = arith.mulf %772, %773 : vector<4x256xf32>
    %775 = arith.addf %769, %774 : vector<4x256xf32>
    %776 = vector.extract_strided_slice %567 {offsets = [0, 16], sizes = [4, 240], strides = [1, 1]} : vector<4x256xf32> to vector<4x240xf32>
    %777 = vector.extract_strided_slice %567 {offsets = [0, 0], sizes = [4, 16], strides = [1, 1]} : vector<4x256xf32> to vector<4x16xf32>
    %778 = tpu.concatenate %776, %777 in 1 : vector<4x240xf32>, vector<4x16xf32> -> vector<4x256xf32>
    %779 = vector.extract_strided_slice %5 {offsets = [7, 0], sizes = [1, 256], strides = [1, 1]} : vector<9x256xf32> to vector<1x256xf32>
    %780 = vector.broadcast %779 : vector<1x256xf32> to vector<4x256xf32>
    %781 = arith.mulf %778, %780 : vector<4x256xf32>
    %782 = vector.extract_strided_slice %3 {offsets = [0, 28], sizes = [4, 1], strides = [1, 1]} : vector<4x36xf32> to vector<4x1xf32>
    %783 = vector.extract_strided_slice %781 {offsets = [0, 0], sizes = [1, 256], strides = [1, 1]} : vector<4x256xf32> to vector<1x256xf32>
    %784 = vector.broadcast %782 : vector<4x1xf32> to vector<4x256xf32>
    %785 = vector.broadcast %783 : vector<1x256xf32> to vector<4x256xf32>
    %786 = arith.mulf %784, %785 : vector<4x256xf32>
    %787 = arith.addf %775, %786 : vector<4x256xf32>
    %788 = vector.extract_strided_slice %3 {offsets = [0, 29], sizes = [4, 1], strides = [1, 1]} : vector<4x36xf32> to vector<4x1xf32>
    %789 = vector.extract_strided_slice %781 {offsets = [1, 0], sizes = [1, 256], strides = [1, 1]} : vector<4x256xf32> to vector<1x256xf32>
    %790 = vector.broadcast %788 : vector<4x1xf32> to vector<4x256xf32>
    %791 = vector.broadcast %789 : vector<1x256xf32> to vector<4x256xf32>
    %792 = arith.mulf %790, %791 : vector<4x256xf32>
    %793 = arith.addf %787, %792 : vector<4x256xf32>
    %794 = vector.extract_strided_slice %3 {offsets = [0, 30], sizes = [4, 1], strides = [1, 1]} : vector<4x36xf32> to vector<4x1xf32>
    %795 = vector.extract_strided_slice %781 {offsets = [2, 0], sizes = [1, 256], strides = [1, 1]} : vector<4x256xf32> to vector<1x256xf32>
    %796 = vector.broadcast %794 : vector<4x1xf32> to vector<4x256xf32>
    %797 = vector.broadcast %795 : vector<1x256xf32> to vector<4x256xf32>
    %798 = arith.mulf %796, %797 : vector<4x256xf32>
    %799 = arith.addf %793, %798 : vector<4x256xf32>
    %800 = vector.extract_strided_slice %3 {offsets = [0, 31], sizes = [4, 1], strides = [1, 1]} : vector<4x36xf32> to vector<4x1xf32>
    %801 = vector.extract_strided_slice %781 {offsets = [3, 0], sizes = [1, 256], strides = [1, 1]} : vector<4x256xf32> to vector<1x256xf32>
    %802 = vector.broadcast %800 : vector<4x1xf32> to vector<4x256xf32>
    %803 = vector.broadcast %801 : vector<1x256xf32> to vector<4x256xf32>
    %804 = arith.mulf %802, %803 : vector<4x256xf32>
    %805 = arith.addf %799, %804 : vector<4x256xf32>
    %806 = vector.extract_strided_slice %567 {offsets = [0, 17], sizes = [4, 239], strides = [1, 1]} : vector<4x256xf32> to vector<4x239xf32>
    %807 = vector.extract_strided_slice %567 {offsets = [0, 0], sizes = [4, 17], strides = [1, 1]} : vector<4x256xf32> to vector<4x17xf32>
    %808 = tpu.concatenate %806, %807 in 1 : vector<4x239xf32>, vector<4x17xf32> -> vector<4x256xf32>
    %809 = vector.extract_strided_slice %5 {offsets = [8, 0], sizes = [1, 256], strides = [1, 1]} : vector<9x256xf32> to vector<1x256xf32>
    %810 = vector.broadcast %809 : vector<1x256xf32> to vector<4x256xf32>
    %811 = arith.mulf %808, %810 : vector<4x256xf32>
    %812 = vector.extract_strided_slice %3 {offsets = [0, 32], sizes = [4, 1], strides = [1, 1]} : vector<4x36xf32> to vector<4x1xf32>
    %813 = vector.extract_strided_slice %811 {offsets = [0, 0], sizes = [1, 256], strides = [1, 1]} : vector<4x256xf32> to vector<1x256xf32>
    %814 = vector.broadcast %812 : vector<4x1xf32> to vector<4x256xf32>
    %815 = vector.broadcast %813 : vector<1x256xf32> to vector<4x256xf32>
    %816 = arith.mulf %814, %815 : vector<4x256xf32>
    %817 = arith.addf %805, %816 : vector<4x256xf32>
    %818 = vector.extract_strided_slice %3 {offsets = [0, 33], sizes = [4, 1], strides = [1, 1]} : vector<4x36xf32> to vector<4x1xf32>
    %819 = vector.extract_strided_slice %811 {offsets = [1, 0], sizes = [1, 256], strides = [1, 1]} : vector<4x256xf32> to vector<1x256xf32>
    %820 = vector.broadcast %818 : vector<4x1xf32> to vector<4x256xf32>
    %821 = vector.broadcast %819 : vector<1x256xf32> to vector<4x256xf32>
    %822 = arith.mulf %820, %821 : vector<4x256xf32>
    %823 = arith.addf %817, %822 : vector<4x256xf32>
    %824 = vector.extract_strided_slice %3 {offsets = [0, 34], sizes = [4, 1], strides = [1, 1]} : vector<4x36xf32> to vector<4x1xf32>
    %825 = vector.extract_strided_slice %811 {offsets = [2, 0], sizes = [1, 256], strides = [1, 1]} : vector<4x256xf32> to vector<1x256xf32>
    %826 = vector.broadcast %824 : vector<4x1xf32> to vector<4x256xf32>
    %827 = vector.broadcast %825 : vector<1x256xf32> to vector<4x256xf32>
    %828 = arith.mulf %826, %827 : vector<4x256xf32>
    %829 = arith.addf %823, %828 : vector<4x256xf32>
    %830 = vector.extract_strided_slice %3 {offsets = [0, 35], sizes = [4, 1], strides = [1, 1]} : vector<4x36xf32> to vector<4x1xf32>
    %831 = vector.extract_strided_slice %811 {offsets = [3, 0], sizes = [1, 256], strides = [1, 1]} : vector<4x256xf32> to vector<1x256xf32>
    %832 = vector.broadcast %830 : vector<4x1xf32> to vector<4x256xf32>
    %833 = vector.broadcast %831 : vector<1x256xf32> to vector<4x256xf32>
    %834 = arith.mulf %832, %833 : vector<4x256xf32>
    %835 = arith.addf %829, %834 : vector<4x256xf32>
    %836 = vector.extract_strided_slice %4 {offsets = [2, 0], sizes = [1, 256], strides = [1, 1]} : vector<4x256xf32> to vector<1x256xf32>
    %837 = vector.extract_strided_slice %4 {offsets = [3, 0], sizes = [1, 256], strides = [1, 1]} : vector<4x256xf32> to vector<1x256xf32>
    %cst_18 = arith.constant dense<0.000000e+00> : vector<4xf32>
    %838 = vector.multi_reduction <add>, %835, %cst_18 [1] : vector<4x256xf32> to vector<4xf32>
    %839 = vector.shape_cast %838 : vector<4xf32> to vector<4x1xf32>
    %840 = arith.mulf %835, %835 : vector<4x256xf32>
    %cst_19 = arith.constant dense<0.000000e+00> : vector<4xf32>
    %841 = vector.multi_reduction <add>, %840, %cst_19 [1] : vector<4x256xf32> to vector<4xf32>
    %842 = vector.shape_cast %841 : vector<4xf32> to vector<4x1xf32>
    %cst_20 = arith.constant 3.906250e-03 : f32
    %843 = vector.broadcast %cst_20 : f32 to vector<4x1xf32>
    %844 = arith.mulf %839, %843 : vector<4x1xf32>
    %cst_21 = arith.constant 3.906250e-03 : f32
    %845 = vector.broadcast %cst_21 : f32 to vector<4x1xf32>
    %846 = arith.mulf %842, %845 : vector<4x1xf32>
    %847 = arith.mulf %844, %844 : vector<4x1xf32>
    %848 = arith.subf %846, %847 : vector<4x1xf32>
    %849 = vector.broadcast %844 : vector<4x1xf32> to vector<4x256xf32>
    %850 = arith.subf %835, %849 : vector<4x256xf32>
    %cst_22 = arith.constant 9.99999974E-6 : f32
    %851 = vector.broadcast %cst_22 : f32 to vector<4x1xf32>
    %852 = arith.addf %848, %851 : vector<4x1xf32>
    %853 = math.rsqrt %852 : vector<4x1xf32>
    %854 = vector.broadcast %853 : vector<4x1xf32> to vector<4x256xf32>
    %855 = arith.mulf %850, %854 : vector<4x256xf32>
    %856 = vector.broadcast %836 : vector<1x256xf32> to vector<4x256xf32>
    %857 = arith.mulf %855, %856 : vector<4x256xf32>
    %858 = vector.broadcast %837 : vector<1x256xf32> to vector<4x256xf32>
    %859 = arith.addf %857, %858 : vector<4x256xf32>
    %860 = arith.addf %859, %1 : vector<4x256xf32>
    %cst_23 = arith.constant 0.000000e+00 : f32
    %861 = vector.broadcast %cst_23 : f32 to vector<4x256xf32>
    %862 = arith.maximumf %860, %861 : vector<4x256xf32>
    %c0_24 = arith.constant 0 : index
    %c0_25 = arith.constant 0 : index
    %c0_26 = arith.constant 0 : index
    %863 = vector.load %arg6[%c0_24, %c0_25, %c0_26] : memref<1x4x256xf32, #tpu.memory_space<vmem>>, vector<1x4x256xf32>
    %864 = vector.shape_cast %863 : vector<1x4x256xf32> to vector<4x256xf32>
    %865 = vector.shape_cast %862 : vector<4x256xf32> to vector<1x4x256xf32>
    tpu.vector_store %arg6[%c0_24, %c0_25, %c0_26], %865 {strides = array<i32>} : memref<1x4x256xf32, #tpu.memory_space<vmem>>, vector<1x4x256xf32>,
    return
  }
  func.func @transform_0(%arg0: i32) -> (i32, i32, i32) {
    %c0_i32 = arith.constant 0 : i32
    %c0_i32_0 = arith.constant 0 : i32
    %c0_i32_1 = arith.constant 0 : i32
    return %arg0, %c0_i32, %c0_i32_0 : i32, i32, i32
  }
  func.func @transform_1(%arg0: i32) -> (i32, i32) {
    %c0_i32 = arith.constant 0 : i32
    %c0_i32_0 = arith.constant 0 : i32
    %c0_i32_1 = arith.constant 0 : i32
    return %c0_i32, %c0_i32_0 : i32, i32
  }
  func.func @transform_2(%arg0: i32) -> (i32, i32) {
    %c0_i32 = arith.constant 0 : i32
    %c0_i32_0 = arith.constant 0 : i32
    %c0_i32_1 = arith.constant 0 : i32
    return %c0_i32, %c0_i32_0 : i32, i32
  }
  func.func @transform_3(%arg0: i32) -> (i32, i32) {
    %c0_i32 = arith.constant 0 : i32
    %c0_i32_0 = arith.constant 0 : i32
    %c0_i32_1 = arith.constant 0 : i32
    return %c0_i32, %c0_i32_0 : i32, i32
  }
  func.func @transform_4(%arg0: i32) -> (i32, i32) {
    %c0_i32 = arith.constant 0 : i32
    %c0_i32_0 = arith.constant 0 : i32
    %c0_i32_1 = arith.constant 0 : i32
    return %c0_i32, %c0_i32_0 : i32, i32
  }
  func.func @transform_5(%arg0: i32) -> (i32, i32, i32) {
    %c0_i32 = arith.constant 0 : i32
    %c0_i32_0 = arith.constant 0 : i32
    %c0_i32_1 = arith.constant 0 : i32
    return %arg0, %c0_i32, %c0_i32_0 : i32, i32, i32
  }
}

</mosaic_0001>

<llo_original>
// kernel: tpu_custom_call.1
$region0: #{tpu_custom_call.1}
  #allocation0 [shape = 'u32[]', space=smem, size = 0x4, offset = 0x4, fixed_abs, tag = 'smem constant byte address 0x4 - core index']
  #allocation1 [shape = 'u32[72,128]{1,0:T(1,128)}', space=vmem, size = 0x9000, scoped, tag = 'internal scratch']
  %s0 = inlined_call_operand.hbm [shape: f32[2,4,256], index: 0, kind: input, shape index: {}]
  %s1 = inlined_call_operand.hbm [shape: f32[4,36], index: 1, kind: input, shape index: {}]
  %s2 = inlined_call_operand.hbm [shape: f32[4,36], index: 2, kind: input, shape index: {}]
  %s3 = inlined_call_operand.hbm [shape: f32[4,256], index: 3, kind: input, shape index: {}]
  %s4 = inlined_call_operand.hbm [shape: f32[9,256], index: 4, kind: input, shape index: {}]
  %s5 = inlined_call_operand.hbm [shape: f32[2,4,256], index: 5, kind: output, shape index: {}]
  %s6 = sld [smem:[#allocation0]]
  $region73: #{tpu_custom_call.1} parent=0
    _
  %s8 = ssub.s32 1, %s6
  %s9 = scalar_select 0, %s8, %s6
  $region1: #{tpu_custom_call.1} parent=0
    #allocation2 [shape = 'u8[8192]{0}', space=vmem, size = 0x2000, scoped, tag = 'input window, operand 0']
    #allocation3 [shape = 's32[2]{0}', space=sflag, size = 0x8, scoped, tag = 'scoped memory for tpu_custom_call.1']
    #allocation4 [shape = 's32[2]{0}', space=sflag, size = 0x8, scoped, tag = 'scoped memory for tpu_custom_call.1']
    #allocation5 [shape = 'u8[2048]{0}', space=vmem, size = 0x800, scoped, tag = 'input window, operand 1, single buffered']
    #allocation6 [shape = 's32[1]{0}', space=sflag, size = 0x4, scoped, tag = 'scoped memory for tpu_custom_call.1']
    #allocation7 [shape = 'u8[2048]{0}', space=vmem, size = 0x800, scoped, tag = 'input window, operand 2, single buffered']
    #allocation8 [shape = 'u8[4096]{0}', space=vmem, size = 0x1000, scoped, tag = 'input window, operand 3, single buffered']
    #allocation9 [shape = 's32[1]{0}', space=sflag, size = 0x4, scoped, tag = 'scoped memory for tpu_custom_call.1']
    #allocation10 [shape = 'u8[16384]{0}', space=vmem, size = 0x4000, scoped, tag = 'input window, operand 4, single buffered']
    #allocation11 [shape = 'u8[8192]{0}', space=vmem, size = 0x2000, scoped, tag = 'output window, operand 0']
    %10 = vsyncpa [#allocation3], 0
    %s11 = scalar_lea.sflag [#allocation3], 1
    %12 = vsyncpa %s11, 0
    %13 = vsyncpa [#allocation6], 0
    %14 = vsyncpa [#allocation9], 0
    %15 = vsyncpa [#allocation4], 0
    %s16 = scalar_lea.sflag [#allocation4], 1
    %17 = vsyncpa %s16, 0
    loop: start=0, step=1, limit=4
    $region2: #{tpu_custom_call.1} parent=1 // loop_pre_header
      _
    $region3: #{tpu_custom_call.1} parent=1 // loop_header
      %s19 = sphi 0, %s23
      %p20 = scmp.ge.s32.totalorder %s19, 4
      %s29 = sphi 0, %s31
      %s32 = sphi 0, %s29
      %s33 = sphi 0, %s32
      %s49 = sphi 0, %s33
      %s53 = sphi 0, %s53
      %s55 = sphi 0, %s53
      %s56 = sphi 0, %s55
      %s70 = sphi 0, %s56
      %s74 = sphi 0, %s74
      %s76 = sphi 0, %s74
      %s77 = sphi 0, %s76
      %s91 = sphi 0, %s77
      %s95 = sphi 0, %s95
      %s97 = sphi 0, %s95
      %s98 = sphi 0, %s97
      %s112 = sphi 0, %s98
      %s116 = sphi 0, %s116
      %s118 = sphi 0, %s116
      %s119 = sphi 0, %s118
      %s133 = sphi 0, %s119
      %s139 = sphi 0, %s141
      %s142 = sphi 0, %s139
      %s143 = sphi 0, %s142
      %s159 = sphi 0, %s143
    $region4: #{tpu_custom_call.1} parent=1 // loop_header_branch
      %22 = sbr.rel (%p20) target = $region8
    $region5: #{tpu_custom_call.1} parent=1 // loop_body
      %s24 = ssub.s32 %s19, 1
      %s25 = ssub.s32 %s19, 2
      %s26 = sadd.s32 %s19, 1
      %s27 = ssub.s32 %s19, %s26
      %p28 = scmp.eq.s32.totalorder %s27, 0
      %s30 = sadd.s32 %s29, 1
      %s31 = scalar_select %p28, %s29, %s30
      %p34 = pneg %p28
      %p35 = scmp.eq.s32.totalorder %s19, 1
      %p36 = por %p34, %p35
      %p37 = scmp.ne.s32.totalorder %s29, %s32
      %p38 = scmp.eq.s32.totalorder %s19, 0
      %p39 = por %p37, %p38
      %p40 = scmp.ne.s32.totalorder %s29, %s32
      %p41 = scmp.eq.s32.totalorder %s24, 1
      %p42 = por %p40, %p41
      %p43 = scmp.ne.s32.totalorder %s32, %s33
      %p44 = scmp.eq.s32.totalorder %s24, 0
      %p45 = por %p43, %p44
      %p46 = scmp.ne.s32.totalorder %s32, %s33
      %p47 = scmp.eq.s32.totalorder %s25, 1
      %p48 = por %p46, %p47
      %p50 = scmp.ne.s32.totalorder %s33, %s49
      %p51 = scmp.eq.s32.totalorder %s25, 0
      %p52 = por %p50, %p51
      %s54 = sadd.s32 %s53, 1
      %p57 = scmp.eq.s32.totalorder %s19, 1
      %p58 = scmp.ne.s32.totalorder %s53, %s55
      %p59 = scmp.eq.s32.totalorder %s19, 0
      %p60 = por %p58, %p59
      %p61 = scmp.ne.s32.totalorder %s53, %s55
      %p62 = scmp.eq.s32.totalorder %s24, 1
      %p63 = por %p61, %p62
      %p64 = scmp.ne.s32.totalorder %s55, %s56
      %p65 = scmp.eq.s32.totalorder %s24, 0
      %p66 = por %p64, %p65
      %p67 = scmp.ne.s32.totalorder %s55, %s56
      %p68 = scmp.eq.s32.totalorder %s25, 1
      %p69 = por %p67, %p68
      %p71 = scmp.ne.s32.totalorder %s56, %s70
      %p72 = scmp.eq.s32.totalorder %s25, 0
      %p73 = por %p71, %p72
      %s75 = sadd.s32 %s74, 1
      %p78 = scmp.eq.s32.totalorder %s19, 1
      %p79 = scmp.ne.s32.totalorder %s74, %s76
      %p80 = scmp.eq.s32.totalorder %s19, 0
      %p81 = por %p79, %p80
      %p82 = scmp.ne.s32.totalorder %s74, %s76
      %p83 = scmp.eq.s32.totalorder %s24, 1
      %p84 = por %p82, %p83
      %p85 = scmp.ne.s32.totalorder %s76, %s77
      %p86 = scmp.eq.s32.totalorder %s24, 0
      %p87 = por %p85, %p86
      %p88 = scmp.ne.s32.totalorder %s76, %s77
      %p89 = scmp.eq.s32.totalorder %s25, 1
      %p90 = por %p88, %p89
      %p92 = scmp.ne.s32.totalorder %s77, %s91
      %p93 = scmp.eq.s32.totalorder %s25, 0
      %p94 = por %p92, %p93
      %s96 = sadd.s32 %s95, 1
      %p99 = scmp.eq.s32.totalorder %s19, 1
      %p100 = scmp.ne.s32.totalorder %s95, %s97
      %p101 = scmp.eq.s32.totalorder %s19, 0
      %p102 = por %p100, %p101
      %p103 = scmp.ne.s32.totalorder %s95, %s97
      %p104 = scmp.eq.s32.totalorder %s24, 1
      %p105 = por %p103, %p104
      %p106 = scmp.ne.s32.totalorder %s97, %s98
      %p107 = scmp.eq.s32.totalorder %s24, 0
      %p108 = por %p106, %p107
      %p109 = scmp.ne.s32.totalorder %s97, %s98
      %p110 = scmp.eq.s32.totalorder %s25, 1
      %p111 = por %p109, %p110
      %p113 = scmp.ne.s32.totalorder %s98, %s112
      %p114 = scmp.eq.s32.totalorder %s25, 0
      %p115 = por %p113, %p114
      %s117 = sadd.s32 %s116, 1
      %p120 = scmp.eq.s32.totalorder %s19, 1
      %p121 = scmp.ne.s32.totalorder %s116, %s118
      %p122 = scmp.eq.s32.totalorder %s19, 0
      %p123 = por %p121, %p122
      %p124 = scmp.ne.s32.totalorder %s116, %s118
      %p125 = scmp.eq.s32.totalorder %s24, 1
      %p126 = por %p124, %p125
      %p127 = scmp.ne.s32.totalorder %s118, %s119
      %p128 = scmp.eq.s32.totalorder %s24, 0
      %p129 = por %p127, %p128
      %p130 = scmp.ne.s32.totalorder %s118, %s119
      %p131 = scmp.eq.s32.totalorder %s25, 1
      %p132 = por %p130, %p131
      %p134 = scmp.ne.s32.totalorder %s119, %s133
      %p135 = scmp.eq.s32.totalorder %s25, 0
      %p136 = por %p134, %p135
      %s137 = ssub.s32 %s19, %s26
      %p138 = scmp.eq.s32.totalorder %s137, 0
      %s140 = sadd.s32 %s139, 1
      %s141 = scalar_select %p138, %s139, %s140
      %p144 = pneg %p138
      %p145 = scmp.eq.s32.totalorder %s19, 1
      %p146 = por %p144, %p145
      %p147 = scmp.ne.s32.totalorder %s139, %s142
      %p148 = scmp.eq.s32.totalorder %s19, 0
      %p149 = por %p147, %p148
      %p150 = scmp.ne.s32.totalorder %s139, %s142
      %p151 = scmp.eq.s32.totalorder %s24, 1
      %p152 = por %p150, %p151
      %p153 = scmp.ne.s32.totalorder %s142, %s143
      %p154 = scmp.eq.s32.totalorder %s24, 0
      %p155 = por %p153, %p154
      %p156 = scmp.ne.s32.totalorder %s142, %s143
      %p157 = scmp.eq.s32.totalorder %s25, 1
      %p158 = por %p156, %p157
      %p160 = scmp.ne.s32.totalorder %s143, %s159
      %p161 = scmp.eq.s32.totalorder %s25, 0
      %p162 = por %p160, %p161
      %p163 = scmp.le.s32.totalorder 1, %s19
      %p164 = scmp.lt.s32.totalorder %s19, 3
      %p165 = pnand %p163, %p164
      %p166 = pneg %p165
      // Predicated region
      $region9: #{tpu_custom_call.1} parent=5 // pred_check
        _
      $region10: #{tpu_custom_call.1} parent=5 // pred_check_branch
        %168 = sbr.rel (%p165) target = $region12
      $region11: #{tpu_custom_call.1} parent=5 // pred_region
        %s169 = ssub.s32 %s19, 1
        // Predicated region
        $region13: #{tpu_custom_call.1} parent=11 // pred_check
          %p170 = pneg %p66
        $region14: #{tpu_custom_call.1} parent=11 // pred_check_branch
          %172 = sbr.rel (%p170) target = $region16
        $region15: #{tpu_custom_call.1} parent=11 // pred_region
          %174 = vsyncadd [#allocation6], 0
          %s176 = sshll.u32 %s1, 4
          %s177 = int_to_ptr.hbm [resolvable:$true] %s176
          %s178 = sshll.u32 [#allocation5], 4
          %s179 = int_to_ptr.vmem [resolvable:$true] %s178
          %181 = dma.hbm_to_vmem [thread:$0]  %s177, 64, %s179, [#allocation6]
        $region16: #{tpu_custom_call.1} parent=11 // pred_fallthru
          _
        // Predicated region
        $region17: #{tpu_custom_call.1} parent=11 // pred_check
          %p182 = pneg %p87
        $region18: #{tpu_custom_call.1} parent=11 // pred_check_branch
          %184 = sbr.rel (%p182) target = $region20
        $region19: #{tpu_custom_call.1} parent=11 // pred_region
          %186 = vsyncadd [#allocation6], 0
          %s188 = sshll.u32 %s2, 4
          %s189 = int_to_ptr.hbm [resolvable:$true] %s188
          %s190 = sshll.u32 [#allocation7], 4
          %s191 = int_to_ptr.vmem [resolvable:$true] %s190
          %193 = dma.hbm_to_vmem [thread:$0]  %s189, 64, %s191, [#allocation6]
        $region20: #{tpu_custom_call.1} parent=11 // pred_fallthru
          _
        // Predicated region
        $region21: #{tpu_custom_call.1} parent=11 // pred_check
          %p194 = pneg %p108
        $region22: #{tpu_custom_call.1} parent=11 // pred_check_branch
          %196 = sbr.rel (%p194) target = $region24
        $region23: #{tpu_custom_call.1} parent=11 // pred_region
          %198 = vsyncadd [#allocation9], 0
          %s200 = sshll.u32 %s3, 4
          %s201 = int_to_ptr.hbm [resolvable:$true] %s200
          %s202 = sshll.u32 [#allocation8], 4
          %s203 = int_to_ptr.vmem [resolvable:$true] %s202
          %205 = dma.hbm_to_vmem [thread:$0]  %s201, 128, %s203, [#allocation9]
        $region24: #{tpu_custom_call.1} parent=11 // pred_fallthru
          _
        // Predicated region
        $region25: #{tpu_custom_call.1} parent=11 // pred_check
          %p206 = pneg %p129
        $region26: #{tpu_custom_call.1} parent=11 // pred_check_branch
          %208 = sbr.rel (%p206) target = $region28
        $region27: #{tpu_custom_call.1} parent=11 // pred_region
          %210 = vsyncadd [#allocation9], 0
          %s211 = sshll.u32 %s4, 4
          %s212 = int_to_ptr.hbm [resolvable:$true] %s211
          %s213 = sshll.u32 [#allocation10], 4
          %s214 = int_to_ptr.vmem [resolvable:$true] %s213
          %219 = dma.hbm_to_vmem [thread:$0]  %s212, 512, %s214, [#allocation9], 256, 256, 16
        $region28: #{tpu_custom_call.1} parent=11 // pred_fallthru
          _
      $region12: #{tpu_custom_call.1} parent=5 // pred_fallthru
        _
      %p220 = scmp.lt.s32.totalorder %s19, 2
      // Predicated region
      $region29: #{tpu_custom_call.1} parent=5 // pred_check
        %p221 = pneg %p220
      $region30: #{tpu_custom_call.1} parent=5 // pred_check_branch
        %223 = sbr.rel (%p221) target = $region32
      $region31: #{tpu_custom_call.1} parent=5 // pred_region
        // Predicated region
        $region33: #{tpu_custom_call.1} parent=31 // pred_check
          %p224 = pneg %p39
        $region34: #{tpu_custom_call.1} parent=31 // pred_check_branch
          %226 = sbr.rel (%p224) target = $region36
        $region35: #{tpu_custom_call.1} parent=31 // pred_region
          %s227 = sand.u32 %s29, 1
          %s228 = scalar_lea.sflag [#allocation3], %s227
          %s229 = sand.u32 %s29, 1
          %s230 = smul.addr %s229, 8
          %s231 = scalar_lea.vmem [#allocation2], %s230
          %233 = vsyncadd %s228, 0
          %s234 = smul.addr %s19, 2
          %s235 = smul.addr %s234, 4
          %s236 = scalar_lea.hbm %s0, %s235
          %s238 = sshll.u32 %s236, 4
          %s239 = int_to_ptr.hbm [resolvable:$true] %s238
          %s240 = sshll.u32 %s231, 4
          %s241 = int_to_ptr.vmem [resolvable:$true] %s240
          %243 = dma.hbm_to_vmem [thread:$0]  %s239, 128, %s241, %s228
        $region36: #{tpu_custom_call.1} parent=31 // pred_fallthru
          _
      $region32: #{tpu_custom_call.1} parent=5 // pred_fallthru
        _
      %p244 = scmp.le.s32.totalorder 1, %s19
      %p245 = scmp.lt.s32.totalorder %s19, 3
      %p246 = pnand %p244, %p245
      %p247 = pneg %p246
      // Predicated region
      $region37: #{tpu_custom_call.1} parent=5 // pred_check
        _
      $region38: #{tpu_custom_call.1} parent=5 // pred_check_branch
        %249 = sbr.rel (%p246) target = $region40
      $region39: #{tpu_custom_call.1} parent=5 // pred_region
        %s250 = ssub.s32 %s19, 1
        %s251 = sand.u32 %s32, 1
        %s252 = scalar_lea.sflag [#allocation3], %s251
        %s253 = sand.u32 %s32, 1
        %s254 = smul.addr %s253, 8
        %s255 = scalar_lea.vmem [#allocation2], %s254
        // Predicated region
        $region41: #{tpu_custom_call.1} parent=39 // pred_check
          %p256 = pneg %p45
        $region42: #{tpu_custom_call.1} parent=39 // pred_check_branch
          %258 = sbr.rel (%p256) target = $region44
        $region43: #{tpu_custom_call.1} parent=39 // pred_region
          %260 = dma.done %s252, 128
        $region44: #{tpu_custom_call.1} parent=39 // pred_fallthru
          _
        // Predicated region
        $region45: #{tpu_custom_call.1} parent=39 // pred_check
          %p261 = pneg %p66
        $region46: #{tpu_custom_call.1} parent=39 // pred_check_branch
          %263 = sbr.rel (%p261) target = $region48
        $region47: #{tpu_custom_call.1} parent=39 // pred_region
          %265 = dma.done [#allocation6], 64
        $region48: #{tpu_custom_call.1} parent=39 // pred_fallthru
          _
        // Predicated region
        $region49: #{tpu_custom_call.1} parent=39 // pred_check
          %p266 = pneg %p87
        $region50: #{tpu_custom_call.1} parent=39 // pred_check_branch
          %268 = sbr.rel (%p266) target = $region52
        $region51: #{tpu_custom_call.1} parent=39 // pred_region
          %270 = dma.done [#allocation6], 64
        $region52: #{tpu_custom_call.1} parent=39 // pred_fallthru
          _
        // Predicated region
        $region53: #{tpu_custom_call.1} parent=39 // pred_check
          %p271 = pneg %p108
        $region54: #{tpu_custom_call.1} parent=39 // pred_check_branch
          %273 = sbr.rel (%p271) target = $region56
        $region55: #{tpu_custom_call.1} parent=39 // pred_region
          %275 = dma.done [#allocation9], 128
        $region56: #{tpu_custom_call.1} parent=39 // pred_fallthru
          _
        // Predicated region
        $region57: #{tpu_custom_call.1} parent=39 // pred_check
          %p276 = pneg %p129
        $region58: #{tpu_custom_call.1} parent=39 // pred_check_branch
          %278 = sbr.rel (%p276) target = $region60
        $region59: #{tpu_custom_call.1} parent=39 // pred_region
          %280 = dma.done [#allocation9], 512
        $region60: #{tpu_custom_call.1} parent=39 // pred_fallthru
          _
        %s281 = sand.u32 %s32, 1
        %s282 = scalar_lea.sflag [#allocation3], %s281
        %s283 = sand.u32 %s32, 1
        %s284 = smul.addr %s283, 8
        %s285 = scalar_lea.vmem [#allocation2], %s284
        %p286 = pneg %p45
        %p287 = pneg %p42
        %p288 = pneg %p66
        %p289 = pneg %p63
        %p290 = pneg %p87
        %p291 = pneg %p84
        %p292 = pneg %p108
        %p293 = pneg %p105
        %p294 = pneg %p129
        %p295 = pneg %p126
        %p296 = pneg %p155
        %p297 = pneg %p152
        %s298 = sand.u32 %s142, 1
        %s299 = scalar_lea.sflag [#allocation4], %s298
        %s300 = sand.u32 %s142, 1
        %s301 = smul.addr %s300, 8
        %s302 = scalar_lea.vmem [#allocation11], %s301
        %v303 = vld [vmem:[%s255] sm:$0xff]
        %v304 = vld [vmem:[#allocation5] sm:$0xf]
        %v305 = vld [vmem:[#allocation7] sm:$0xf]
        %v306 = vld [vmem:[#allocation8] sm:$0xff]
        %v307 = vld [vmem:[#allocation10] sm:$0xff]
        %v308 = vld [vmem:[#allocation10 + $0x8] sm:$0xff]
        %v309 = vld [vmem:[#allocation10 + $0x10] sm:$0x1]
        %v310 = vld [vmem:[#allocation10 + $0x18] sm:$0x1]
        %312 = vst [vmem:[#allocation1] ss:$2 sm:$0xff] %v303
        %v313 = vld.sshfl [vmem:[#allocation1 + $0x8] sm:$0xff pattern:$0x75316420]
        %314 = vrot.lane.b32.xlu0 %v313, 17
        %v315 = vpop.permute.xlu0 %314
        %317 = vst [vmem:[#allocation1] ss:$2 sm:$0xff] %v303
        %v318 = vld.sshfl [vmem:[#allocation1] sm:$0xff pattern:$0x75316420]
        %v319 = vld.sshfl [vmem:[#allocation1 + $0x8] sm:$0xff pattern:$0x75316420]
        %320 = vrot.lane.b32.xlu0 %v318, 17
        %v321 = vpop.permute.xlu0 %320
        %322 = vrot.lane.b32.xlu0 %v319, 17
        %v323 = vpop.permute.xlu0 %322
        %vm324 = vcmask 138240
        %v325 = vsel %vm324, %v321, %v323
        %v328 = vsel %vm324, %v315, %v321
        %v329 = vperm.slane %v307, 0
        %v330 = vperm.slane %v308, 0
        %v331 = vmul.f32 %v328, %v329
        %v332 = vmul.f32 %v325, %v330
        %334 = vset.pattern.permute.xlu0 0
        %335 = vperm.xlu0 %334, %v304
        %v336 = vpop.permute.xlu0 %335
        %v338 = vperm.slane %v331, 0
        %v339 = vperm.slane %v332, 0
        %v340 = vmul.f32 %v336, %v338
        %v341 = vmul.f32 %v336, %v339
        %v342 = vadd.f32 %v340, 0.0
        %v343 = vadd.f32 %v341, 0.0
        %344 = vset.pattern.permute.xlu0 1
        %345 = vperm.xlu0 %344, %v304
        %v346 = vpop.permute.xlu0 %345
        %v348 = vperm.slane %v331, 1
        %v349 = vperm.slane %v332, 1
        %v350 = vmul.f32 %v346, %v348
        %v351 = vmul.f32 %v346, %v349
        %v352 = vadd.f32 %v342, %v350
        %v353 = vadd.f32 %v343, %v351
        %354 = vset.pattern.permute.xlu0 2
        %355 = vperm.xlu0 %354, %v304
        %v356 = vpop.permute.xlu0 %355
        %v358 = vperm.slane %v331, 2
        %v359 = vperm.slane %v332, 2
        %v360 = vmul.f32 %v356, %v358
        %v361 = vmul.f32 %v356, %v359
        %v362 = vadd.f32 %v352, %v360
        %v363 = vadd.f32 %v353, %v361
        %364 = vset.pattern.permute.xlu0 3
        %365 = vperm.xlu0 %364, %v304
        %v366 = vpop.permute.xlu0 %365
        %v368 = vperm.slane %v331, 3
        %v369 = vperm.slane %v332, 3
        %v370 = vmul.f32 %v366, %v368
        %v371 = vmul.f32 %v366, %v369
        %v372 = vadd.f32 %v362, %v370
        %v373 = vadd.f32 %v363, %v371
        %374 = vst [vmem:[#allocation1] ss:$2 sm:$0xff] %v303
        %v375 = vld.sshfl [vmem:[#allocation1 + $0x8] sm:$0xff pattern:$0x75316420]
        %376 = vrot.lane.b32.xlu0 %v375, 16
        %v377 = vpop.permute.xlu0 %376
        %379 = vst [vmem:[#allocation1] ss:$2 sm:$0xff] %v303
        %v380 = vld.sshfl [vmem:[#allocation1] sm:$0xff pattern:$0x75316420]
        %v381 = vld.sshfl [vmem:[#allocation1 + $0x8] sm:$0xff pattern:$0x75316420]
        %382 = vrot.lane.b32.xlu0 %v380, 16
        %v383 = vpop.permute.xlu0 %382
        %384 = vrot.lane.b32.xlu0 %v381, 16
        %v385 = vpop.permute.xlu0 %384
        %vm386 = vcmask 130048
        %v387 = vsel %vm386, %v383, %v385
        %v390 = vsel %vm386, %v377, %v383
        %v391 = vperm.slane %v307, 1
        %v392 = vperm.slane %v308, 1
        %v393 = vmul.f32 %v390, %v391
        %v394 = vmul.f32 %v387, %v392
        %395 = vset.pattern.permute.xlu0 4
        %396 = vperm.xlu0 %395, %v304
        %v397 = vpop.permute.xlu0 %396
        %v399 = vperm.slane %v393, 0
        %v400 = vperm.slane %v394, 0
        %v401 = vmul.f32 %v397, %v399
        %v402 = vmul.f32 %v397, %v400
        %v403 = vadd.f32 %v372, %v401
        %v404 = vadd.f32 %v373, %v402
        %405 = vset.pattern.permute.xlu0 5
        %406 = vperm.xlu0 %405, %v304
        %v407 = vpop.permute.xlu0 %406
        %v409 = vperm.slane %v393, 1
        %v410 = vperm.slane %v394, 1
        %v411 = vmul.f32 %v407, %v409
        %v412 = vmul.f32 %v407, %v410
        %v413 = vadd.f32 %v403, %v411
        %v414 = vadd.f32 %v404, %v412
        %415 = vset.pattern.permute.xlu0 6
        %416 = vperm.xlu0 %415, %v304
        %v417 = vpop.permute.xlu0 %416
        %v419 = vperm.slane %v393, 2
        %v420 = vperm.slane %v394, 2
        %v421 = vmul.f32 %v417, %v419
        %v422 = vmul.f32 %v417, %v420
        %v423 = vadd.f32 %v413, %v421
        %v424 = vadd.f32 %v414, %v422
        %425 = vset.pattern.permute.xlu0 7
        %426 = vperm.xlu0 %425, %v304
        %v427 = vpop.permute.xlu0 %426
        %v429 = vperm.slane %v393, 3
        %v430 = vperm.slane %v394, 3
        %v431 = vmul.f32 %v427, %v429
        %v432 = vmul.f32 %v427, %v430
        %v433 = vadd.f32 %v423, %v431
        %v434 = vadd.f32 %v424, %v432
        %435 = vst [vmem:[#allocation1] ss:$2 sm:$0xff] %v303
        %v436 = vld.sshfl [vmem:[#allocation1 + $0x8] sm:$0xff pattern:$0x75316420]
        %437 = vrot.lane.b32.xlu0 %v436, 15
        %v438 = vpop.permute.xlu0 %437
        %440 = vst [vmem:[#allocation1] ss:$2 sm:$0xff] %v303
        %v441 = vld.sshfl [vmem:[#allocation1] sm:$0xff pattern:$0x75316420]
        %v442 = vld.sshfl [vmem:[#allocation1 + $0x8] sm:$0xff pattern:$0x75316420]
        %443 = vrot.lane.b32.xlu0 %v441, 15
        %v444 = vpop.permute.xlu0 %443
        %445 = vrot.lane.b32.xlu0 %v442, 15
        %v446 = vpop.permute.xlu0 %445
        %vm447 = vcmask 121856
        %v448 = vsel %vm447, %v444, %v446
        %v451 = vsel %vm447, %v438, %v444
        %v452 = vperm.slane %v307, 2
        %v453 = vperm.slane %v308, 2
        %v454 = vmul.f32 %v451, %v452
        %v455 = vmul.f32 %v448, %v453
        %456 = vset.pattern.permute.xlu0 8
        %457 = vperm.xlu0 %456, %v304
        %v458 = vpop.permute.xlu0 %457
        %v460 = vperm.slane %v454, 0
        %v461 = vperm.slane %v455, 0
        %v462 = vmul.f32 %v458, %v460
        %v463 = vmul.f32 %v458, %v461
        %v464 = vadd.f32 %v433, %v462
        %v465 = vadd.f32 %v434, %v463
        %466 = vset.pattern.permute.xlu0 9
        %467 = vperm.xlu0 %466, %v304
        %v468 = vpop.permute.xlu0 %467
        %v470 = vperm.slane %v454, 1
        %v471 = vperm.slane %v455, 1
        %v472 = vmul.f32 %v468, %v470
        %v473 = vmul.f32 %v468, %v471
        %v474 = vadd.f32 %v464, %v472
        %v475 = vadd.f32 %v465, %v473
        %476 = vset.pattern.permute.xlu0 10
        %477 = vperm.xlu0 %476, %v304
        %v478 = vpop.permute.xlu0 %477
        %v480 = vperm.slane %v454, 2
        %v481 = vperm.slane %v455, 2
        %v482 = vmul.f32 %v478, %v480
        %v483 = vmul.f32 %v478, %v481
        %v484 = vadd.f32 %v474, %v482
        %v485 = vadd.f32 %v475, %v483
        %486 = vset.pattern.permute.xlu0 11
        %487 = vperm.xlu0 %486, %v304
        %v488 = vpop.permute.xlu0 %487
        %v490 = vperm.slane %v454, 3
        %v491 = vperm.slane %v455, 3
        %v492 = vmul.f32 %v488, %v490
        %v493 = vmul.f32 %v488, %v491
        %v494 = vadd.f32 %v484, %v492
        %v495 = vadd.f32 %v485, %v493
        %496 = vst [vmem:[#allocation1] ss:$2 sm:$0xff] %v303
        %v497 = vld.sshfl [vmem:[#allocation1 + $0x8] sm:$0xff pattern:$0x75316420]
        %498 = vrot.lane.b32.xlu0 %v497, 1
        %v499 = vpop.permute.xlu0 %498
        %501 = vst [vmem:[#allocation1] ss:$2 sm:$0xff] %v303
        %v502 = vld.sshfl [vmem:[#allocation1] sm:$0xff pattern:$0x75316420]
        %v503 = vld.sshfl [vmem:[#allocation1 + $0x8] sm:$0xff pattern:$0x75316420]
        %504 = vrot.lane.b32.xlu0 %v502, 1
        %v505 = vpop.permute.xlu0 %504
        %506 = vrot.lane.b32.xlu0 %v503, 1
        %v507 = vpop.permute.xlu0 %506
        %vm508 = vcmask 7168
        %v509 = vsel %vm508, %v505, %v507
        %v512 = vsel %vm508, %v499, %v505
        %v513 = vperm.slane %v307, 3
        %v514 = vperm.slane %v308, 3
        %v515 = vmul.f32 %v512, %v513
        %v516 = vmul.f32 %v509, %v514
        %517 = vset.pattern.permute.xlu0 12
        %518 = vperm.xlu0 %517, %v304
        %v519 = vpop.permute.xlu0 %518
        %v521 = vperm.slane %v515, 0
        %v522 = vperm.slane %v516, 0
        %v523 = vmul.f32 %v519, %v521
        %v524 = vmul.f32 %v519, %v522
        %v525 = vadd.f32 %v494, %v523
        %v526 = vadd.f32 %v495, %v524
        %527 = vset.pattern.permute.xlu0 13
        %528 = vperm.xlu0 %527, %v304
        %v529 = vpop.permute.xlu0 %528
        %v531 = vperm.slane %v515, 1
        %v532 = vperm.slane %v516, 1
        %v533 = vmul.f32 %v529, %v531
        %v534 = vmul.f32 %v529, %v532
        %v535 = vadd.f32 %v525, %v533
        %v536 = vadd.f32 %v526, %v534
        %537 = vset.pattern.permute.xlu0 14
        %538 = vperm.xlu0 %537, %v304
        %v539 = vpop.permute.xlu0 %538
        %v541 = vperm.slane %v515, 2
        %v542 = vperm.slane %v516, 2
        %v543 = vmul.f32 %v539, %v541
        %v544 = vmul.f32 %v539, %v542
        %v545 = vadd.f32 %v535, %v543
        %v546 = vadd.f32 %v536, %v544
        %547 = vset.pattern.permute.xlu0 15
        %548 = vperm.xlu0 %547, %v304
        %v549 = vpop.permute.xlu0 %548
        %v551 = vperm.slane %v515, 3
        %v552 = vperm.slane %v516, 3
        %v553 = vmul.f32 %v549, %v551
        %v554 = vmul.f32 %v549, %v552
        %v555 = vadd.f32 %v545, %v553
        %v556 = vadd.f32 %v546, %v554
        %v557 = vperm.slane %v307, 4
        %v558 = vperm.slane %v308, 4
        %v561 = vrot.slane %v558, 4
        %vm562 = vcmask 1043456
        %v563 = vsel %vm562, %v557, %v561
        %v565 = vmul.f32 %v303, %v563
        %566 = vset.pattern.permute.xlu0 16
        %567 = vperm.xlu0 %566, %v304
        %v568 = vpop.permute.xlu0 %567
        %v571 = vperm.slane %v565, 0
        %v572 = vperm.slane %v565, 4
        %v575 = vperm.slane %v571, 0
        %v576 = vperm.slane %v572, 0
        %v577 = vmul.f32 %v568, %v575
        %v578 = vmul.f32 %v568, %v576
        %v579 = vadd.f32 %v555, %v577
        %v580 = vadd.f32 %v556, %v578
        %581 = vset.pattern.permute.xlu0 17
        %582 = vperm.xlu0 %581, %v304
        %v583 = vpop.permute.xlu0 %582
        %v585 = vperm.slane %v565, 1
        %v586 = vperm.slane %v565, 5
        %v589 = vperm.slane %v585, 1
        %v590 = vperm.slane %v586, 1
        %v591 = vmul.f32 %v583, %v589
        %v592 = vmul.f32 %v583, %v590
        %v593 = vadd.f32 %v579, %v591
        %v594 = vadd.f32 %v580, %v592
        %595 = vset.pattern.permute.xlu0 18
        %596 = vperm.xlu0 %595, %v304
        %v597 = vpop.permute.xlu0 %596
        %v599 = vperm.slane %v565, 2
        %v600 = vperm.slane %v565, 6
        %v603 = vperm.slane %v599, 2
        %v604 = vperm.slane %v600, 2
        %v605 = vmul.f32 %v597, %v603
        %v606 = vmul.f32 %v597, %v604
        %v607 = vadd.f32 %v593, %v605
        %v608 = vadd.f32 %v594, %v606
        %609 = vset.pattern.permute.xlu0 19
        %610 = vperm.xlu0 %609, %v304
        %v611 = vpop.permute.xlu0 %610
        %v613 = vperm.slane %v565, 3
        %v614 = vperm.slane %v565, 7
        %v617 = vperm.slane %v613, 3
        %v618 = vperm.slane %v614, 3
        %v619 = vmul.f32 %v611, %v617
        %v620 = vmul.f32 %v611, %v618
        %v621 = vadd.f32 %v607, %v619
        %v622 = vadd.f32 %v608, %v620
        %623 = vst [vmem:[#allocation1] ss:$2 sm:$0xff] %v303
        %v624 = vld.sshfl [vmem:[#allocation1] sm:$0xff pattern:$0x75316420]
        %v625 = vld.sshfl [vmem:[#allocation1 + $0x8] sm:$0xff pattern:$0x75316420]
        %626 = vrot.lane.b32.xlu0 %v624, 127
        %v627 = vpop.permute.xlu0 %626
        %628 = vrot.lane.b32.xlu0 %v625, 127
        %v629 = vpop.permute.xlu0 %628
        %vm630 = vcmask 1039360
        %v631 = vsel %vm630, %v627, %v629
        %634 = vst [vmem:[#allocation1] ss:$2 sm:$0xff] %v303
        %v635 = vld.sshfl [vmem:[#allocation1] sm:$0xff pattern:$0x75316420]
        %636 = vrot.lane.b32.xlu0 %v635, 127
        %v637 = vpop.permute.xlu0 %636
        %v639 = vsel %vm630, %v629, %v637
        %v640 = vperm.slane %v307, 5
        %v641 = vperm.slane %v308, 5
        %v642 = vmul.f32 %v631, %v640
        %v643 = vmul.f32 %v639, %v641
        %644 = vset.pattern.permute.xlu0 20
        %645 = vperm.xlu0 %644, %v304
        %v646 = vpop.permute.xlu0 %645
        %v648 = vperm.slane %v642, 0
        %v649 = vperm.slane %v643, 0
        %v650 = vmul.f32 %v646, %v648
        %v651 = vmul.f32 %v646, %v649
        %v652 = vadd.f32 %v621, %v650
        %v653 = vadd.f32 %v622, %v651
        %654 = vset.pattern.permute.xlu0 21
        %655 = vperm.xlu0 %654, %v304
        %v656 = vpop.permute.xlu0 %655
        %v658 = vperm.slane %v642, 1
        %v659 = vperm.slane %v643, 1
        %v660 = vmul.f32 %v656, %v658
        %v661 = vmul.f32 %v656, %v659
        %v662 = vadd.f32 %v652, %v660
        %v663 = vadd.f32 %v653, %v661
        %664 = vset.pattern.permute.xlu0 22
        %665 = vperm.xlu0 %664, %v304
        %v666 = vpop.permute.xlu0 %665
        %v668 = vperm.slane %v642, 2
        %v669 = vperm.slane %v643, 2
        %v670 = vmul.f32 %v666, %v668
        %v671 = vmul.f32 %v666, %v669
        %v672 = vadd.f32 %v662, %v670
        %v673 = vadd.f32 %v663, %v671
        %674 = vset.pattern.permute.xlu0 23
        %675 = vperm.xlu0 %674, %v304
        %v676 = vpop.permute.xlu0 %675
        %v678 = vperm.slane %v642, 3
        %v679 = vperm.slane %v643, 3
        %v680 = vmul.f32 %v676, %v678
        %v681 = vmul.f32 %v676, %v679
        %v682 = vadd.f32 %v672, %v680
        %v683 = vadd.f32 %v673, %v681
        %684 = vst [vmem:[#allocation1] ss:$2 sm:$0xff] %v303
        %v685 = vld.sshfl [vmem:[#allocation1] sm:$0xff pattern:$0x75316420]
        %v686 = vld.sshfl [vmem:[#allocation1 + $0x8] sm:$0xff pattern:$0x75316420]
        %687 = vrot.lane.b32.xlu0 %v685, 113
        %v688 = vpop.permute.xlu0 %687
        %689 = vrot.lane.b32.xlu0 %v686, 113
        %v690 = vpop.permute.xlu0 %689
        %vm691 = vcmask 924672
        %v692 = vsel %vm691, %v688, %v690
        %695 = vst [vmem:[#allocation1] ss:$2 sm:$0xff] %v303
        %v696 = vld.sshfl [vmem:[#allocation1] sm:$0xff pattern:$0x75316420]
        %697 = vrot.lane.b32.xlu0 %v696, 113
        %v698 = vpop.permute.xlu0 %697
        %v700 = vsel %vm691, %v690, %v698
        %v701 = vperm.slane %v307, 6
        %v702 = vperm.slane %v308, 6
        %v703 = vmul.f32 %v692, %v701
        %v704 = vmul.f32 %v700, %v702
        %705 = vset.pattern.permute.xlu0 24
        %706 = vperm.xlu0 %705, %v304
        %v707 = vpop.permute.xlu0 %706
        %v709 = vperm.slane %v703, 0
        %v710 = vperm.slane %v704, 0
        %v711 = vmul.f32 %v707, %v709
        %v712 = vmul.f32 %v707, %v710
        %v713 = vadd.f32 %v682, %v711
        %v714 = vadd.f32 %v683, %v712
        %715 = vset.pattern.permute.xlu0 25
        %716 = vperm.xlu0 %715, %v304
        %v717 = vpop.permute.xlu0 %716
        %v719 = vperm.slane %v703, 1
        %v720 = vperm.slane %v704, 1
        %v721 = vmul.f32 %v717, %v719
        %v722 = vmul.f32 %v717, %v720
        %v723 = vadd.f32 %v713, %v721
        %v724 = vadd.f32 %v714, %v722
        %725 = vset.pattern.permute.xlu0 26
        %726 = vperm.xlu0 %725, %v304
        %v727 = vpop.permute.xlu0 %726
        %v729 = vperm.slane %v703, 2
        %v730 = vperm.slane %v704, 2
        %v731 = vmul.f32 %v727, %v729
        %v732 = vmul.f32 %v727, %v730
        %v733 = vadd.f32 %v723, %v731
        %v734 = vadd.f32 %v724, %v732
        %735 = vset.pattern.permute.xlu0 27
        %736 = vperm.xlu0 %735, %v304
        %v737 = vpop.permute.xlu0 %736
        %v739 = vperm.slane %v703, 3
        %v740 = vperm.slane %v704, 3
        %v741 = vmul.f32 %v737, %v739
        %v742 = vmul.f32 %v737, %v740
        %v743 = vadd.f32 %v733, %v741
        %v744 = vadd.f32 %v734, %v742
        %745 = vst [vmem:[#allocation1] ss:$2 sm:$0xff] %v303
        %v746 = vld.sshfl [vmem:[#allocation1] sm:$0xff pattern:$0x75316420]
        %v747 = vld.sshfl [vmem:[#allocation1 + $0x8] sm:$0xff pattern:$0x75316420]
        %748 = vrot.lane.b32.xlu0 %v746, 112
        %v749 = vpop.permute.xlu0 %748
        %750 = vrot.lane.b32.xlu0 %v747, 112
        %v751 = vpop.permute.xlu0 %750
        %vm752 = vcmask 916480
        %v753 = vsel %vm752, %v749, %v751
        %756 = vst [vmem:[#allocation1] ss:$2 sm:$0xff] %v303
        %v757 = vld.sshfl [vmem:[#allocation1] sm:$0xff pattern:$0x75316420]
        %758 = vrot.lane.b32.xlu0 %v757, 112
        %v759 = vpop.permute.xlu0 %758
        %v761 = vsel %vm752, %v751, %v759
        %v762 = vperm.slane %v307, 7
        %v763 = vperm.slane %v308, 7
        %v764 = vmul.f32 %v753, %v762
        %v765 = vmul.f32 %v761, %v763
        %766 = vset.pattern.permute.xlu0 28
        %767 = vperm.xlu0 %766, %v304
        %v768 = vpop.permute.xlu0 %767
        %v770 = vperm.slane %v764, 0
        %v771 = vperm.slane %v765, 0
        %v772 = vmul.f32 %v768, %v770
        %v773 = vmul.f32 %v768, %v771
        %v774 = vadd.f32 %v743, %v772
        %v775 = vadd.f32 %v744, %v773
        %776 = vset.pattern.permute.xlu0 29
        %777 = vperm.xlu0 %776, %v304
        %v778 = vpop.permute.xlu0 %777
        %v780 = vperm.slane %v764, 1
        %v781 = vperm.slane %v765, 1
        %v782 = vmul.f32 %v778, %v780
        %v783 = vmul.f32 %v778, %v781
        %v784 = vadd.f32 %v774, %v782
        %v785 = vadd.f32 %v775, %v783
        %786 = vset.pattern.permute.xlu0 30
        %787 = vperm.xlu0 %786, %v304
        %v788 = vpop.permute.xlu0 %787
        %v790 = vperm.slane %v764, 2
        %v791 = vperm.slane %v765, 2
        %v792 = vmul.f32 %v788, %v790
        %v793 = vmul.f32 %v788, %v791
        %v794 = vadd.f32 %v784, %v792
        %v795 = vadd.f32 %v785, %v793
        %796 = vset.pattern.permute.xlu0 31
        %797 = vperm.xlu0 %796, %v304
        %v798 = vpop.permute.xlu0 %797
        %v800 = vperm.slane %v764, 3
        %v801 = vperm.slane %v765, 3
        %v802 = vmul.f32 %v798, %v800
        %v803 = vmul.f32 %v798, %v801
        %v804 = vadd.f32 %v794, %v802
        %v805 = vadd.f32 %v795, %v803
        %806 = vst [vmem:[#allocation1] ss:$2 sm:$0xff] %v303
        %v807 = vld.sshfl [vmem:[#allocation1] sm:$0xff pattern:$0x75316420]
        %v808 = vld.sshfl [vmem:[#allocation1 + $0x8] sm:$0xff pattern:$0x75316420]
        %809 = vrot.lane.b32.xlu0 %v807, 111
        %v810 = vpop.permute.xlu0 %809
        %811 = vrot.lane.b32.xlu0 %v808, 111
        %v812 = vpop.permute.xlu0 %811
        %vm813 = vcmask 908288
        %v814 = vsel %vm813, %v810, %v812
        %817 = vst [vmem:[#allocation1] ss:$2 sm:$0xff] %v303
        %v818 = vld.sshfl [vmem:[#allocation1] sm:$0xff pattern:$0x75316420]
        %819 = vrot.lane.b32.xlu0 %v818, 111
        %v820 = vpop.permute.xlu0 %819
        %v822 = vsel %vm813, %v812, %v820
        %v823 = vperm.slane %v309, 0
        %v824 = vperm.slane %v310, 0
        %v825 = vmul.f32 %v814, %v823
        %v826 = vmul.f32 %v822, %v824
        %827 = vset.pattern.permute.xlu0 32
        %828 = vperm.xlu0 %827, %v304
        %v829 = vpop.permute.xlu0 %828
        %v831 = vperm.slane %v825, 0
        %v832 = vperm.slane %v826, 0
        %v833 = vmul.f32 %v829, %v831
        %v834 = vmul.f32 %v829, %v832
        %v835 = vadd.f32 %v804, %v833
        %v836 = vadd.f32 %v805, %v834
        %837 = vset.pattern.permute.xlu0 33
        %838 = vperm.xlu0 %837, %v304
        %v839 = vpop.permute.xlu0 %838
        %v841 = vperm.slane %v825, 1
        %v842 = vperm.slane %v826, 1
        %v843 = vmul.f32 %v839, %v841
        %v844 = vmul.f32 %v839, %v842
        %v845 = vadd.f32 %v835, %v843
        %v846 = vadd.f32 %v836, %v844
        %847 = vset.pattern.permute.xlu0 34
        %848 = vperm.xlu0 %847, %v304
        %v849 = vpop.permute.xlu0 %848
        %v851 = vperm.slane %v825, 2
        %v852 = vperm.slane %v826, 2
        %v853 = vmul.f32 %v849, %v851
        %v854 = vmul.f32 %v849, %v852
        %v855 = vadd.f32 %v845, %v853
        %v856 = vadd.f32 %v846, %v854
        %857 = vset.pattern.permute.xlu0 35
        %858 = vperm.xlu0 %857, %v304
        %v859 = vpop.permute.xlu0 %858
        %v861 = vperm.slane %v825, 3
        %v862 = vperm.slane %v826, 3
        %v863 = vmul.f32 %v859, %v861
        %v864 = vmul.f32 %v859, %v862
        %v865 = vadd.f32 %v855, %v863
        %v866 = vadd.f32 %v856, %v864
        %v867 = vsel %vm562, %v865, 0.0
        %v868 = vsel %vm562, %v866, 0.0
        %v869 = vadd.f32 %v867, %v868
        %870 = vadd.xlane.f32.xlu0 %v869
        %v871 = vpop.xlane.xlu0 %870
        %v872 = vmul.f32 %v865, %v865
        %v873 = vmul.f32 %v866, %v866
        %v874 = vsel %vm562, %v872, 0.0
        %v875 = vsel %vm562, %v873, 0.0
        %v876 = vadd.f32 %v874, %v875
        %877 = vadd.xlane.f32.xlu0 %v876
        %v878 = vpop.xlane.xlu0 %877
        %v879 = vmul.f32 %v871, 0.00390625
        %v880 = vmul.f32 %v878, 0.00390625
        %v881 = vmul.f32 %v879, %v879
        %v882 = vsub.f32 %v880, %v881
        %v883 = vsub.f32 %v865, %v879
        %v884 = vsub.f32 %v866, %v879
        %v885 = vadd.f32 %v882, 1e-05
        %v886 = vrsqrt.pop %v885
        %v887 = vmul.f32 %v886, %v885
        %v888 = vmul.f32 %v887, %v886
        %v889 = vmul.f32 0.5, %v888
        %v890 = vsub.f32 1.5, %v889
        %v891 = vmul.f32 %v886, %v890
        %vm892 = vweird.f32 %v885
        %vm893 = vweird.f32 %v886
        %vm894 = vmor %vm892, %vm893
        %v895 = vsel %vm894, %v886, %v891
        %v896 = vmul.f32 %v883, %v895
        %v897 = vmul.f32 %v884, %v895
        %v899 = vperm.slane %v306, 0
        %v900 = vperm.slane %v306, 4
        %v903 = vperm.slane %v899, 0
        %v904 = vperm.slane %v900, 0
        %v905 = vmul.f32 %v896, %v903
        %v906 = vmul.f32 %v897, %v904
        %v907 = vperm.slane %v306, 1
        %v908 = vperm.slane %v306, 5
        %v911 = vperm.slane %v907, 1
        %v912 = vperm.slane %v908, 1
        %v913 = vadd.f32 %v905, %v911
        %v914 = vadd.f32 %v906, %v912
        %v915 = vmax.f32 %v913, 0.0
        %v916 = vmax.f32 %v914, 0.0
        %918 = vrot.lane.b32.xlu0 %v916, 17
        %v919 = vpop.permute.xlu0 %918
        %922 = vrot.lane.b32.xlu0 %v915, 17
        %v923 = vpop.permute.xlu0 %922
        %v924 = vsel %vm324, %v923, %v919
        %v927 = vsel %vm324, %v919, %v923
        %v928 = vmul.f32 %v927, %v329
        %v929 = vmul.f32 %v924, %v330
        %931 = vset.pattern.permute.xlu0 0
        %932 = vperm.xlu0 %931, %v305
        %v933 = vpop.permute.xlu0 %932
        %v935 = vperm.slane %v928, 0
        %v936 = vperm.slane %v929, 0
        %v937 = vmul.f32 %v933, %v935
        %v938 = vmul.f32 %v933, %v936
        %v939 = vadd.f32 %v937, 0.0
        %v940 = vadd.f32 %v938, 0.0
        %941 = vset.pattern.permute.xlu0 1
        %942 = vperm.xlu0 %941, %v305
        %v943 = vpop.permute.xlu0 %942
        %v945 = vperm.slane %v928, 1
        %v946 = vperm.slane %v929, 1
        %v947 = vmul.f32 %v943, %v945
        %v948 = vmul.f32 %v943, %v946
        %v949 = vadd.f32 %v939, %v947
        %v950 = vadd.f32 %v940, %v948
        %951 = vset.pattern.permute.xlu0 2
        %952 = vperm.xlu0 %951, %v305
        %v953 = vpop.permute.xlu0 %952
        %v955 = vperm.slane %v928, 2
        %v956 = vperm.slane %v929, 2
        %v957 = vmul.f32 %v953, %v955
        %v958 = vmul.f32 %v953, %v956
        %v959 = vadd.f32 %v949, %v957
        %v960 = vadd.f32 %v950, %v958
        %961 = vset.pattern.permute.xlu0 3
        %962 = vperm.xlu0 %961, %v305
        %v963 = vpop.permute.xlu0 %962
        %v965 = vperm.slane %v928, 3
        %v966 = vperm.slane %v929, 3
        %v967 = vmul.f32 %v963, %v965
        %v968 = vmul.f32 %v963, %v966
        %v969 = vadd.f32 %v959, %v967
        %v970 = vadd.f32 %v960, %v968
        %971 = vrot.lane.b32.xlu0 %v916, 16
        %v972 = vpop.permute.xlu0 %971
        %974 = vrot.lane.b32.xlu0 %v915, 16
        %v975 = vpop.permute.xlu0 %974
        %v976 = vsel %vm386, %v975, %v972
        %v979 = vsel %vm386, %v972, %v975
        %v980 = vmul.f32 %v979, %v391
        %v981 = vmul.f32 %v976, %v392
        %982 = vset.pattern.permute.xlu0 4
        %983 = vperm.xlu0 %982, %v305
        %v984 = vpop.permute.xlu0 %983
        %v986 = vperm.slane %v980, 0
        %v987 = vperm.slane %v981, 0
        %v988 = vmul.f32 %v984, %v986
        %v989 = vmul.f32 %v984, %v987
        %v990 = vadd.f32 %v969, %v988
        %v991 = vadd.f32 %v970, %v989
        %992 = vset.pattern.permute.xlu0 5
        %993 = vperm.xlu0 %992, %v305
        %v994 = vpop.permute.xlu0 %993
        %v996 = vperm.slane %v980, 1
        %v997 = vperm.slane %v981, 1
        %v998 = vmul.f32 %v994, %v996
        %v999 = vmul.f32 %v994, %v997
        %v1000 = vadd.f32 %v990, %v998
        %v1001 = vadd.f32 %v991, %v999
        %1002 = vset.pattern.permute.xlu0 6
        %1003 = vperm.xlu0 %1002, %v305
        %v1004 = vpop.permute.xlu0 %1003
        %v1006 = vperm.slane %v980, 2
        %v1007 = vperm.slane %v981, 2
        %v1008 = vmul.f32 %v1004, %v1006
        %v1009 = vmul.f32 %v1004, %v1007
        %v1010 = vadd.f32 %v1000, %v1008
        %v1011 = vadd.f32 %v1001, %v1009
        %1012 = vset.pattern.permute.xlu0 7
        %1013 = vperm.xlu0 %1012, %v305
        %v1014 = vpop.permute.xlu0 %1013
        %v1016 = vperm.slane %v980, 3
        %v1017 = vperm.slane %v981, 3
        %v1018 = vmul.f32 %v1014, %v1016
        %v1019 = vmul.f32 %v1014, %v1017
        %v1020 = vadd.f32 %v1010, %v1018
        %v1021 = vadd.f32 %v1011, %v1019
        %1022 = vrot.lane.b32.xlu0 %v916, 15
        %v1023 = vpop.permute.xlu0 %1022
        %1025 = vrot.lane.b32.xlu0 %v915, 15
        %v1026 = vpop.permute.xlu0 %1025
        %v1027 = vsel %vm447, %v1026, %v1023
        %v1030 = vsel %vm447, %v1023, %v1026
        %v1031 = vmul.f32 %v1030, %v452
        %v1032 = vmul.f32 %v1027, %v453
        %1033 = vset.pattern.permute.xlu0 8
        %1034 = vperm.xlu0 %1033, %v305
        %v1035 = vpop.permute.xlu0 %1034
        %v1037 = vperm.slane %v1031, 0
        %v1038 = vperm.slane %v1032, 0
        %v1039 = vmul.f32 %v1035, %v1037
        %v1040 = vmul.f32 %v1035, %v1038
        %v1041 = vadd.f32 %v1020, %v1039
        %v1042 = vadd.f32 %v1021, %v1040
        %1043 = vset.pattern.permute.xlu0 9
        %1044 = vperm.xlu0 %1043, %v305
        %v1045 = vpop.permute.xlu0 %1044
        %v1047 = vperm.slane %v1031, 1
        %v1048 = vperm.slane %v1032, 1
        %v1049 = vmul.f32 %v1045, %v1047
        %v1050 = vmul.f32 %v1045, %v1048
        %v1051 = vadd.f32 %v1041, %v1049
        %v1052 = vadd.f32 %v1042, %v1050
        %1053 = vset.pattern.permute.xlu0 10
        %1054 = vperm.xlu0 %1053, %v305
        %v1055 = vpop.permute.xlu0 %1054
        %v1057 = vperm.slane %v1031, 2
        %v1058 = vperm.slane %v1032, 2
        %v1059 = vmul.f32 %v1055, %v1057
        %v1060 = vmul.f32 %v1055, %v1058
        %v1061 = vadd.f32 %v1051, %v1059
        %v1062 = vadd.f32 %v1052, %v1060
        %1063 = vset.pattern.permute.xlu0 11
        %1064 = vperm.xlu0 %1063, %v305
        %v1065 = vpop.permute.xlu0 %1064
        %v1067 = vperm.slane %v1031, 3
        %v1068 = vperm.slane %v1032, 3
        %v1069 = vmul.f32 %v1065, %v1067
        %v1070 = vmul.f32 %v1065, %v1068
        %v1071 = vadd.f32 %v1061, %v1069
        %v1072 = vadd.f32 %v1062, %v1070
        %1073 = vrot.lane.b32.xlu0 %v916, 1
        %v1074 = vpop.permute.xlu0 %1073
        %1076 = vrot.lane.b32.xlu0 %v915, 1
        %v1077 = vpop.permute.xlu0 %1076
        %v1078 = vsel %vm508, %v1077, %v1074
        %v1081 = vsel %vm508, %v1074, %v1077
        %v1082 = vmul.f32 %v1081, %v513
        %v1083 = vmul.f32 %v1078, %v514
        %1084 = vset.pattern.permute.xlu0 12
        %1085 = vperm.xlu0 %1084, %v305
        %v1086 = vpop.permute.xlu0 %1085
        %v1088 = vperm.slane %v1082, 0
        %v1089 = vperm.slane %v1083, 0
        %v1090 = vmul.f32 %v1086, %v1088
        %v1091 = vmul.f32 %v1086, %v1089
        %v1092 = vadd.f32 %v1071, %v1090
        %v1093 = vadd.f32 %v1072, %v1091
        %1094 = vset.pattern.permute.xlu0 13
        %1095 = vperm.xlu0 %1094, %v305
        %v1096 = vpop.permute.xlu0 %1095
        %v1098 = vperm.slane %v1082, 1
        %v1099 = vperm.slane %v1083, 1
        %v1100 = vmul.f32 %v1096, %v1098
        %v1101 = vmul.f32 %v1096, %v1099
        %v1102 = vadd.f32 %v1092, %v1100
        %v1103 = vadd.f32 %v1093, %v1101
        %1104 = vset.pattern.permute.xlu0 14
        %1105 = vperm.xlu0 %1104, %v305
        %v1106 = vpop.permute.xlu0 %1105
        %v1108 = vperm.slane %v1082, 2
        %v1109 = vperm.slane %v1083, 2
        %v1110 = vmul.f32 %v1106, %v1108
        %v1111 = vmul.f32 %v1106, %v1109
        %v1112 = vadd.f32 %v1102, %v1110
        %v1113 = vadd.f32 %v1103, %v1111
        %1114 = vset.pattern.permute.xlu0 15
        %1115 = vperm.xlu0 %1114, %v305
        %v1116 = vpop.permute.xlu0 %1115
        %v1118 = vperm.slane %v1082, 3
        %v1119 = vperm.slane %v1083, 3
        %v1120 = vmul.f32 %v1116, %v1118
        %v1121 = vmul.f32 %v1116, %v1119
        %v1122 = vadd.f32 %v1112, %v1120
        %v1123 = vadd.f32 %v1113, %v1121
        %v1124 = vmul.f32 %v915, %v557
        %v1125 = vmul.f32 %v916, %v558
        %1126 = vset.pattern.permute.xlu0 16
        %1127 = vperm.xlu0 %1126, %v305
        %v1128 = vpop.permute.xlu0 %1127
        %v1130 = vperm.slane %v1124, 0
        %v1131 = vperm.slane %v1125, 0
        %v1132 = vmul.f32 %v1128, %v1130
        %v1133 = vmul.f32 %v1128, %v1131
        %v1134 = vadd.f32 %v1122, %v1132
        %v1135 = vadd.f32 %v1123, %v1133
        %1136 = vset.pattern.permute.xlu0 17
        %1137 = vperm.xlu0 %1136, %v305
        %v1138 = vpop.permute.xlu0 %1137
        %v1140 = vperm.slane %v1124, 1
        %v1141 = vperm.slane %v1125, 1
        %v1142 = vmul.f32 %v1138, %v1140
        %v1143 = vmul.f32 %v1138, %v1141
        %v1144 = vadd.f32 %v1134, %v1142
        %v1145 = vadd.f32 %v1135, %v1143
        %1146 = vset.pattern.permute.xlu0 18
        %1147 = vperm.xlu0 %1146, %v305
        %v1148 = vpop.permute.xlu0 %1147
        %v1150 = vperm.slane %v1124, 2
        %v1151 = vperm.slane %v1125, 2
        %v1152 = vmul.f32 %v1148, %v1150
        %v1153 = vmul.f32 %v1148, %v1151
        %v1154 = vadd.f32 %v1144, %v1152
        %v1155 = vadd.f32 %v1145, %v1153
        %1156 = vset.pattern.permute.xlu0 19
        %1157 = vperm.xlu0 %1156, %v305
        %v1158 = vpop.permute.xlu0 %1157
        %v1160 = vperm.slane %v1124, 3
        %v1161 = vperm.slane %v1125, 3
        %v1162 = vmul.f32 %v1158, %v1160
        %v1163 = vmul.f32 %v1158, %v1161
        %v1164 = vadd.f32 %v1154, %v1162
        %v1165 = vadd.f32 %v1155, %v1163
        %1166 = vrot.lane.b32.xlu0 %v915, 127
        %v1167 = vpop.permute.xlu0 %1166
        %1168 = vrot.lane.b32.xlu0 %v916, 127
        %v1169 = vpop.permute.xlu0 %1168
        %v1170 = vsel %vm630, %v1167, %v1169
        %v1174 = vsel %vm630, %v1169, %v1167
        %v1175 = vmul.f32 %v1170, %v640
        %v1176 = vmul.f32 %v1174, %v641
        %1177 = vset.pattern.permute.xlu0 20
        %1178 = vperm.xlu0 %1177, %v305
        %v1179 = vpop.permute.xlu0 %1178
        %v1181 = vperm.slane %v1175, 0
        %v1182 = vperm.slane %v1176, 0
        %v1183 = vmul.f32 %v1179, %v1181
        %v1184 = vmul.f32 %v1179, %v1182
        %v1185 = vadd.f32 %v1164, %v1183
        %v1186 = vadd.f32 %v1165, %v1184
        %1187 = vset.pattern.permute.xlu0 21
        %1188 = vperm.xlu0 %1187, %v305
        %v1189 = vpop.permute.xlu0 %1188
        %v1191 = vperm.slane %v1175, 1
        %v1192 = vperm.slane %v1176, 1
        %v1193 = vmul.f32 %v1189, %v1191
        %v1194 = vmul.f32 %v1189, %v1192
        %v1195 = vadd.f32 %v1185, %v1193
        %v1196 = vadd.f32 %v1186, %v1194
        %1197 = vset.pattern.permute.xlu0 22
        %1198 = vperm.xlu0 %1197, %v305
        %v1199 = vpop.permute.xlu0 %1198
        %v1201 = vperm.slane %v1175, 2
        %v1202 = vperm.slane %v1176, 2
        %v1203 = vmul.f32 %v1199, %v1201
        %v1204 = vmul.f32 %v1199, %v1202
        %v1205 = vadd.f32 %v1195, %v1203
        %v1206 = vadd.f32 %v1196, %v1204
        %1207 = vset.pattern.permute.xlu0 23
        %1208 = vperm.xlu0 %1207, %v305
        %v1209 = vpop.permute.xlu0 %1208
        %v1211 = vperm.slane %v1175, 3
        %v1212 = vperm.slane %v1176, 3
        %v1213 = vmul.f32 %v1209, %v1211
        %v1214 = vmul.f32 %v1209, %v1212
        %v1215 = vadd.f32 %v1205, %v1213
        %v1216 = vadd.f32 %v1206, %v1214
        %1217 = vrot.lane.b32.xlu0 %v915, 113
        %v1218 = vpop.permute.xlu0 %1217
        %1219 = vrot.lane.b32.xlu0 %v916, 113
        %v1220 = vpop.permute.xlu0 %1219
        %v1221 = vsel %vm691, %v1218, %v1220
        %v1225 = vsel %vm691, %v1220, %v1218
        %v1226 = vmul.f32 %v1221, %v701
        %v1227 = vmul.f32 %v1225, %v702
        %1228 = vset.pattern.permute.xlu0 24
        %1229 = vperm.xlu0 %1228, %v305
        %v1230 = vpop.permute.xlu0 %1229
        %v1232 = vperm.slane %v1226, 0
        %v1233 = vperm.slane %v1227, 0
        %v1234 = vmul.f32 %v1230, %v1232
        %v1235 = vmul.f32 %v1230, %v1233
        %v1236 = vadd.f32 %v1215, %v1234
        %v1237 = vadd.f32 %v1216, %v1235
        %1238 = vset.pattern.permute.xlu0 25
        %1239 = vperm.xlu0 %1238, %v305
        %v1240 = vpop.permute.xlu0 %1239
        %v1242 = vperm.slane %v1226, 1
        %v1243 = vperm.slane %v1227, 1
        %v1244 = vmul.f32 %v1240, %v1242
        %v1245 = vmul.f32 %v1240, %v1243
        %v1246 = vadd.f32 %v1236, %v1244
        %v1247 = vadd.f32 %v1237, %v1245
        %1248 = vset.pattern.permute.xlu0 26
        %1249 = vperm.xlu0 %1248, %v305
        %v1250 = vpop.permute.xlu0 %1249
        %v1252 = vperm.slane %v1226, 2
        %v1253 = vperm.slane %v1227, 2
        %v1254 = vmul.f32 %v1250, %v1252
        %v1255 = vmul.f32 %v1250, %v1253
        %v1256 = vadd.f32 %v1246, %v1254
        %v1257 = vadd.f32 %v1247, %v1255
        %1258 = vset.pattern.permute.xlu0 27
        %1259 = vperm.xlu0 %1258, %v305
        %v1260 = vpop.permute.xlu0 %1259
        %v1262 = vperm.slane %v1226, 3
        %v1263 = vperm.slane %v1227, 3
        %v1264 = vmul.f32 %v1260, %v1262
        %v1265 = vmul.f32 %v1260, %v1263
        %v1266 = vadd.f32 %v1256, %v1264
        %v1267 = vadd.f32 %v1257, %v1265
        %1268 = vrot.lane.b32.xlu0 %v915, 112
        %v1269 = vpop.permute.xlu0 %1268
        %1270 = vrot.lane.b32.xlu0 %v916, 112
        %v1271 = vpop.permute.xlu0 %1270
        %v1272 = vsel %vm752, %v1269, %v1271
        %v1276 = vsel %vm752, %v1271, %v1269
        %v1277 = vmul.f32 %v1272, %v762
        %v1278 = vmul.f32 %v1276, %v763
        %1279 = vset.pattern.permute.xlu0 28
        %1280 = vperm.xlu0 %1279, %v305
        %v1281 = vpop.permute.xlu0 %1280
        %v1283 = vperm.slane %v1277, 0
        %v1284 = vperm.slane %v1278, 0
        %v1285 = vmul.f32 %v1281, %v1283
        %v1286 = vmul.f32 %v1281, %v1284
        %v1287 = vadd.f32 %v1266, %v1285
        %v1288 = vadd.f32 %v1267, %v1286
        %1289 = vset.pattern.permute.xlu0 29
        %1290 = vperm.xlu0 %1289, %v305
        %v1291 = vpop.permute.xlu0 %1290
        %v1293 = vperm.slane %v1277, 1
        %v1294 = vperm.slane %v1278, 1
        %v1295 = vmul.f32 %v1291, %v1293
        %v1296 = vmul.f32 %v1291, %v1294
        %v1297 = vadd.f32 %v1287, %v1295
        %v1298 = vadd.f32 %v1288, %v1296
        %1299 = vset.pattern.permute.xlu0 30
        %1300 = vperm.xlu0 %1299, %v305
        %v1301 = vpop.permute.xlu0 %1300
        %v1303 = vperm.slane %v1277, 2
        %v1304 = vperm.slane %v1278, 2
        %v1305 = vmul.f32 %v1301, %v1303
        %v1306 = vmul.f32 %v1301, %v1304
        %v1307 = vadd.f32 %v1297, %v1305
        %v1308 = vadd.f32 %v1298, %v1306
        %1309 = vset.pattern.permute.xlu0 31
        %1310 = vperm.xlu0 %1309, %v305
        %v1311 = vpop.permute.xlu0 %1310
        %v1313 = vperm.slane %v1277, 3
        %v1314 = vperm.slane %v1278, 3
        %v1315 = vmul.f32 %v1311, %v1313
        %v1316 = vmul.f32 %v1311, %v1314
        %v1317 = vadd.f32 %v1307, %v1315
        %v1318 = vadd.f32 %v1308, %v1316
        %1319 = vrot.lane.b32.xlu0 %v915, 111
        %v1320 = vpop.permute.xlu0 %1319
        %1321 = vrot.lane.b32.xlu0 %v916, 111
        %v1322 = vpop.permute.xlu0 %1321
        %v1323 = vsel %vm813, %v1320, %v1322
        %v1327 = vsel %vm813, %v1322, %v1320
        %v1328 = vmul.f32 %v1323, %v823
        %v1329 = vmul.f32 %v1327, %v824
        %1330 = vset.pattern.permute.xlu0 32
        %1331 = vperm.xlu0 %1330, %v305
        %v1332 = vpop.permute.xlu0 %1331
        %v1334 = vperm.slane %v1328, 0
        %v1335 = vperm.slane %v1329, 0
        %v1336 = vmul.f32 %v1332, %v1334
        %v1337 = vmul.f32 %v1332, %v1335
        %v1338 = vadd.f32 %v1317, %v1336
        %v1339 = vadd.f32 %v1318, %v1337
        %1340 = vset.pattern.permute.xlu0 33
        %1341 = vperm.xlu0 %1340, %v305
        %v1342 = vpop.permute.xlu0 %1341
        %v1344 = vperm.slane %v1328, 1
        %v1345 = vperm.slane %v1329, 1
        %v1346 = vmul.f32 %v1342, %v1344
        %v1347 = vmul.f32 %v1342, %v1345
        %v1348 = vadd.f32 %v1338, %v1346
        %v1349 = vadd.f32 %v1339, %v1347
        %1350 = vset.pattern.permute.xlu0 34
        %1351 = vperm.xlu0 %1350, %v305
        %v1352 = vpop.permute.xlu0 %1351
        %v1354 = vperm.slane %v1328, 2
        %v1355 = vperm.slane %v1329, 2
        %v1356 = vmul.f32 %v1352, %v1354
        %v1357 = vmul.f32 %v1352, %v1355
        %v1358 = vadd.f32 %v1348, %v1356
        %v1359 = vadd.f32 %v1349, %v1357
        %1360 = vset.pattern.permute.xlu0 35
        %1361 = vperm.xlu0 %1360, %v305
        %v1362 = vpop.permute.xlu0 %1361
        %v1364 = vperm.slane %v1328, 3
        %v1365 = vperm.slane %v1329, 3
        %v1366 = vmul.f32 %v1362, %v1364
        %v1367 = vmul.f32 %v1362, %v1365
        %v1368 = vadd.f32 %v1358, %v1366
        %v1369 = vadd.f32 %v1359, %v1367
        %1371 = vrot.lane.b32.xlu0 %v1369, 17
        %v1372 = vpop.permute.xlu0 %1371
        %1375 = vrot.lane.b32.xlu0 %v1368, 17
        %v1376 = vpop.permute.xlu0 %1375
        %v1377 = vsel %vm324, %v1376, %v1372
        %v1380 = vsel %vm324, %v1372, %v1376
        %v1381 = vmul.f32 %v1380, %v329
        %v1382 = vmul.f32 %v1377, %v330
        %v1383 = vperm.slane %v1381, 0
        %v1384 = vperm.slane %v1382, 0
        %v1385 = vmul.f32 %v933, %v1383
        %v1386 = vmul.f32 %v933, %v1384
        %v1387 = vadd.f32 %v1385, 0.0
        %v1388 = vadd.f32 %v1386, 0.0
        %v1389 = vperm.slane %v1381, 1
        %v1390 = vperm.slane %v1382, 1
        %v1391 = vmul.f32 %v943, %v1389
        %v1392 = vmul.f32 %v943, %v1390
        %v1393 = vadd.f32 %v1387, %v1391
        %v1394 = vadd.f32 %v1388, %v1392
        %v1395 = vperm.slane %v1381, 2
        %v1396 = vperm.slane %v1382, 2
        %v1397 = vmul.f32 %v953, %v1395
        %v1398 = vmul.f32 %v953, %v1396
        %v1399 = vadd.f32 %v1393, %v1397
        %v1400 = vadd.f32 %v1394, %v1398
        %v1401 = vperm.slane %v1381, 3
        %v1402 = vperm.slane %v1382, 3
        %v1403 = vmul.f32 %v963, %v1401
        %v1404 = vmul.f32 %v963, %v1402
        %v1405 = vadd.f32 %v1399, %v1403
        %v1406 = vadd.f32 %v1400, %v1404
        %1407 = vrot.lane.b32.xlu0 %v1369, 16
        %v1408 = vpop.permute.xlu0 %1407
        %1410 = vrot.lane.b32.xlu0 %v1368, 16
        %v1411 = vpop.permute.xlu0 %1410
        %v1412 = vsel %vm386, %v1411, %v1408
        %v1415 = vsel %vm386, %v1408, %v1411
        %v1416 = vmul.f32 %v1415, %v391
        %v1417 = vmul.f32 %v1412, %v392
        %v1418 = vperm.slane %v1416, 0
        %v1419 = vperm.slane %v1417, 0
        %v1420 = vmul.f32 %v984, %v1418
        %v1421 = vmul.f32 %v984, %v1419
        %v1422 = vadd.f32 %v1405, %v1420
        %v1423 = vadd.f32 %v1406, %v1421
        %v1424 = vperm.slane %v1416, 1
        %v1425 = vperm.slane %v1417, 1
        %v1426 = vmul.f32 %v994, %v1424
        %v1427 = vmul.f32 %v994, %v1425
        %v1428 = vadd.f32 %v1422, %v1426
        %v1429 = vadd.f32 %v1423, %v1427
        %v1430 = vperm.slane %v1416, 2
        %v1431 = vperm.slane %v1417, 2
        %v1432 = vmul.f32 %v1004, %v1430
        %v1433 = vmul.f32 %v1004, %v1431
        %v1434 = vadd.f32 %v1428, %v1432
        %v1435 = vadd.f32 %v1429, %v1433
        %v1436 = vperm.slane %v1416, 3
        %v1437 = vperm.slane %v1417, 3
        %v1438 = vmul.f32 %v1014, %v1436
        %v1439 = vmul.f32 %v1014, %v1437
        %v1440 = vadd.f32 %v1434, %v1438
        %v1441 = vadd.f32 %v1435, %v1439
        %1442 = vrot.lane.b32.xlu0 %v1369, 15
        %v1443 = vpop.permute.xlu0 %1442
        %1445 = vrot.lane.b32.xlu0 %v1368, 15
        %v1446 = vpop.permute.xlu0 %1445
        %v1447 = vsel %vm447, %v1446, %v1443
        %v1450 = vsel %vm447, %v1443, %v1446
        %v1451 = vmul.f32 %v1450, %v452
        %v1452 = vmul.f32 %v1447, %v453
        %v1453 = vperm.slane %v1451, 0
        %v1454 = vperm.slane %v1452, 0
        %v1455 = vmul.f32 %v1035, %v1453
        %v1456 = vmul.f32 %v1035, %v1454
        %v1457 = vadd.f32 %v1440, %v1455
        %v1458 = vadd.f32 %v1441, %v1456
        %v1459 = vperm.slane %v1451, 1
        %v1460 = vperm.slane %v1452, 1
        %v1461 = vmul.f32 %v1045, %v1459
        %v1462 = vmul.f32 %v1045, %v1460
        %v1463 = vadd.f32 %v1457, %v1461
        %v1464 = vadd.f32 %v1458, %v1462
        %v1465 = vperm.slane %v1451, 2
        %v1466 = vperm.slane %v1452, 2
        %v1467 = vmul.f32 %v1055, %v1465
        %v1468 = vmul.f32 %v1055, %v1466
        %v1469 = vadd.f32 %v1463, %v1467
        %v1470 = vadd.f32 %v1464, %v1468
        %v1471 = vperm.slane %v1451, 3
        %v1472 = vperm.slane %v1452, 3
        %v1473 = vmul.f32 %v1065, %v1471
        %v1474 = vmul.f32 %v1065, %v1472
        %v1475 = vadd.f32 %v1469, %v1473
        %v1476 = vadd.f32 %v1470, %v1474
        %1477 = vrot.lane.b32.xlu0 %v1369, 1
        %v1478 = vpop.permute.xlu0 %1477
        %1480 = vrot.lane.b32.xlu0 %v1368, 1
        %v1481 = vpop.permute.xlu0 %1480
        %v1482 = vsel %vm508, %v1481, %v1478
        %v1485 = vsel %vm508, %v1478, %v1481
        %v1486 = vmul.f32 %v1485, %v513
        %v1487 = vmul.f32 %v1482, %v514
        %v1488 = vperm.slane %v1486, 0
        %v1489 = vperm.slane %v1487, 0
        %v1490 = vmul.f32 %v1086, %v1488
        %v1491 = vmul.f32 %v1086, %v1489
        %v1492 = vadd.f32 %v1475, %v1490
        %v1493 = vadd.f32 %v1476, %v1491
        %v1494 = vperm.slane %v1486, 1
        %v1495 = vperm.slane %v1487, 1
        %v1496 = vmul.f32 %v1096, %v1494
        %v1497 = vmul.f32 %v1096, %v1495
        %v1498 = vadd.f32 %v1492, %v1496
        %v1499 = vadd.f32 %v1493, %v1497
        %v1500 = vperm.slane %v1486, 2
        %v1501 = vperm.slane %v1487, 2
        %v1502 = vmul.f32 %v1106, %v1500
        %v1503 = vmul.f32 %v1106, %v1501
        %v1504 = vadd.f32 %v1498, %v1502
        %v1505 = vadd.f32 %v1499, %v1503
        %v1506 = vperm.slane %v1486, 3
        %v1507 = vperm.slane %v1487, 3
        %v1508 = vmul.f32 %v1116, %v1506
        %v1509 = vmul.f32 %v1116, %v1507
        %v1510 = vadd.f32 %v1504, %v1508
        %v1511 = vadd.f32 %v1505, %v1509
        %v1512 = vmul.f32 %v1368, %v557
        %v1513 = vmul.f32 %v1369, %v558
        %v1514 = vperm.slane %v1512, 0
        %v1515 = vperm.slane %v1513, 0
        %v1516 = vmul.f32 %v1128, %v1514
        %v1517 = vmul.f32 %v1128, %v1515
        %v1518 = vadd.f32 %v1510, %v1516
        %v1519 = vadd.f32 %v1511, %v1517
        %v1520 = vperm.slane %v1512, 1
        %v1521 = vperm.slane %v1513, 1
        %v1522 = vmul.f32 %v1138, %v1520
        %v1523 = vmul.f32 %v1138, %v1521
        %v1524 = vadd.f32 %v1518, %v1522
        %v1525 = vadd.f32 %v1519, %v1523
        %v1526 = vperm.slane %v1512, 2
        %v1527 = vperm.slane %v1513, 2
        %v1528 = vmul.f32 %v1148, %v1526
        %v1529 = vmul.f32 %v1148, %v1527
        %v1530 = vadd.f32 %v1524, %v1528
        %v1531 = vadd.f32 %v1525, %v1529
        %v1532 = vperm.slane %v1512, 3
        %v1533 = vperm.slane %v1513, 3
        %v1534 = vmul.f32 %v1158, %v1532
        %v1535 = vmul.f32 %v1158, %v1533
        %v1536 = vadd.f32 %v1530, %v1534
        %v1537 = vadd.f32 %v1531, %v1535
        %1538 = vrot.lane.b32.xlu0 %v1368, 127
        %v1539 = vpop.permute.xlu0 %1538
        %1540 = vrot.lane.b32.xlu0 %v1369, 127
        %v1541 = vpop.permute.xlu0 %1540
        %v1542 = vsel %vm630, %v1539, %v1541
        %v1546 = vsel %vm630, %v1541, %v1539
        %v1547 = vmul.f32 %v1542, %v640
        %v1548 = vmul.f32 %v1546, %v641
        %v1549 = vperm.slane %v1547, 0
        %v1550 = vperm.slane %v1548, 0
        %v1551 = vmul.f32 %v1179, %v1549
        %v1552 = vmul.f32 %v1179, %v1550
        %v1553 = vadd.f32 %v1536, %v1551
        %v1554 = vadd.f32 %v1537, %v1552
        %v1555 = vperm.slane %v1547, 1
        %v1556 = vperm.slane %v1548, 1
        %v1557 = vmul.f32 %v1189, %v1555
        %v1558 = vmul.f32 %v1189, %v1556
        %v1559 = vadd.f32 %v1553, %v1557
        %v1560 = vadd.f32 %v1554, %v1558
        %v1561 = vperm.slane %v1547, 2
        %v1562 = vperm.slane %v1548, 2
        %v1563 = vmul.f32 %v1199, %v1561
        %v1564 = vmul.f32 %v1199, %v1562
        %v1565 = vadd.f32 %v1559, %v1563
        %v1566 = vadd.f32 %v1560, %v1564
        %v1567 = vperm.slane %v1547, 3
        %v1568 = vperm.slane %v1548, 3
        %v1569 = vmul.f32 %v1209, %v1567
        %v1570 = vmul.f32 %v1209, %v1568
        %v1571 = vadd.f32 %v1565, %v1569
        %v1572 = vadd.f32 %v1566, %v1570
        %1573 = vrot.lane.b32.xlu0 %v1368, 113
        %v1574 = vpop.permute.xlu0 %1573
        %1575 = vrot.lane.b32.xlu0 %v1369, 113
        %v1576 = vpop.permute.xlu0 %1575
        %v1577 = vsel %vm691, %v1574, %v1576
        %v1581 = vsel %vm691, %v1576, %v1574
        %v1582 = vmul.f32 %v1577, %v701
        %v1583 = vmul.f32 %v1581, %v702
        %v1584 = vperm.slane %v1582, 0
        %v1585 = vperm.slane %v1583, 0
        %v1586 = vmul.f32 %v1230, %v1584
        %v1587 = vmul.f32 %v1230, %v1585
        %v1588 = vadd.f32 %v1571, %v1586
        %v1589 = vadd.f32 %v1572, %v1587
        %v1590 = vperm.slane %v1582, 1
        %v1591 = vperm.slane %v1583, 1
        %v1592 = vmul.f32 %v1240, %v1590
        %v1593 = vmul.f32 %v1240, %v1591
        %v1594 = vadd.f32 %v1588, %v1592
        %v1595 = vadd.f32 %v1589, %v1593
        %v1596 = vperm.slane %v1582, 2
        %v1597 = vperm.slane %v1583, 2
        %v1598 = vmul.f32 %v1250, %v1596
        %v1599 = vmul.f32 %v1250, %v1597
        %v1600 = vadd.f32 %v1594, %v1598
        %v1601 = vadd.f32 %v1595, %v1599
        %v1602 = vperm.slane %v1582, 3
        %v1603 = vperm.slane %v1583, 3
        %v1604 = vmul.f32 %v1260, %v1602
        %v1605 = vmul.f32 %v1260, %v1603
        %v1606 = vadd.f32 %v1600, %v1604
        %v1607 = vadd.f32 %v1601, %v1605
        %1608 = vrot.lane.b32.xlu0 %v1368, 112
        %v1609 = vpop.permute.xlu0 %1608
        %1610 = vrot.lane.b32.xlu0 %v1369, 112
        %v1611 = vpop.permute.xlu0 %1610
        %v1612 = vsel %vm752, %v1609, %v1611
        %v1616 = vsel %vm752, %v1611, %v1609
        %v1617 = vmul.f32 %v1612, %v762
        %v1618 = vmul.f32 %v1616, %v763
        %v1619 = vperm.slane %v1617, 0
        %v1620 = vperm.slane %v1618, 0
        %v1621 = vmul.f32 %v1281, %v1619
        %v1622 = vmul.f32 %v1281, %v1620
        %v1623 = vadd.f32 %v1606, %v1621
        %v1624 = vadd.f32 %v1607, %v1622
        %v1625 = vperm.slane %v1617, 1
        %v1626 = vperm.slane %v1618, 1
        %v1627 = vmul.f32 %v1291, %v1625
        %v1628 = vmul.f32 %v1291, %v1626
        %v1629 = vadd.f32 %v1623, %v1627
        %v1630 = vadd.f32 %v1624, %v1628
        %v1631 = vperm.slane %v1617, 2
        %v1632 = vperm.slane %v1618, 2
        %v1633 = vmul.f32 %v1301, %v1631
        %v1634 = vmul.f32 %v1301, %v1632
        %v1635 = vadd.f32 %v1629, %v1633
        %v1636 = vadd.f32 %v1630, %v1634
        %v1637 = vperm.slane %v1617, 3
        %v1638 = vperm.slane %v1618, 3
        %v1639 = vmul.f32 %v1311, %v1637
        %v1640 = vmul.f32 %v1311, %v1638
        %v1641 = vadd.f32 %v1635, %v1639
        %v1642 = vadd.f32 %v1636, %v1640
        %1643 = vrot.lane.b32.xlu0 %v1368, 111
        %v1644 = vpop.permute.xlu0 %1643
        %1645 = vrot.lane.b32.xlu0 %v1369, 111
        %v1646 = vpop.permute.xlu0 %1645
        %v1647 = vsel %vm813, %v1644, %v1646
        %v1651 = vsel %vm813, %v1646, %v1644
        %v1652 = vmul.f32 %v1647, %v823
        %v1653 = vmul.f32 %v1651, %v824
        %v1654 = vperm.slane %v1652, 0
        %v1655 = vperm.slane %v1653, 0
        %v1656 = vmul.f32 %v1332, %v1654
        %v1657 = vmul.f32 %v1332, %v1655
        %v1658 = vadd.f32 %v1641, %v1656
        %v1659 = vadd.f32 %v1642, %v1657
        %v1660 = vperm.slane %v1652, 1
        %v1661 = vperm.slane %v1653, 1
        %v1662 = vmul.f32 %v1342, %v1660
        %v1663 = vmul.f32 %v1342, %v1661
        %v1664 = vadd.f32 %v1658, %v1662
        %v1665 = vadd.f32 %v1659, %v1663
        %v1666 = vperm.slane %v1652, 2
        %v1667 = vperm.slane %v1653, 2
        %v1668 = vmul.f32 %v1352, %v1666
        %v1669 = vmul.f32 %v1352, %v1667
        %v1670 = vadd.f32 %v1664, %v1668
        %v1671 = vadd.f32 %v1665, %v1669
        %v1672 = vperm.slane %v1652, 3
        %v1673 = vperm.slane %v1653, 3
        %v1674 = vmul.f32 %v1362, %v1672
        %v1675 = vmul.f32 %v1362, %v1673
        %v1676 = vadd.f32 %v1670, %v1674
        %v1677 = vadd.f32 %v1671, %v1675
        %v1678 = vsel %vm562, %v1676, 0.0
        %v1679 = vsel %vm562, %v1677, 0.0
        %v1680 = vadd.f32 %v1678, %v1679
        %1681 = vadd.xlane.f32.xlu0 %v1680
        %v1682 = vpop.xlane.xlu0 %1681
        %v1683 = vmul.f32 %v1676, %v1676
        %v1684 = vmul.f32 %v1677, %v1677
        %v1685 = vsel %vm562, %v1683, 0.0
        %v1686 = vsel %vm562, %v1684, 0.0
        %v1687 = vadd.f32 %v1685, %v1686
        %1688 = vadd.xlane.f32.xlu0 %v1687
        %v1689 = vpop.xlane.xlu0 %1688
        %v1690 = vmul.f32 %v1682, 0.00390625
        %v1691 = vmul.f32 %v1689, 0.00390625
        %v1692 = vmul.f32 %v1690, %v1690
        %v1693 = vsub.f32 %v1691, %v1692
        %v1694 = vsub.f32 %v1676, %v1690
        %v1695 = vsub.f32 %v1677, %v1690
        %v1696 = vadd.f32 %v1693, 1e-05
        %v1697 = vrsqrt.pop %v1696
        %v1698 = vmul.f32 %v1697, %v1696
        %v1699 = vmul.f32 %v1698, %v1697
        %v1700 = vmul.f32 0.5, %v1699
        %v1701 = vsub.f32 1.5, %v1700
        %v1702 = vmul.f32 %v1697, %v1701
        %vm1703 = vweird.f32 %v1696
        %vm1704 = vweird.f32 %v1697
        %vm1705 = vmor %vm1703, %vm1704
        %v1706 = vsel %vm1705, %v1697, %v1702
        %v1707 = vmul.f32 %v1694, %v1706
        %v1708 = vmul.f32 %v1695, %v1706
        %v1709 = vperm.slane %v306, 2
        %v1710 = vperm.slane %v306, 6
        %v1713 = vperm.slane %v1709, 2
        %v1714 = vperm.slane %v1710, 2
        %v1715 = vmul.f32 %v1707, %v1713
        %v1716 = vmul.f32 %v1708, %v1714
        %v1717 = vperm.slane %v306, 3
        %v1718 = vperm.slane %v306, 7
        %v1721 = vperm.slane %v1717, 3
        %v1722 = vperm.slane %v1718, 3
        %v1723 = vadd.f32 %v1715, %v1721
        %v1724 = vadd.f32 %v1716, %v1722
        %1725 = vst [vmem:[#allocation1] ss:$2 sm:$0xff] %v303
        %v1726 = vld.sshfl [vmem:[#allocation1] sm:$0xff pattern:$0x75316420]
        %v1727 = vld.sshfl [vmem:[#allocation1 + $0x8] sm:$0xff pattern:$0x75316420]
        %v1730 = vadd.f32 %v1723, %v1726
        %v1731 = vadd.f32 %v1724, %v1727
        %v1732 = vmax.f32 %v1730, 0.0
        %v1733 = vmax.f32 %v1731, 0.0
        %v1736 = vrot.slane %v1733, 4
        %v1737 = vsel %vm562, %v1732, %v1736
        %1739 = vst [vmem:[%s302] sm:$0xff] %v1737
        %s1740 = sand.u32 %s142, 1
        %s1741 = scalar_lea.sflag [#allocation4], %s1740
        %s1742 = sand.u32 %s142, 1
        %s1743 = smul.addr %s1742, 8
        %s1744 = scalar_lea.vmem [#allocation11], %s1743
        // Predicated region
        $region61: #{tpu_custom_call.1} parent=39 // pred_check
          %p1745 = pneg %p152
        $region62: #{tpu_custom_call.1} parent=39 // pred_check_branch
          %1747 = sbr.rel (%p1745) target = $region64
        $region63: #{tpu_custom_call.1} parent=39 // pred_region
          %1749 = vsyncadd %s1741, 0
          %s1750 = smul.addr %s24, 2
          %s1751 = smul.addr %s1750, 4
          %s1752 = scalar_lea.hbm %s5, %s1751
          %s1754 = sshll.u32 %s1744, 4
          %s1755 = int_to_ptr.vmem [resolvable:$true] %s1754
          %s1756 = sshll.u32 %s1752, 4
          %s1757 = int_to_ptr.hbm [resolvable:$true] %s1756
          %1759 = dma.vmem_to_hbm [thread:$0]  %s1755, 128, %s1757, %s1741
        $region64: #{tpu_custom_call.1} parent=39 // pred_fallthru
          _
      $region40: #{tpu_custom_call.1} parent=5 // pred_fallthru
        _
      %p1760 = scmp.le.s32.totalorder 2, %s19
      // Predicated region
      $region65: #{tpu_custom_call.1} parent=5 // pred_check
        %p1761 = pneg %p1760
      $region66: #{tpu_custom_call.1} parent=5 // pred_check_branch
        %1763 = sbr.rel (%p1761) target = $region68
      $region67: #{tpu_custom_call.1} parent=5 // pred_region
        %s1764 = ssub.s32 %s19, 2
        // Predicated region
        $region69: #{tpu_custom_call.1} parent=67 // pred_check
          %p1765 = pneg %p158
        $region70: #{tpu_custom_call.1} parent=67 // pred_check_branch
          %1767 = sbr.rel (%p1765) target = $region72
        $region71: #{tpu_custom_call.1} parent=67 // pred_region
          %s1768 = sand.u32 %s143, 1
          %s1769 = scalar_lea.sflag [#allocation4], %s1768
          %s1770 = sand.u32 %s143, 1
          %s1771 = smul.addr %s1770, 8
          %s1772 = scalar_lea.vmem [#allocation11], %s1771
          %1774 = dma.done %s1769, 128
        $region72: #{tpu_custom_call.1} parent=67 // pred_fallthru
          _
      $region68: #{tpu_custom_call.1} parent=5 // pred_fallthru
        _
    $region6: #{tpu_custom_call.1} parent=1 // loop_footer
      %s23 = sadd.s32 1, %s19
    $region7: #{tpu_custom_call.1} parent=1 // loop_footer_branch
      %18 = sbr.rel target = $region3
    $region8: #{tpu_custom_call.1} parent=1 // loop_exit
      _
    %1775 = vsyncpa [#allocation3], 1
    %s1776 = scalar_lea.sflag [#allocation3], 1
    %1777 = vsyncpa %s1776, 1
    %1778 = vsyncpa [#allocation6], 1
    %1779 = vsyncpa [#allocation9], 1
    %1780 = vsyncpa [#allocation4], 1
    %s1781 = scalar_lea.sflag [#allocation4], 1
    %1782 = vsyncpa %s1781, 1

</llo_original>
